<compile_context>
chip_gen: v7x
topology: tpu7x:2x2x1
jax: 0.10.0
libtpu: 0.0.40
codegen_flags: <defaults>
</compile_context>

<pallas_src>
import functools

import jax
import jax.numpy as jnp
from jax import lax
from jax.experimental import pallas as pl
from jax.experimental.pallas import tpu as pltpu


def _round_up(x, m):
    return ((x + m - 1) // m) * m


def _convlstm_kernel(win_ref, w_ref, b_ref, c_ref, h_out_ref, c_out_ref, *,
                     hidden_dim, ksize, wp, tile_m):
    """One lane-dense pixel tile per grid step (channels on sublanes).

    win_ref   : (1, Cin_pad, tile_m + 2*halo) bf16  halo'd activation window
    w_ref     : (K*K, 4*Ch, Cin_pad)          bf16  per-tap conv weights (resident)
    b_ref     : (4*Ch, 1)                     f32   conv bias (resident)
    c_ref     : (Ch, tile_m)                  f32   previous cell state tile
    h_out_ref : (Ch, tile_m)
    c_out_ref : (Ch, tile_m)
    """
    ch = hidden_dim
    window = win_ref[0]                        # (Cin_pad, tile_m + 2*halo)

    # Conv as K*K shifted matmuls accumulated in f32 -- no im2col in HBM.
    # Tap slice starts are static; the lane realignment happens in VMEM and is
    # cheap compared to the HBM bytes it saves.
    gates = None
    for kh in range(ksize):
        for kw in range(ksize):
            t = kh * ksize + kw
            s = kh * wp + kw                   # static lane offset of this tap
            part = jnp.dot(w_ref[t], window[:, s:s + tile_m],
                           preferred_element_type=jnp.float32)
            gates = part if gates is None else gates + part

    gates = gates + b_ref[...]                 # f32 bias add, broadcast over lanes

    # Gate splits are sublane-aligned static slices (Ch is a multiple of 8).
    i_g = jax.nn.sigmoid(gates[0 * ch:1 * ch, :])
    f_g = jax.nn.sigmoid(gates[1 * ch:2 * ch, :])
    o_g = jax.nn.sigmoid(gates[2 * ch:3 * ch, :])
    g_g = jnp.tanh(gates[3 * ch:4 * ch, :])

    c_prev = c_ref[...].astype(jnp.float32)
    c_next = f_g * c_prev + i_g * g_g
    h_next = o_g * jnp.tanh(c_next)

    # Lane-dense, unmasked full-block stores.
    h_out_ref[...] = h_next.astype(h_out_ref.dtype)
    c_out_ref[...] = c_next.astype(c_out_ref.dtype)


def _pick_tile_m(mp, cin_pad, ch, halo, n_taps, max_bytes=8 << 20, cap=2048):
    """Largest lane-dense (multiple-of-128) pixel tile whose double-buffered
    per-step VMEM footprint (incl. the f32 gates temporary, elementwise
    headroom and the resident weights) fits `max_bytes`, avoids excessive
    padding waste, and prefers >=4 grid steps (keeps both v7x TensorCores busy
    with a real pipeline) as long as that doesn't force tiny tiles."""
    resident = n_taps * 4 * ch * cin_pad * 2 + 4 * ch * 4   # weights + bias

    def footprint(t):
        win = t + 2 * halo
        return (resident
                + 2 * cin_pad * win * 2        # halo'd window (bf16), double-buffered
                + 2 * ch * t * 4               # c_prev (f32), double-buffered
                + 2 * 2 * ch * t * 4           # h_out + c_out (f32), double-buffered
                + 4 * ch * t * 4               # f32 gates temporary (lives in VMEM)
                + (3 * 4 * ch * t * 4) // 2)   # elementwise temps / relayout headroom

    def steps(t):
        return -(-mp // t)

    def waste(t):
        return steps(t) * t - mp

    hi = max(128, min(cap, _round_up(mp, 128)))
    cands = list(range(128, hi + 1, 128))
    fitting = [t for t in cands if footprint(t) <= max_bytes] or [128]
    min_waste = min(waste(t) for t in fitting)
    slim = [t for t in fitting if waste(t) <= max(min_waste, mp // 8)]
    for min_steps, min_t in ((4, 512), (2, 256), (1, 128)):
        ok = [t for t in slim if steps(t) >= min_steps and t >= min_t]
        if ok:
            return max(ok)
    return max(slim)


def convlstm_cell(x, h, c, weight, bias, kernel_size):
    """PyTorch-compatible ConvLSTMCell.forward.

    x      : (B, Cin_x, H, W)        NCHW
    h, c   : (B, Ch, H, W)           NCHW
    weight : (4*Ch, Cin_x+Ch, K, K)  OIHW (PyTorch Conv2d)
    bias   : (4*Ch,)
    returns (h_next, c_next) in NCHW; h_next follows h.dtype, c_next follows c.dtype.
    """
    K = kernel_size
    assert K % 2 == 1, "ConvLSTMCell assumes odd kernel_size ('same' padding)"
    p = K // 2
    B, cin_x, H, W = x.shape
    ch = h.shape[1]
    cin = cin_x + ch
    cin_pad = _round_up(cin, 16)               # bf16 sublane packing
    hp, wp = H + 2 * p, W + 2 * p
    mp = B * hp * wp                           # pixels of the zero-padded grid
    halo = p * wp + p                          # max |flat tap offset|

    tile_m = _pick_tile_m(mp, cin_pad, ch, halo, K * K)
    n_tiles = -(-mp // tile_m)
    mp_r = n_tiles * tile_m                    # lane-dense, no partial tiles
    win_w = tile_m + 2 * halo

    # ---- glue (all bf16, un-amplified): build halo'd per-tile windows --------
    # TODO(synk): for recurrent use, keep x/h/c resident in this (C, pixels)
    # layout across timesteps (and split W into Wx/Wh) so this per-step glue is
    # paid once, not every timestep.
    comb = jnp.concatenate([x.astype(jnp.bfloat16), h.astype(jnp.bfloat16)],
                           axis=1)                                     # (B, Cin, H, W) bf16
    comb = jnp.transpose(comb, (1, 0, 2, 3))                           # (Cin, B, H, W)
    comb = jnp.pad(comb, ((0, cin_pad - cin), (0, 0), (p, p), (p, p)))
    comb = comb.reshape(cin_pad, mp)                                   # (Cin_pad, Mp)
    comb = jnp.pad(comb, ((0, 0), (halo, (mp_r - mp) + halo)))         # (Cin_pad, Mp_r + 2*halo)
    starts = jnp.arange(n_tiles, dtype=jnp.int32) * tile_m
    windows = jax.vmap(
        lambda s: lax.dynamic_slice(comb, (0, s), (cin_pad, win_w)))(starts)
    # windows: (n_tiles, Cin_pad, tile_m + 2*halo) bf16 (~(1 + 2*halo/tile_m) x raw bytes)

    # cell state in the same padded-flat layout (channels on sublanes).
    c_t = jnp.transpose(c, (1, 0, 2, 3))                               # (Ch, B, H, W)
    c_t = jnp.pad(c_t, ((0, 0), (0, 0), (p, p), (p, p))).reshape(ch, mp)
    c_t = jnp.pad(c_t, ((0, 0), (0, mp_r - mp)))                       # (Ch, Mp_r)

    # per-tap weights (K*K, 4*Ch, Cin_pad) bf16 + f32 bias column.
    w_taps = jnp.pad(weight, ((0, 0), (0, cin_pad - cin), (0, 0), (0, 0)))
    w_taps = jnp.transpose(w_taps, (2, 3, 0, 1)).reshape(K * K, 4 * ch, cin_pad)
    w_taps = w_taps.astype(jnp.bfloat16)
    b_col = bias.reshape(4 * ch, 1).astype(jnp.float32)

    kernel = functools.partial(_convlstm_kernel, hidden_dim=ch, ksize=K,
                               wp=wp, tile_m=tile_m)

    h_flat, c_flat = pl.pallas_call(
        kernel,
        out_shape=(
            jax.ShapeDtypeStruct((ch, mp_r), h.dtype),
            jax.ShapeDtypeStruct((ch, mp_r), c.dtype),
        ),
        grid_spec=pltpu.PrefetchScalarGridSpec(
            num_scalar_prefetch=0,
            grid=(n_tiles,),
            in_specs=[
                pl.BlockSpec((1, cin_pad, win_w), lambda i: (i, 0, 0)),       # window tile
                pl.BlockSpec((K * K, 4 * ch, cin_pad), lambda i: (0, 0, 0)),  # weights (resident)
                pl.BlockSpec((4 * ch, 1), lambda i: (0, 0)),                  # bias (resident)
                pl.BlockSpec((ch, tile_m), lambda i: (0, i)),                 # c_prev tile
            ],
            out_specs=[
                pl.BlockSpec((ch, tile_m), lambda i: (0, i)),                 # h_next tile
                pl.BlockSpec((ch, tile_m), lambda i: (0, i)),                 # c_next tile
            ],
        ),
        compiler_params=pltpu.CompilerParams(
            dimension_semantics=("parallel",),
            vmem_limit_bytes=48 * 1024 * 1024),
    )(windows, w_taps, b_col, c_t)

    # ---- glue: padded-flat (Ch, Mp_r) -> NCHW interior ------------------------
    def _extract(flat):
        g = flat[:, :mp].reshape(ch, B, hp, wp)[:, :, p:p + H, p:p + W]
        return jnp.transpose(g, (1, 0, 2, 3))

    return _extract(h_flat), _extract(c_flat)


def convlstm_cell_ref(x, h, c, weight, bias, kernel_size):
    """Pure-JAX f32 reference (mirrors the PyTorch forward exactly, NCHW)."""
    p = kernel_size // 2
    combined = jnp.concatenate([x, h], axis=1)
    gates = lax.conv_general_dilated(
        combined, weight, window_strides=(1, 1), padding=[(p, p), (p, p)],
        dimension_numbers=("NCHW", "OIHW", "NCHW"))
    gates = gates + bias[None, :, None, None]
    i_g, f_g, o_g, g_g = jnp.split(gates, 4, axis=1)
    i_g, f_g, o_g = jax.nn.sigmoid(i_g), jax.nn.sigmoid(f_g), jax.nn.sigmoid(o_g)
    g_g = jnp.tanh(g_g)
    c_next = f_g * c + i_g * g_g
    h_next = o_g * jnp.tanh(c_next)
    return h_next, c_next


def convlstm_cell_ref_bf16_operands(x, h, c, weight, bias, kernel_size):
    """Reference with the matmul operands rounded to bf16 (as the kernel's MXU
    inputs are), f32 accumulation, f32 bias add and f32 gate math — matches
    the kernel's numerics closely."""
    f32 = jnp.float32
    xb = x.astype(jnp.bfloat16).astype(f32)
    hb = h.astype(jnp.bfloat16).astype(f32)
    wb = weight.astype(jnp.bfloat16).astype(f32)
    return convlstm_cell_ref(xb, hb, c, wb, bias.astype(f32), kernel_size)


if __name__ == "__main__":
    key = jax.random.PRNGKey(0)
    k_x, k_h, k_c, k_w, k_b = jax.random.split(key, 5)

    B, cin_x, H, W = 2, 4, 16, 16
    ch, K = 32, 3

    x = jax.random.normal(k_x, (B, cin_x, H, W), jnp.float32)
    h = jax.random.normal(k_h, (B, ch, H, W), jnp.float32)
    c = jax.random.normal(k_c, (B, ch, H, W), jnp.float32)

    # Deterministic synthetic conv params (Conv2d(Cin_x+Ch -> 4*Ch, K, padding=K//2)).
    fan_in = (cin_x + ch) * K * K
    bound = float(fan_in) ** -0.5
    weight = jax.random.uniform(k_w, (4 * ch, cin_x + ch, K, K), jnp.float32,
                                minval=-bound, maxval=bound)
    bias = jax.random.uniform(k_b, (4 * ch,), jnp.float32,
                              minval=-bound, maxval=bound)

    h_next, c_next = convlstm_cell(x, h, c, weight, bias, K)
    jax.block_until_ready((h_next, c_next))
    assert h_next.shape == (B, ch, H, W) and c_next.shape == (B, ch, H, W)
    assert h_next.dtype == h.dtype and c_next.dtype == c.dtype

    # Tight check vs a reference with identically bf16-rounded matmul operands
    # (bias stays f32 in both, as in the kernel).
    h_m, c_m = convlstm_cell_ref_bf16_operands(x, h, c, weight, bias, K)
    assert jnp.allclose(h_next, h_m, atol=1e-2, rtol=1e-2)
    assert jnp.allclose(c_next, c_m, atol=1e-2, rtol=1e-2)

    # Fidelity vs the full-f32 PyTorch-equivalent reference (tolerance covers
    # the bf16 MXU operands).
    h_ref, c_ref = convlstm_cell_ref(x, h, c, weight, bias, K)
    assert jnp.allclose(h_next, h_ref, atol=3e-2, rtol=3e-2)
    assert jnp.allclose(c_next, c_ref, atol=3e-2, rtol=3e-2)

    print("KERNEL_OK")
</pallas_src>

<mosaic_0001>
module attributes {stable_mosaic.version = 11 : i64} {
  func.func @_convlstm_kernel(%arg0: i32, %arg1: memref<1x48x422xbf16, #tpu.memory_space<vmem>>, %arg2: memref<9x128x48xbf16, #tpu.memory_space<vmem>>, %arg3: memref<128x1xf32, #tpu.memory_space<vmem>>, %arg4: memref<32x384xf32, #tpu.memory_space<vmem>>, %arg5: memref<32x384xf32, #tpu.memory_space<vmem>>, %arg6: memref<32x384xf32, #tpu.memory_space<vmem>>) attributes {dimension_semantics = [#tpu.dimension_semantics<parallel>], iteration_bounds = array<i64: 2>, scalar_prefetch = 0 : i64, scratch_operands = 0 : i64, tpu.core_type = #tpu.core_type<tc>, window_params = [{transform_indices = @transform_0, window_bounds = array<i64: 1, 48, 422>}, {pipeline_mode = #tpu.pipeline_mode<synchronous>, transform_indices = @transform_1, window_bounds = array<i64: 9, 128, 48>}, {pipeline_mode = #tpu.pipeline_mode<synchronous>, transform_indices = @transform_2, window_bounds = array<i64: 128, 1>}, {transform_indices = @transform_3, window_bounds = array<i64: 32, 384>}, {transform_indices = @transform_4, window_bounds = array<i64: 32, 384>}, {transform_indices = @transform_5, window_bounds = array<i64: 32, 384>}]} {
    %c0 = arith.constant 0 : index
    %c0_0 = arith.constant 0 : index
    %c0_1 = arith.constant 0 : index
    %0 = vector.load %arg1[%c0, %c0_0, %c0_1] : memref<1x48x422xbf16, #tpu.memory_space<vmem>>, vector<1x48x422xbf16>
    %1 = vector.shape_cast %0 : vector<1x48x422xbf16> to vector<48x422xbf16>
    %c0_2 = arith.constant 0 : index
    %c0_3 = arith.constant 0 : index
    %c0_4 = arith.constant 0 : index
    %2 = vector.load %arg2[%c0_2, %c0_3, %c0_4] : memref<9x128x48xbf16, #tpu.memory_space<vmem>>, vector<1x128x48xbf16>
    %3 = vector.shape_cast %2 : vector<1x128x48xbf16> to vector<128x48xbf16>
    %4 = vector.extract_strided_slice %1 {offsets = [0, 0], sizes = [48, 384], strides = [1, 1]} : vector<48x422xbf16> to vector<48x384xbf16>
    %cst = arith.constant dense<0.000000e+00> : vector<128x384xf32>
    %5 = tpu.matmul %3, %4, %cst {dimension_numbers = #tpu.dot_dimension_numbers<[1], [0], [0], [1], [0, 0, 1, 1], [], []>} : vector<128x48xbf16>, vector<48x384xbf16>, vector<128x384xf32> -> vector<128x384xf32>
    %c1 = arith.constant 1 : index
    %c0_5 = arith.constant 0 : index
    %c0_6 = arith.constant 0 : index
    %6 = vector.load %arg2[%c1, %c0_5, %c0_6] : memref<9x128x48xbf16, #tpu.memory_space<vmem>>, vector<1x128x48xbf16>
    %7 = vector.shape_cast %6 : vector<1x128x48xbf16> to vector<128x48xbf16>
    %8 = vector.extract_strided_slice %1 {offsets = [0, 1], sizes = [48, 384], strides = [1, 1]} : vector<48x422xbf16> to vector<48x384xbf16>
    %cst_7 = arith.constant dense<0.000000e+00> : vector<128x384xf32>
    %9 = tpu.matmul %7, %8, %cst_7 {dimension_numbers = #tpu.dot_dimension_numbers<[1], [0], [0], [1], [0, 0, 1, 1], [], []>} : vector<128x48xbf16>, vector<48x384xbf16>, vector<128x384xf32> -> vector<128x384xf32>
    %10 = arith.addf %5, %9 : vector<128x384xf32>
    %c2 = arith.constant 2 : index
    %c0_8 = arith.constant 0 : index
    %c0_9 = arith.constant 0 : index
    %11 = vector.load %arg2[%c2, %c0_8, %c0_9] : memref<9x128x48xbf16, #tpu.memory_space<vmem>>, vector<1x128x48xbf16>
    %12 = vector.shape_cast %11 : vector<1x128x48xbf16> to vector<128x48xbf16>
    %13 = vector.extract_strided_slice %1 {offsets = [0, 2], sizes = [48, 384], strides = [1, 1]} : vector<48x422xbf16> to vector<48x384xbf16>
    %cst_10 = arith.constant dense<0.000000e+00> : vector<128x384xf32>
    %14 = tpu.matmul %12, %13, %cst_10 {dimension_numbers = #tpu.dot_dimension_numbers<[1], [0], [0], [1], [0, 0, 1, 1], [], []>} : vector<128x48xbf16>, vector<48x384xbf16>, vector<128x384xf32> -> vector<128x384xf32>
    %15 = arith.addf %10, %14 : vector<128x384xf32>
    %c3 = arith.constant 3 : index
    %c0_11 = arith.constant 0 : index
    %c0_12 = arith.constant 0 : index
    %16 = vector.load %arg2[%c3, %c0_11, %c0_12] : memref<9x128x48xbf16, #tpu.memory_space<vmem>>, vector<1x128x48xbf16>
    %17 = vector.shape_cast %16 : vector<1x128x48xbf16> to vector<128x48xbf16>
    %18 = vector.extract_strided_slice %1 {offsets = [0, 18], sizes = [48, 384], strides = [1, 1]} : vector<48x422xbf16> to vector<48x384xbf16>
    %cst_13 = arith.constant dense<0.000000e+00> : vector<128x384xf32>
    %19 = tpu.matmul %17, %18, %cst_13 {dimension_numbers = #tpu.dot_dimension_numbers<[1], [0], [0], [1], [0, 0, 1, 1], [], []>} : vector<128x48xbf16>, vector<48x384xbf16>, vector<128x384xf32> -> vector<128x384xf32>
    %20 = arith.addf %15, %19 : vector<128x384xf32>
    %c4 = arith.constant 4 : index
    %c0_14 = arith.constant 0 : index
    %c0_15 = arith.constant 0 : index
    %21 = vector.load %arg2[%c4, %c0_14, %c0_15] : memref<9x128x48xbf16, #tpu.memory_space<vmem>>, vector<1x128x48xbf16>
    %22 = vector.shape_cast %21 : vector<1x128x48xbf16> to vector<128x48xbf16>
    %23 = vector.extract_strided_slice %1 {offsets = [0, 19], sizes = [48, 384], strides = [1, 1]} : vector<48x422xbf16> to vector<48x384xbf16>
    %cst_16 = arith.constant dense<0.000000e+00> : vector<128x384xf32>
    %24 = tpu.matmul %22, %23, %cst_16 {dimension_numbers = #tpu.dot_dimension_numbers<[1], [0], [0], [1], [0, 0, 1, 1], [], []>} : vector<128x48xbf16>, vector<48x384xbf16>, vector<128x384xf32> -> vector<128x384xf32>
    %25 = arith.addf %20, %24 : vector<128x384xf32>
    %c5 = arith.constant 5 : index
    %c0_17 = arith.constant 0 : index
    %c0_18 = arith.constant 0 : index
    %26 = vector.load %arg2[%c5, %c0_17, %c0_18] : memref<9x128x48xbf16, #tpu.memory_space<vmem>>, vector<1x128x48xbf16>
    %27 = vector.shape_cast %26 : vector<1x128x48xbf16> to vector<128x48xbf16>
    %28 = vector.extract_strided_slice %1 {offsets = [0, 20], sizes = [48, 384], strides = [1, 1]} : vector<48x422xbf16> to vector<48x384xbf16>
    %cst_19 = arith.constant dense<0.000000e+00> : vector<128x384xf32>
    %29 = tpu.matmul %27, %28, %cst_19 {dimension_numbers = #tpu.dot_dimension_numbers<[1], [0], [0], [1], [0, 0, 1, 1], [], []>} : vector<128x48xbf16>, vector<48x384xbf16>, vector<128x384xf32> -> vector<128x384xf32>
    %30 = arith.addf %25, %29 : vector<128x384xf32>
    %c6 = arith.constant 6 : index
    %c0_20 = arith.constant 0 : index
    %c0_21 = arith.constant 0 : index
    %31 = vector.load %arg2[%c6, %c0_20, %c0_21] : memref<9x128x48xbf16, #tpu.memory_space<vmem>>, vector<1x128x48xbf16>
    %32 = vector.shape_cast %31 : vector<1x128x48xbf16> to vector<128x48xbf16>
    %33 = vector.extract_strided_slice %1 {offsets = [0, 36], sizes = [48, 384], strides = [1, 1]} : vector<48x422xbf16> to vector<48x384xbf16>
    %cst_22 = arith.constant dense<0.000000e+00> : vector<128x384xf32>
    %34 = tpu.matmul %32, %33, %cst_22 {dimension_numbers = #tpu.dot_dimension_numbers<[1], [0], [0], [1], [0, 0, 1, 1], [], []>} : vector<128x48xbf16>, vector<48x384xbf16>, vector<128x384xf32> -> vector<128x384xf32>
    %35 = arith.addf %30, %34 : vector<128x384xf32>
    %c7 = arith.constant 7 : index
    %c0_23 = arith.constant 0 : index
    %c0_24 = arith.constant 0 : index
    %36 = vector.load %arg2[%c7, %c0_23, %c0_24] : memref<9x128x48xbf16, #tpu.memory_space<vmem>>, vector<1x128x48xbf16>
    %37 = vector.shape_cast %36 : vector<1x128x48xbf16> to vector<128x48xbf16>
    %38 = vector.extract_strided_slice %1 {offsets = [0, 37], sizes = [48, 384], strides = [1, 1]} : vector<48x422xbf16> to vector<48x384xbf16>
    %cst_25 = arith.constant dense<0.000000e+00> : vector<128x384xf32>
    %39 = tpu.matmul %37, %38, %cst_25 {dimension_numbers = #tpu.dot_dimension_numbers<[1], [0], [0], [1], [0, 0, 1, 1], [], []>} : vector<128x48xbf16>, vector<48x384xbf16>, vector<128x384xf32> -> vector<128x384xf32>
    %40 = arith.addf %35, %39 : vector<128x384xf32>
    %c8 = arith.constant 8 : index
    %c0_26 = arith.constant 0 : index
    %c0_27 = arith.constant 0 : index
    %41 = vector.load %arg2[%c8, %c0_26, %c0_27] : memref<9x128x48xbf16, #tpu.memory_space<vmem>>, vector<1x128x48xbf16>
    %42 = vector.shape_cast %41 : vector<1x128x48xbf16> to vector<128x48xbf16>
    %43 = vector.extract_strided_slice %1 {offsets = [0, 38], sizes = [48, 384], strides = [1, 1]} : vector<48x422xbf16> to vector<48x384xbf16>
    %cst_28 = arith.constant dense<0.000000e+00> : vector<128x384xf32>
    %44 = tpu.matmul %42, %43, %cst_28 {dimension_numbers = #tpu.dot_dimension_numbers<[1], [0], [0], [1], [0, 0, 1, 1], [], []>} : vector<128x48xbf16>, vector<48x384xbf16>, vector<128x384xf32> -> vector<128x384xf32>
    %45 = arith.addf %40, %44 : vector<128x384xf32>
    %c0_29 = arith.constant 0 : index
    %c0_30 = arith.constant 0 : index
    %46 = vector.load %arg3[%c0_29, %c0_30] : memref<128x1xf32, #tpu.memory_space<vmem>>, vector<128x1xf32>
    %47 = vector.broadcast %46 : vector<128x1xf32> to vector<128x384xf32>
    %48 = arith.addf %45, %47 : vector<128x384xf32>
    %49 = vector.extract_strided_slice %48 {offsets = [0, 0], sizes = [32, 384], strides = [1, 1]} : vector<128x384xf32> to vector<32x384xf32>
    %50 = arith.negf %49 : vector<32x384xf32>
    %51 = math.exp %50 : vector<32x384xf32>
    %cst_31 = arith.constant 1.000000e+00 : f32
    %52 = vector.broadcast %cst_31 : f32 to vector<32x384xf32>
    %53 = arith.addf %52, %51 : vector<32x384xf32>
    %54 = arith.divf %52, %53 : vector<32x384xf32>
    %55 = vector.extract_strided_slice %48 {offsets = [32, 0], sizes = [32, 384], strides = [1, 1]} : vector<128x384xf32> to vector<32x384xf32>
    %56 = arith.negf %55 : vector<32x384xf32>
    %57 = math.exp %56 : vector<32x384xf32>
    %cst_32 = arith.constant 1.000000e+00 : f32
    %58 = vector.broadcast %cst_32 : f32 to vector<32x384xf32>
    %59 = arith.addf %58, %57 : vector<32x384xf32>
    %60 = arith.divf %58, %59 : vector<32x384xf32>
    %61 = vector.extract_strided_slice %48 {offsets = [64, 0], sizes = [32, 384], strides = [1, 1]} : vector<128x384xf32> to vector<32x384xf32>
    %62 = arith.negf %61 : vector<32x384xf32>
    %63 = math.exp %62 : vector<32x384xf32>
    %cst_33 = arith.constant 1.000000e+00 : f32
    %64 = vector.broadcast %cst_33 : f32 to vector<32x384xf32>
    %65 = arith.addf %64, %63 : vector<32x384xf32>
    %66 = arith.divf %64, %65 : vector<32x384xf32>
    %67 = vector.extract_strided_slice %48 {offsets = [96, 0], sizes = [32, 384], strides = [1, 1]} : vector<128x384xf32> to vector<32x384xf32>
    %68 = math.tanh %67 : vector<32x384xf32>
    %c0_34 = arith.constant 0 : index
    %c0_35 = arith.constant 0 : index
    %69 = vector.load %arg4[%c0_34, %c0_35] : memref<32x384xf32, #tpu.memory_space<vmem>>, vector<32x384xf32>
    %70 = arith.mulf %60, %69 : vector<32x384xf32>
    %71 = arith.mulf %54, %68 : vector<32x384xf32>
    %72 = arith.addf %70, %71 : vector<32x384xf32>
    %73 = math.tanh %72 : vector<32x384xf32>
    %74 = arith.mulf %66, %73 : vector<32x384xf32>
    %c0_36 = arith.constant 0 : index
    %c0_37 = arith.constant 0 : index
    %75 = vector.load %arg5[%c0_36, %c0_37] : memref<32x384xf32, #tpu.memory_space<vmem>>, vector<32x384xf32>
    tpu.vector_store %arg5[%c0_36, %c0_37], %74 {strides = array<i32>} : memref<32x384xf32, #tpu.memory_space<vmem>>, vector<32x384xf32>,
    %c0_38 = arith.constant 0 : index
    %c0_39 = arith.constant 0 : index
    %76 = vector.load %arg6[%c0_38, %c0_39] : memref<32x384xf32, #tpu.memory_space<vmem>>, vector<32x384xf32>
    tpu.vector_store %arg6[%c0_38, %c0_39], %72 {strides = array<i32>} : memref<32x384xf32, #tpu.memory_space<vmem>>, vector<32x384xf32>,
    return
  }
  func.func @transform_0(%arg0: i32) -> (i32, i32, i32) {
    %c0_i32 = arith.constant 0 : i32
    %c0_i32_0 = arith.constant 0 : i32
    %c0_i32_1 = arith.constant 0 : i32
    return %arg0, %c0_i32, %c0_i32_0 : i32, i32, i32
  }
  func.func @transform_1(%arg0: i32) -> (i32, i32, i32) {
    %c0_i32 = arith.constant 0 : i32
    %c0_i32_0 = arith.constant 0 : i32
    %c0_i32_1 = arith.constant 0 : i32
    %c0_i32_2 = arith.constant 0 : i32
    return %c0_i32, %c0_i32_0, %c0_i32_1 : i32, i32, i32
  }
  func.func @transform_2(%arg0: i32) -> (i32, i32) {
    %c0_i32 = arith.constant 0 : i32
    %c0_i32_0 = arith.constant 0 : i32
    %c0_i32_1 = arith.constant 0 : i32
    return %c0_i32, %c0_i32_0 : i32, i32
  }
  func.func @transform_3(%arg0: i32) -> (i32, i32) {
    %c0_i32 = arith.constant 0 : i32
    %c0_i32_0 = arith.constant 0 : i32
    return %c0_i32, %arg0 : i32, i32
  }
  func.func @transform_4(%arg0: i32) -> (i32, i32) {
    %c0_i32 = arith.constant 0 : i32
    %c0_i32_0 = arith.constant 0 : i32
    return %c0_i32, %arg0 : i32, i32
  }
  func.func @transform_5(%arg0: i32) -> (i32, i32) {
    %c0_i32 = arith.constant 0 : i32
    %c0_i32_0 = arith.constant 0 : i32
    return %c0_i32, %arg0 : i32, i32
  }
}

</mosaic_0001>

<llo_original>
// kernel: tpu_custom_call.1
$region0: #{tpu_custom_call.1}
  #allocation0 [shape = 'u32[]', space=smem, size = 0x4, offset = 0x4, fixed_abs, tag = 'smem constant byte address 0x4 - core index']
  #allocation1 [shape = 'u32[144,128]{1,0:T(1,128)}', space=vmem, size = 0x12000, scoped, tag = 'internal scratch']
  %s0 = inlined_call_operand.vmem [shape: bf16[2,48,422], index: 0, kind: input, shape index: {}]
  %s1 = inlined_call_operand.vmem [shape: bf16[9,128,48], index: 1, kind: input, shape index: {}]
  %s2 = inlined_call_operand.vmem [shape: f32[128,1], index: 2, kind: input, shape index: {}]
  %s3 = inlined_call_operand.vmem [shape: f32[32,768], index: 3, kind: input, shape index: {}]
  %s4 = inlined_call_operand.hbm [shape: f32[32,768], index: 4, kind: output, shape index: {0}]
  %s5 = inlined_call_operand.hbm [shape: f32[32,768], index: 5, kind: output, shape index: {1}]
  %6 = xla_tuple %s4, %s5
  %s7 = sld [smem:[#allocation0]]
  $region80: #{tpu_custom_call.1} parent=0
    _
  %s9 = ssub.s32 1, %s7
  %s10 = scalar_select 0, %s9, %s7
  $region1: #{tpu_custom_call.1} parent=0
    #allocation2 [shape = 'u8[98304]{0}', space=vmem, size = 0x18000, scoped, tag = 'input window, operand 3']
    #allocation3 [shape = 'u8[98304]{0}', space=vmem, size = 0x18000, scoped, tag = 'output window, operand 0']
    #allocation4 [shape = 's32[2]{0}', space=sflag, size = 0x8, scoped, tag = 'scoped memory for tpu_custom_call.1']
    #allocation5 [shape = 'u8[98304]{0}', space=vmem, size = 0x18000, scoped, tag = 'output window, operand 1']
    #allocation6 [shape = 's32[2]{0}', space=sflag, size = 0x8, scoped, tag = 'scoped memory for tpu_custom_call.1']
    %11 = vsyncpa [#allocation4], 0
    %s12 = scalar_lea.sflag [#allocation4], 1
    %13 = vsyncpa %s12, 0
    %14 = vsyncpa [#allocation6], 0
    %s15 = scalar_lea.sflag [#allocation6], 1
    %16 = vsyncpa %s15, 0
    loop: start=0, step=1, limit=4
    $region2: #{tpu_custom_call.1} parent=1 // loop_pre_header
      _
    $region3: #{tpu_custom_call.1} parent=1 // loop_header
      %s18 = sphi 0, %s22
      %p19 = scmp.ge.s32.totalorder %s18, 4
      %s28 = sphi 0, %s30
      %s31 = sphi 0, %s28
      %s32 = sphi 0, %s31
      %s48 = sphi 0, %s32
      %s52 = sphi 0, %s52
      %s54 = sphi 0, %s52
      %s55 = sphi 0, %s54
      %s69 = sphi 0, %s55
      %s73 = sphi 0, %s73
      %s75 = sphi 0, %s73
      %s76 = sphi 0, %s75
      %s90 = sphi 0, %s76
      %s96 = sphi 0, %s98
      %s99 = sphi 0, %s96
      %s100 = sphi 0, %s99
      %s116 = sphi 0, %s100
      %s122 = sphi 0, %s124
      %s125 = sphi 0, %s122
      %s126 = sphi 0, %s125
      %s142 = sphi 0, %s126
      %s148 = sphi 0, %s150
      %s151 = sphi 0, %s148
      %s152 = sphi 0, %s151
      %s168 = sphi 0, %s152
    $region4: #{tpu_custom_call.1} parent=1 // loop_header_branch
      %21 = sbr.rel (%p19) target = $region8
    $region5: #{tpu_custom_call.1} parent=1 // loop_body
      %s23 = ssub.s32 %s18, 1
      %s24 = ssub.s32 %s18, 2
      %s25 = sadd.s32 %s18, 1
      %s26 = ssub.s32 %s18, %s25
      %p27 = scmp.eq.s32.totalorder %s26, 0
      %s29 = sadd.s32 %s28, 1
      %s30 = scalar_select %p27, %s28, %s29
      %p33 = pneg %p27
      %p34 = scmp.eq.s32.totalorder %s18, 1
      %p35 = por %p33, %p34
      %p36 = scmp.ne.s32.totalorder %s28, %s31
      %p37 = scmp.eq.s32.totalorder %s18, 0
      %p38 = por %p36, %p37
      %p39 = scmp.ne.s32.totalorder %s28, %s31
      %p40 = scmp.eq.s32.totalorder %s23, 1
      %p41 = por %p39, %p40
      %p42 = scmp.ne.s32.totalorder %s31, %s32
      %p43 = scmp.eq.s32.totalorder %s23, 0
      %p44 = por %p42, %p43
      %p45 = scmp.ne.s32.totalorder %s31, %s32
      %p46 = scmp.eq.s32.totalorder %s24, 1
      %p47 = por %p45, %p46
      %p49 = scmp.ne.s32.totalorder %s32, %s48
      %p50 = scmp.eq.s32.totalorder %s24, 0
      %p51 = por %p49, %p50
      %s53 = sadd.s32 %s52, 1
      %p56 = scmp.eq.s32.totalorder %s18, 1
      %p57 = scmp.ne.s32.totalorder %s52, %s54
      %p58 = scmp.eq.s32.totalorder %s18, 0
      %p59 = por %p57, %p58
      %p60 = scmp.ne.s32.totalorder %s52, %s54
      %p61 = scmp.eq.s32.totalorder %s23, 1
      %p62 = por %p60, %p61
      %p63 = scmp.ne.s32.totalorder %s54, %s55
      %p64 = scmp.eq.s32.totalorder %s23, 0
      %p65 = por %p63, %p64
      %p66 = scmp.ne.s32.totalorder %s54, %s55
      %p67 = scmp.eq.s32.totalorder %s24, 1
      %p68 = por %p66, %p67
      %p70 = scmp.ne.s32.totalorder %s55, %s69
      %p71 = scmp.eq.s32.totalorder %s24, 0
      %p72 = por %p70, %p71
      %s74 = sadd.s32 %s73, 1
      %p77 = scmp.eq.s32.totalorder %s18, 1
      %p78 = scmp.ne.s32.totalorder %s73, %s75
      %p79 = scmp.eq.s32.totalorder %s18, 0
      %p80 = por %p78, %p79
      %p81 = scmp.ne.s32.totalorder %s73, %s75
      %p82 = scmp.eq.s32.totalorder %s23, 1
      %p83 = por %p81, %p82
      %p84 = scmp.ne.s32.totalorder %s75, %s76
      %p85 = scmp.eq.s32.totalorder %s23, 0
      %p86 = por %p84, %p85
      %p87 = scmp.ne.s32.totalorder %s75, %s76
      %p88 = scmp.eq.s32.totalorder %s24, 1
      %p89 = por %p87, %p88
      %p91 = scmp.ne.s32.totalorder %s76, %s90
      %p92 = scmp.eq.s32.totalorder %s24, 0
      %p93 = por %p91, %p92
      %s94 = ssub.s32 %s18, %s25
      %p95 = scmp.eq.s32.totalorder %s94, 0
      %s97 = sadd.s32 %s96, 1
      %s98 = scalar_select %p95, %s96, %s97
      %p101 = pneg %p95
      %p102 = scmp.eq.s32.totalorder %s18, 1
      %p103 = por %p101, %p102
      %p104 = scmp.ne.s32.totalorder %s96, %s99
      %p105 = scmp.eq.s32.totalorder %s18, 0
      %p106 = por %p104, %p105
      %p107 = scmp.ne.s32.totalorder %s96, %s99
      %p108 = scmp.eq.s32.totalorder %s23, 1
      %p109 = por %p107, %p108
      %p110 = scmp.ne.s32.totalorder %s99, %s100
      %p111 = scmp.eq.s32.totalorder %s23, 0
      %p112 = por %p110, %p111
      %p113 = scmp.ne.s32.totalorder %s99, %s100
      %p114 = scmp.eq.s32.totalorder %s24, 1
      %p115 = por %p113, %p114
      %p117 = scmp.ne.s32.totalorder %s100, %s116
      %p118 = scmp.eq.s32.totalorder %s24, 0
      %p119 = por %p117, %p118
      %s120 = ssub.s32 %s18, %s25
      %p121 = scmp.eq.s32.totalorder %s120, 0
      %s123 = sadd.s32 %s122, 1
      %s124 = scalar_select %p121, %s122, %s123
      %p127 = pneg %p121
      %p128 = scmp.eq.s32.totalorder %s18, 1
      %p129 = por %p127, %p128
      %p130 = scmp.ne.s32.totalorder %s122, %s125
      %p131 = scmp.eq.s32.totalorder %s18, 0
      %p132 = por %p130, %p131
      %p133 = scmp.ne.s32.totalorder %s122, %s125
      %p134 = scmp.eq.s32.totalorder %s23, 1
      %p135 = por %p133, %p134
      %p136 = scmp.ne.s32.totalorder %s125, %s126
      %p137 = scmp.eq.s32.totalorder %s23, 0
      %p138 = por %p136, %p137
      %p139 = scmp.ne.s32.totalorder %s125, %s126
      %p140 = scmp.eq.s32.totalorder %s24, 1
      %p141 = por %p139, %p140
      %p143 = scmp.ne.s32.totalorder %s126, %s142
      %p144 = scmp.eq.s32.totalorder %s24, 0
      %p145 = por %p143, %p144
      %s146 = ssub.s32 %s18, %s25
      %p147 = scmp.eq.s32.totalorder %s146, 0
      %s149 = sadd.s32 %s148, 1
      %s150 = scalar_select %p147, %s148, %s149
      %p153 = pneg %p147
      %p154 = scmp.eq.s32.totalorder %s18, 1
      %p155 = por %p153, %p154
      %p156 = scmp.ne.s32.totalorder %s148, %s151
      %p157 = scmp.eq.s32.totalorder %s18, 0
      %p158 = por %p156, %p157
      %p159 = scmp.ne.s32.totalorder %s148, %s151
      %p160 = scmp.eq.s32.totalorder %s23, 1
      %p161 = por %p159, %p160
      %p162 = scmp.ne.s32.totalorder %s151, %s152
      %p163 = scmp.eq.s32.totalorder %s23, 0
      %p164 = por %p162, %p163
      %p165 = scmp.ne.s32.totalorder %s151, %s152
      %p166 = scmp.eq.s32.totalorder %s24, 1
      %p167 = por %p165, %p166
      %p169 = scmp.ne.s32.totalorder %s152, %s168
      %p170 = scmp.eq.s32.totalorder %s24, 0
      %p171 = por %p169, %p170
      %p172 = scmp.le.s32.totalorder 1, %s18
      %p173 = scmp.lt.s32.totalorder %s18, 3
      %p174 = pnand %p172, %p173
      %p175 = pneg %p174
      // Predicated region
      $region9: #{tpu_custom_call.1} parent=5 // pred_check
        _
      $region10: #{tpu_custom_call.1} parent=5 // pred_check_branch
        %177 = sbr.rel (%p174) target = $region12
      $region11: #{tpu_custom_call.1} parent=5 // pred_region
        %s178 = ssub.s32 %s18, 1
        // Predicated region
        $region13: #{tpu_custom_call.1} parent=11 // pred_check
          %p179 = pneg %p65
        $region14: #{tpu_custom_call.1} parent=11 // pred_check_branch
          %181 = sbr.rel (%p179) target = $region16
        $region15: #{tpu_custom_call.1} parent=11 // pred_region
          _
        $region16: #{tpu_custom_call.1} parent=11 // pred_fallthru
          _
        // Predicated region
        $region17: #{tpu_custom_call.1} parent=11 // pred_check
          %p182 = pneg %p86
        $region18: #{tpu_custom_call.1} parent=11 // pred_check_branch
          %184 = sbr.rel (%p182) target = $region20
        $region19: #{tpu_custom_call.1} parent=11 // pred_region
          _
        $region20: #{tpu_custom_call.1} parent=11 // pred_fallthru
          _
      $region12: #{tpu_custom_call.1} parent=5 // pred_fallthru
        _
      %p185 = scmp.lt.s32.totalorder %s18, 2
      // Predicated region
      $region21: #{tpu_custom_call.1} parent=5 // pred_check
        %p186 = pneg %p185
      $region22: #{tpu_custom_call.1} parent=5 // pred_check_branch
        %188 = sbr.rel (%p186) target = $region24
      $region23: #{tpu_custom_call.1} parent=5 // pred_region
        // Predicated region
        $region25: #{tpu_custom_call.1} parent=23 // pred_check
          %p189 = pneg %p38
        $region26: #{tpu_custom_call.1} parent=23 // pred_check_branch
          %191 = sbr.rel (%p189) target = $region28
        $region27: #{tpu_custom_call.1} parent=23 // pred_region
          %p192 = scmp.lt.s32.totalorder %s18, 1
          %s193 = scalar_select %p192, %s18, 1
          %s194 = smul.addr %s193, 24
          %s195 = smul.addr %s194, 4
          %s196 = scalar_lea.vmem %s0, %s195
        $region28: #{tpu_custom_call.1} parent=23 // pred_fallthru
          _
        // Predicated region
        $region29: #{tpu_custom_call.1} parent=23 // pred_check
          %p197 = pneg %p106
        $region30: #{tpu_custom_call.1} parent=23 // pred_check_branch
          %199 = sbr.rel (%p197) target = $region32
        $region31: #{tpu_custom_call.1} parent=23 // pred_region
          %s200 = sand.u32 %s96, 1
          %s201 = sand.u32 %s96, 1
          %s202 = smul.addr %s201, 96
          %s203 = scalar_lea.vmem [#allocation2], %s202
          %s204 = smul.u32 3, %s18
          %s205 = smul.addr %s204, 8
          %s206 = scalar_lea.vmem %s3, %s205
          // Predicated region
          $region33: #{tpu_custom_call.1} parent=31 // pred_check
            _
          $region34: #{tpu_custom_call.1} parent=31 // pred_check_branch
            %208 = sbr.rel (0) target = $region36
          $region35: #{tpu_custom_call.1} parent=31 // pred_region
            // Predicated region
            $region37: #{tpu_custom_call.1} parent=35 // pred_check
              _
            $region38: #{tpu_custom_call.1} parent=35 // pred_check_branch
              %210 = sbr.rel (0) target = $region40
            $region39: #{tpu_custom_call.1} parent=35 // pred_region
              loop: start=0, step=1, limit=1
              $region41: #{tpu_custom_call.1} parent=39 // loop_pre_header
                _
              $region42: #{tpu_custom_call.1} parent=39 // loop_header
                %s212 = sphi 0, %s216
                %p213 = scmp.ge.s32.totalorder %s212, 1
                %s217 = sphi %s206, %s206
                %s218 = sphi %s203, %s203
              $region43: #{tpu_custom_call.1} parent=39 // loop_header_branch
                %215 = sbr.rel (%p213) target = $region47
              $region44: #{tpu_custom_call.1} parent=39 // loop_body
                %v219 = vld [vmem:[%s217] sm:$0xff]
                %220 = vst [vmem:[%s218] sm:$0xff] %v219
                %v221 = vld [vmem:[%s217 + $0x8] sm:$0xff]
                %222 = vst [vmem:[%s218 + $0x8] sm:$0xff] %v221
                %v223 = vld [vmem:[%s217 + $0x10] sm:$0xff]
                %224 = vst [vmem:[%s218 + $0x10] sm:$0xff] %v223
                %v225 = vld [vmem:[%s217 + $0x30] sm:$0xff]
                %226 = vst [vmem:[%s218 + $0x18] sm:$0xff] %v225
                %v227 = vld [vmem:[%s217 + $0x38] sm:$0xff]
                %228 = vst [vmem:[%s218 + $0x20] sm:$0xff] %v227
                %v229 = vld [vmem:[%s217 + $0x40] sm:$0xff]
                %230 = vst [vmem:[%s218 + $0x28] sm:$0xff] %v229
                %v231 = vld [vmem:[%s217 + $0x60] sm:$0xff]
                %232 = vst [vmem:[%s218 + $0x30] sm:$0xff] %v231
                %v233 = vld [vmem:[%s217 + $0x68] sm:$0xff]
                %234 = vst [vmem:[%s218 + $0x38] sm:$0xff] %v233
                %v235 = vld [vmem:[%s217 + $0x70] sm:$0xff]
                %236 = vst [vmem:[%s218 + $0x40] sm:$0xff] %v235
                %v237 = vld [vmem:[%s217 + $0x90] sm:$0xff]
                %238 = vst [vmem:[%s218 + $0x48] sm:$0xff] %v237
                %v239 = vld [vmem:[%s217 + $0x98] sm:$0xff]
                %240 = vst [vmem:[%s218 + $0x50] sm:$0xff] %v239
                %v241 = vld [vmem:[%s217 + $0xa0] sm:$0xff]
                %242 = vst [vmem:[%s218 + $0x58] sm:$0xff] %v241
              $region45: #{tpu_custom_call.1} parent=39 // loop_footer
                %s216 = sadd.s32 1, %s212
              $region46: #{tpu_custom_call.1} parent=39 // loop_footer_branch
                %211 = sbr.rel target = $region42
              $region47: #{tpu_custom_call.1} parent=39 // loop_exit
                _
            $region40: #{tpu_custom_call.1} parent=35 // pred_fallthru
              _
            // Predicated region
            $region48: #{tpu_custom_call.1} parent=35 // pred_check
              _
            $region49: #{tpu_custom_call.1} parent=35 // pred_check_branch
              %244 = sbr.rel target = $region51
            $region50: #{tpu_custom_call.1} parent=35 // pred_region
              _
            $region51: #{tpu_custom_call.1} parent=35 // pred_fallthru
              _
          $region36: #{tpu_custom_call.1} parent=31 // pred_fallthru
            _
          %245 = vnop
        $region32: #{tpu_custom_call.1} parent=23 // pred_fallthru
          _
      $region24: #{tpu_custom_call.1} parent=5 // pred_fallthru
        _
      %p246 = scmp.le.s32.totalorder 1, %s18
      %p247 = scmp.lt.s32.totalorder %s18, 3
      %p248 = pnand %p246, %p247
      %p249 = pneg %p248
      // Predicated region
      $region52: #{tpu_custom_call.1} parent=5 // pred_check
        _
      $region53: #{tpu_custom_call.1} parent=5 // pred_check_branch
        %251 = sbr.rel (%p248) target = $region55
      $region54: #{tpu_custom_call.1} parent=5 // pred_region
        %s252 = ssub.s32 %s18, 1
        %s253 = sand.u32 %s99, 1
        %s254 = sand.u32 %s99, 1
        %s255 = smul.addr %s254, 96
        %s256 = scalar_lea.vmem [#allocation2], %s255
        // Predicated region
        $region56: #{tpu_custom_call.1} parent=54 // pred_check
          %p257 = pneg %p112
        $region57: #{tpu_custom_call.1} parent=54 // pred_check_branch
          %259 = sbr.rel (%p257) target = $region59
        $region58: #{tpu_custom_call.1} parent=54 // pred_region
          _
        $region59: #{tpu_custom_call.1} parent=54 // pred_fallthru
          _
        %p260 = scmp.lt.s32.totalorder %s23, 1
        %s261 = scalar_select %p260, %s23, 1
        %s262 = smul.addr %s261, 24
        %s263 = smul.addr %s262, 4
        %s264 = scalar_lea.vmem %s0, %s263
        %p265 = pneg %p44
        %p266 = pneg %p41
        %p267 = pneg %p65
        %p268 = pneg %p62
        %p269 = pneg %p86
        %p270 = pneg %p83
        %s271 = sand.u32 %s99, 1
        %s272 = sand.u32 %s99, 1
        %s273 = smul.addr %s272, 96
        %s274 = scalar_lea.vmem [#allocation2], %s273
        %p275 = pneg %p112
        %p276 = pneg %p109
        %p277 = pneg %p138
        %p278 = pneg %p135
        %s279 = sand.u32 %s125, 1
        %s280 = scalar_lea.sflag [#allocation4], %s279
        %s281 = sand.u32 %s125, 1
        %s282 = smul.addr %s281, 96
        %s283 = scalar_lea.vmem [#allocation3], %s282
        %p284 = pneg %p164
        %p285 = pneg %p161
        %s286 = sand.u32 %s151, 1
        %s287 = scalar_lea.sflag [#allocation6], %s286
        %s288 = sand.u32 %s151, 1
        %s289 = smul.addr %s288, 96
        %s290 = scalar_lea.vmem [#allocation5], %s289
        %p291 = scmp.lt.s32.totalorder %s23, 1
        %s292 = scalar_select %p291, %s23, 1
        %s293 = smul.addr %s292, 24
        %s294 = smul.addr %s293, 4
        %s295 = scalar_lea.vmem %s0, %s294
        %s296 = smul.u32 3, %s23
        %s297 = smul.u32 3, %s23
        %s298 = smul.u32 3, %s23
        %v300 = vld [vmem:[%s295] sm:$0xff]
        %v301 = vld [vmem:[%s295 + $0x8] sm:$0xff]
        %v302 = vld [vmem:[%s295 + $0x10] sm:$0xff]
        %v303 = vld [vmem:[%s295 + $0x18] sm:$0xff]
        %v304 = vld [vmem:[%s295 + $0x20] sm:$0xff]
        %v305 = vld [vmem:[%s295 + $0x28] sm:$0xff]
        %v306 = vld [vmem:[%s295 + $0x30] sm:$0xff]
        %v307 = vld [vmem:[%s295 + $0x38] sm:$0xff]
        %v308 = vld [vmem:[%s295 + $0x40] sm:$0xff]
        %v309 = vld [vmem:[%s295 + $0x48] sm:$0xff]
        %v310 = vld [vmem:[%s295 + $0x50] sm:$0xff]
        %v311 = vld [vmem:[%s295 + $0x58] sm:$0xff]
        %v312 = vld [vmem:[%s1] sm:$0xf]
        %v313 = vld [vmem:[%s1 + $0x4] sm:$0xf]
        %v314 = vld [vmem:[%s1 + $0x8] sm:$0xf]
        %v315 = vld [vmem:[%s1 + $0xc] sm:$0xf]
        %v316 = vld [vmem:[%s1 + $0x10] sm:$0xf]
        %v317 = vld [vmem:[%s1 + $0x14] sm:$0xf]
        %v318 = vld [vmem:[%s1 + $0x18] sm:$0xf]
        %v319 = vld [vmem:[%s1 + $0x1c] sm:$0xf]
        %v320 = vld [vmem:[%s1 + $0x20] sm:$0xf]
        %v321 = vld [vmem:[%s1 + $0x24] sm:$0xf]
        %v322 = vld [vmem:[%s1 + $0x28] sm:$0xf]
        %v323 = vld [vmem:[%s1 + $0x2c] sm:$0xf]
        %v324 = vld [vmem:[%s1 + $0x30] sm:$0xf]
        %v325 = vld [vmem:[%s1 + $0x34] sm:$0xf]
        %v326 = vld [vmem:[%s1 + $0x38] sm:$0xf]
        %v327 = vld [vmem:[%s1 + $0x3c] sm:$0xf]
        %s328 = scalar_lea.vmem %s1, 64
        %v329 = vld [vmem:[%s328] sm:$0xf]
        %v330 = vld [vmem:[%s328 + $0x4] sm:$0xf]
        %v331 = vld [vmem:[%s328 + $0x8] sm:$0xf]
        %v332 = vld [vmem:[%s328 + $0xc] sm:$0xf]
        %v333 = vld [vmem:[%s328 + $0x10] sm:$0xf]
        %v334 = vld [vmem:[%s328 + $0x14] sm:$0xf]
        %v335 = vld [vmem:[%s328 + $0x18] sm:$0xf]
        %v336 = vld [vmem:[%s328 + $0x1c] sm:$0xf]
        %v337 = vld [vmem:[%s328 + $0x20] sm:$0xf]
        %v338 = vld [vmem:[%s328 + $0x24] sm:$0xf]
        %v339 = vld [vmem:[%s328 + $0x28] sm:$0xf]
        %v340 = vld [vmem:[%s328 + $0x2c] sm:$0xf]
        %v341 = vld [vmem:[%s328 + $0x30] sm:$0xf]
        %v342 = vld [vmem:[%s328 + $0x34] sm:$0xf]
        %v343 = vld [vmem:[%s328 + $0x38] sm:$0xf]
        %v344 = vld [vmem:[%s328 + $0x3c] sm:$0xf]
        %v361 = vunpack.c.l.b16 %v329
        %v362 = vunpack.c.l.b16 %v330
        %v363 = vunpack.c.l.b16 %v331
        %v364 = vunpack.c.l.b16 %v332
        %v365 = vunpack.c.l.b16 %v333
        %v366 = vunpack.c.l.b16 %v334
        %v367 = vunpack.c.l.b16 %v335
        %v368 = vunpack.c.l.b16 %v336
        %v369 = vunpack.c.l.b16 %v337
        %v370 = vunpack.c.l.b16 %v338
        %v371 = vunpack.c.l.b16 %v339
        %v372 = vunpack.c.l.b16 %v340
        %v373 = vunpack.c.l.b16 %v341
        %v374 = vunpack.c.l.b16 %v342
        %v375 = vunpack.c.l.b16 %v343
        %v376 = vunpack.c.l.b16 %v344
        %v377 = vpack.c.b16 %v362, %v361
        %v378 = vpack.c.b16 %v364, %v363
        %v379 = vpack.c.b16 %v366, %v365
        %v380 = vpack.c.b16 %v368, %v367
        %v381 = vpack.c.b16 %v370, %v369
        %v382 = vpack.c.b16 %v372, %v371
        %v383 = vpack.c.b16 %v374, %v373
        %v384 = vpack.c.b16 %v376, %v375
        %v397 = vunpack.c.l.b16 %v300
        %v398 = vunpack.c.h.b16 %v300
        %v399 = vunpack.c.l.b16 %v301
        %v400 = vunpack.c.h.b16 %v301
        %v401 = vunpack.c.l.b16 %v302
        %v402 = vunpack.c.h.b16 %v302
        %v403 = vunpack.c.l.b16 %v303
        %v404 = vunpack.c.h.b16 %v303
        %v405 = vunpack.c.l.b16 %v304
        %v406 = vunpack.c.h.b16 %v304
        %v407 = vunpack.c.l.b16 %v305
        %v408 = vunpack.c.h.b16 %v305
        %v409 = vunpack.c.l.b16 %v306
        %v410 = vunpack.c.h.b16 %v306
        %v411 = vunpack.c.l.b16 %v307
        %v412 = vunpack.c.h.b16 %v307
        %v413 = vunpack.c.l.b16 %v308
        %v414 = vunpack.c.h.b16 %v308
        %v415 = vunpack.c.l.b16 %v309
        %v416 = vunpack.c.h.b16 %v309
        %v417 = vunpack.c.l.b16 %v310
        %v418 = vunpack.c.h.b16 %v310
        %v419 = vunpack.c.l.b16 %v311
        %v420 = vunpack.c.h.b16 %v311
        %v421 = vpack.c.b16 %v401, %v397
        %v422 = vpack.c.b16 %v402, %v398
        %v423 = vpack.c.b16 %v403, %v399
        %v424 = vpack.c.b16 %v404, %v400
        %v425 = vpack.c.b16 %v409, %v405
        %v426 = vpack.c.b16 %v410, %v406
        %v427 = vpack.c.b16 %v411, %v407
        %v428 = vpack.c.b16 %v412, %v408
        %v429 = vpack.c.b16 %v417, %v413
        %v430 = vpack.c.b16 %v418, %v414
        %v431 = vpack.c.b16 %v419, %v415
        %v432 = vpack.c.b16 %v420, %v416
        %433 = vrot.lane.b32.xlu0 %v421, 127
        %v434 = vpop.permute.xlu0 %433
        %435 = vrot.lane.b32.xlu0 %v422, 127
        %v436 = vpop.permute.xlu0 %435
        %437 = vrot.lane.b32.xlu0 %v423, 127
        %v438 = vpop.permute.xlu0 %437
        %439 = vrot.lane.b32.xlu0 %v424, 127
        %v440 = vpop.permute.xlu0 %439
        %441 = vrot.lane.b32.xlu0 %v425, 127
        %v442 = vpop.permute.xlu0 %441
        %443 = vrot.lane.b32.xlu0 %v426, 127
        %v444 = vpop.permute.xlu0 %443
        %445 = vrot.lane.b32.xlu0 %v427, 127
        %v446 = vpop.permute.xlu0 %445
        %447 = vrot.lane.b32.xlu0 %v428, 127
        %v448 = vpop.permute.xlu0 %447
        %449 = vrot.lane.b32.xlu0 %v429, 127
        %v450 = vpop.permute.xlu0 %449
        %451 = vrot.lane.b32.xlu0 %v430, 127
        %v452 = vpop.permute.xlu0 %451
        %453 = vrot.lane.b32.xlu0 %v431, 127
        %v454 = vpop.permute.xlu0 %453
        %455 = vrot.lane.b32.xlu0 %v432, 127
        %v456 = vpop.permute.xlu0 %455
        %vm457 = vcmask 1039360
        %v458 = vsel %vm457, %v434, %v436
        %v459 = vsel %vm457, %v436, %v438
        %v460 = vsel %vm457, %v438, %v440
        %v461 = vsel %vm457, %v442, %v444
        %v462 = vsel %vm457, %v444, %v446
        %v463 = vsel %vm457, %v446, %v448
        %v464 = vsel %vm457, %v450, %v452
        %v465 = vsel %vm457, %v452, %v454
        %v466 = vsel %vm457, %v454, %v456
        %vm476 = vcmask 392192
        %v478 = vsel %vm476, %v377, 0
        %v481 = vsel %vm476, %v378, 0
        %v484 = vsel %vm476, %v379, 0
        %v487 = vsel %vm476, %v380, 0
        %v490 = vsel %vm476, %v381, 0
        %v493 = vsel %vm476, %v382, 0
        %v496 = vsel %vm476, %v383, 0
        %v499 = vsel %vm476, %v384, 0
        %501 = vmatprep.subr.bf16.mxu0 %v459
        %502 = vmatpush1.bf16.msra.mxu0 %v458
        %503 = vmatprep.subr.bf16.mxu0 %v462
        %504 = vmatpush1.bf16.msra.mxu0 %v461
        %505 = vmatprep.subr.bf16.mxu0 %v465
        %506 = vmatpush1.bf16.msra.mxu0 %v464
        %507 = vmatprep.subr.bf16.mxu0 0
        %508 = vmatpush1.bf16.msra.mxu0 0
        %509 = vmatprep.subr.bf16.mxu0 0
        %510 = vmatpush1.bf16.msra.mxu0 0
        %511 = vmatprep.subr.bf16.mxu0 0
        %512 = vmatpush1.bf16.msra.mxu0 0
        %513 = vmatprep.subr.bf16.mxu0 0
        %514 = vmatpush1.bf16.msra.mxu0 0
        %515 = vmatprep.subr.bf16.mxu0 0
        %516 = vmatpush1.bf16.msra.mxu0 0
        %517 = vmatprep.subr.bf16.mxu0 0
        %518 = vmatpush1.bf16.msra.mxu0 0
        %519 = vmatprep.subr.bf16.mxu0 0
        %520 = vmatpush1.bf16.msra.mxu0 0
        %521 = vmatprep.subr.bf16.mxu0 0
        %522 = vmatpush1.bf16.msra.mxu0 0
        %523 = vmatprep.subr.bf16.mxu0 0
        %524 = vmatpush1.bf16.msra.mxu0 0
        %525 = vmatprep.subr.bf16.mxu0 0
        %526 = vmatpush1.bf16.msra.mxu0 0
        %527 = vmatprep.subr.bf16.mxu0 0
        %528 = vmatpush1.bf16.msra.mxu0 0
        %529 = vmatprep.subr.bf16.mxu0 0
        %530 = vmatpush1.bf16.msra.mxu0 0
        %531 = vmatprep.subr.bf16.mxu0 0
        %532 = vmatpush1.bf16.msra.mxu0 0
        %533 = vmatprep.mubr.bf16.mxu0 0
        %534 = vmatmul.mubr.bf16.gmra.mrb[0].mxu0 %v478
        %v535 = vpop.f32.mrb[0].mxu0
        %v536 = vadd.f32 0.0, %v535
        %v537 = vpop.f32.mrb[0].mxu0
        %v538 = vadd.f32 0.0, %v537
        %v539 = vpop.f32.mrb[0].mxu0
        %v540 = vadd.f32 0.0, %v539
        %v541 = vpop.f32.mrb[0].mxu0
        %v542 = vadd.f32 0.0, %v541
        %543 = vmatprep.mubr.bf16.mxu0 0
        %544 = vmatmul.mubr.bf16.gmra.mrb[0].mxu0 %v481
        %v545 = vpop.f32.mrb[0].mxu0
        %v546 = vadd.f32 0.0, %v545
        %v547 = vpop.f32.mrb[0].mxu0
        %v548 = vadd.f32 0.0, %v547
        %v549 = vpop.f32.mrb[0].mxu0
        %v550 = vadd.f32 0.0, %v549
        %v551 = vpop.f32.mrb[0].mxu0
        %v552 = vadd.f32 0.0, %v551
        %553 = vmatprep.mubr.bf16.mxu0 0
        %554 = vmatmul.mubr.bf16.gmra.mrb[0].mxu0 %v484
        %v555 = vpop.f32.mrb[0].mxu0
        %v556 = vadd.f32 0.0, %v555
        %v557 = vpop.f32.mrb[0].mxu0
        %v558 = vadd.f32 0.0, %v557
        %v559 = vpop.f32.mrb[0].mxu0
        %v560 = vadd.f32 0.0, %v559
        %v561 = vpop.f32.mrb[0].mxu0
        %v562 = vadd.f32 0.0, %v561
        %563 = vmatprep.mubr.bf16.mxu0 0
        %564 = vmatmul.mubr.bf16.gmra.mrb[0].mxu0 %v487
        %v565 = vpop.f32.mrb[0].mxu0
        %v566 = vadd.f32 0.0, %v565
        %v567 = vpop.f32.mrb[0].mxu0
        %v568 = vadd.f32 0.0, %v567
        %v569 = vpop.f32.mrb[0].mxu0
        %v570 = vadd.f32 0.0, %v569
        %v571 = vpop.f32.mrb[0].mxu0
        %v572 = vadd.f32 0.0, %v571
        %573 = vmatprep.mubr.bf16.mxu0 0
        %574 = vmatmul.mubr.bf16.gmra.mrb[0].mxu0 %v490
        %v575 = vpop.f32.mrb[0].mxu0
        %v576 = vadd.f32 0.0, %v575
        %v577 = vpop.f32.mrb[0].mxu0
        %v578 = vadd.f32 0.0, %v577
        %v579 = vpop.f32.mrb[0].mxu0
        %v580 = vadd.f32 0.0, %v579
        %v581 = vpop.f32.mrb[0].mxu0
        %v582 = vadd.f32 0.0, %v581
        %583 = vmatprep.mubr.bf16.mxu0 0
        %584 = vmatmul.mubr.bf16.gmra.mrb[0].mxu0 %v493
        %v585 = vpop.f32.mrb[0].mxu0
        %v586 = vadd.f32 0.0, %v585
        %v587 = vpop.f32.mrb[0].mxu0
        %v588 = vadd.f32 0.0, %v587
        %v589 = vpop.f32.mrb[0].mxu0
        %v590 = vadd.f32 0.0, %v589
        %v591 = vpop.f32.mrb[0].mxu0
        %v592 = vadd.f32 0.0, %v591
        %593 = vmatprep.mubr.bf16.mxu0 0
        %594 = vmatmul.mubr.bf16.gmra.mrb[0].mxu0 %v496
        %v595 = vpop.f32.mrb[0].mxu0
        %v596 = vadd.f32 0.0, %v595
        %v597 = vpop.f32.mrb[0].mxu0
        %v598 = vadd.f32 0.0, %v597
        %v599 = vpop.f32.mrb[0].mxu0
        %v600 = vadd.f32 0.0, %v599
        %v601 = vpop.f32.mrb[0].mxu0
        %v602 = vadd.f32 0.0, %v601
        %603 = vmatprep.mubr.bf16.mxu0 0
        %604 = vmatmul.mubr.bf16.gmra.mrb[0].mxu0 %v499
        %v605 = vpop.f32.mrb[0].mxu0
        %v606 = vadd.f32 0.0, %v605
        %v607 = vpop.f32.mrb[0].mxu0
        %v608 = vadd.f32 0.0, %v607
        %v609 = vpop.f32.mrb[0].mxu0
        %v610 = vadd.f32 0.0, %v609
        %v611 = vpop.f32.mrb[0].mxu0
        %v612 = vadd.f32 0.0, %v611
        %613 = vdwg.mxu0
        %614 = vmatprep.subr.bf16.mxu0 0
        %615 = vmatpush1.bf16.msra.mxu0 %v460
        %616 = vmatprep.subr.bf16.mxu0 0
        %617 = vmatpush1.bf16.msra.mxu0 %v463
        %618 = vmatprep.subr.bf16.mxu0 0
        %619 = vmatpush1.bf16.msra.mxu0 %v466
        %620 = vmatprep.subr.bf16.mxu0 0
        %621 = vmatpush1.bf16.msra.mxu0 0
        %622 = vmatprep.subr.bf16.mxu0 0
        %623 = vmatpush1.bf16.msra.mxu0 0
        %624 = vmatprep.subr.bf16.mxu0 0
        %625 = vmatpush1.bf16.msra.mxu0 0
        %626 = vmatprep.subr.bf16.mxu0 0
        %627 = vmatpush1.bf16.msra.mxu0 0
        %628 = vmatprep.subr.bf16.mxu0 0
        %629 = vmatpush1.bf16.msra.mxu0 0
        %630 = vmatprep.subr.bf16.mxu0 0
        %631 = vmatpush1.bf16.msra.mxu0 0
        %632 = vmatprep.subr.bf16.mxu0 0
        %633 = vmatpush1.bf16.msra.mxu0 0
        %634 = vmatprep.subr.bf16.mxu0 0
        %635 = vmatpush1.bf16.msra.mxu0 0
        %636 = vmatprep.subr.bf16.mxu0 0
        %637 = vmatpush1.bf16.msra.mxu0 0
        %638 = vmatprep.subr.bf16.mxu0 0
        %639 = vmatpush1.bf16.msra.mxu0 0
        %640 = vmatprep.subr.bf16.mxu0 0
        %641 = vmatpush1.bf16.msra.mxu0 0
        %642 = vmatprep.subr.bf16.mxu0 0
        %643 = vmatpush1.bf16.msra.mxu0 0
        %644 = vmatprep.subr.bf16.mxu0 0
        %645 = vmatpush1.bf16.msra.mxu0 0
        %646 = vmatprep.mubr.bf16.mxu0 0
        %647 = vmatmul.mubr.bf16.gmra.mrb[0].mxu0 %v478
        %v648 = vpop.f32.mrb[0].mxu0
        %v649 = vadd.f32 0.0, %v648
        %v650 = vpop.f32.mrb[0].mxu0
        %v651 = vpop.f32.mrb[0].mxu0
        %v652 = vadd.f32 0.0, %v651
        %v653 = vpop.f32.mrb[0].mxu0
        %654 = vmatprep.mubr.bf16.mxu0 0
        %655 = vmatmul.mubr.bf16.gmra.mrb[0].mxu0 %v481
        %v656 = vpop.f32.mrb[0].mxu0
        %v657 = vadd.f32 0.0, %v656
        %v658 = vpop.f32.mrb[0].mxu0
        %v659 = vpop.f32.mrb[0].mxu0
        %v660 = vadd.f32 0.0, %v659
        %v661 = vpop.f32.mrb[0].mxu0
        %662 = vmatprep.mubr.bf16.mxu0 0
        %663 = vmatmul.mubr.bf16.gmra.mrb[0].mxu0 %v484
        %v664 = vpop.f32.mrb[0].mxu0
        %v665 = vadd.f32 0.0, %v664
        %v666 = vpop.f32.mrb[0].mxu0
        %v667 = vpop.f32.mrb[0].mxu0
        %v668 = vadd.f32 0.0, %v667
        %v669 = vpop.f32.mrb[0].mxu0
        %670 = vmatprep.mubr.bf16.mxu0 0
        %671 = vmatmul.mubr.bf16.gmra.mrb[0].mxu0 %v487
        %v672 = vpop.f32.mrb[0].mxu0
        %v673 = vadd.f32 0.0, %v672
        %v674 = vpop.f32.mrb[0].mxu0
        %v675 = vpop.f32.mrb[0].mxu0
        %v676 = vadd.f32 0.0, %v675
        %v677 = vpop.f32.mrb[0].mxu0
        %678 = vmatprep.mubr.bf16.mxu0 0
        %679 = vmatmul.mubr.bf16.gmra.mrb[0].mxu0 %v490
        %v680 = vpop.f32.mrb[0].mxu0
        %v681 = vadd.f32 0.0, %v680
        %v682 = vpop.f32.mrb[0].mxu0
        %v683 = vpop.f32.mrb[0].mxu0
        %v684 = vadd.f32 0.0, %v683
        %v685 = vpop.f32.mrb[0].mxu0
        %686 = vmatprep.mubr.bf16.mxu0 0
        %687 = vmatmul.mubr.bf16.gmra.mrb[0].mxu0 %v493
        %v688 = vpop.f32.mrb[0].mxu0
        %v689 = vadd.f32 0.0, %v688
        %v690 = vpop.f32.mrb[0].mxu0
        %v691 = vpop.f32.mrb[0].mxu0
        %v692 = vadd.f32 0.0, %v691
        %v693 = vpop.f32.mrb[0].mxu0
        %694 = vmatprep.mubr.bf16.mxu0 0
        %695 = vmatmul.mubr.bf16.gmra.mrb[0].mxu0 %v496
        %v696 = vpop.f32.mrb[0].mxu0
        %v697 = vadd.f32 0.0, %v696
        %v698 = vpop.f32.mrb[0].mxu0
        %v699 = vpop.f32.mrb[0].mxu0
        %v700 = vadd.f32 0.0, %v699
        %v701 = vpop.f32.mrb[0].mxu0
        %702 = vmatprep.mubr.bf16.mxu0 0
        %703 = vmatmul.mubr.bf16.gmra.mrb[0].mxu0 %v499
        %v704 = vpop.f32.mrb[0].mxu0
        %v705 = vadd.f32 0.0, %v704
        %v706 = vpop.f32.mrb[0].mxu0
        %v707 = vpop.f32.mrb[0].mxu0
        %v708 = vadd.f32 0.0, %v707
        %v709 = vpop.f32.mrb[0].mxu0
        %710 = vdwg.mxu0
        %v727 = vunpack.c.l.b16 %v312
        %v728 = vunpack.c.l.b16 %v313
        %v729 = vunpack.c.l.b16 %v314
        %v730 = vunpack.c.l.b16 %v315
        %v731 = vunpack.c.l.b16 %v316
        %v732 = vunpack.c.l.b16 %v317
        %v733 = vunpack.c.l.b16 %v318
        %v734 = vunpack.c.l.b16 %v319
        %v735 = vunpack.c.l.b16 %v320
        %v736 = vunpack.c.l.b16 %v321
        %v737 = vunpack.c.l.b16 %v322
        %v738 = vunpack.c.l.b16 %v323
        %v739 = vunpack.c.l.b16 %v324
        %v740 = vunpack.c.l.b16 %v325
        %v741 = vunpack.c.l.b16 %v326
        %v742 = vunpack.c.l.b16 %v327
        %v743 = vpack.c.b16 %v728, %v727
        %v744 = vpack.c.b16 %v730, %v729
        %v745 = vpack.c.b16 %v732, %v731
        %v746 = vpack.c.b16 %v734, %v733
        %v747 = vpack.c.b16 %v736, %v735
        %v748 = vpack.c.b16 %v738, %v737
        %v749 = vpack.c.b16 %v740, %v739
        %v750 = vpack.c.b16 %v742, %v741
        %v761 = vsel %vm476, %v743, 0
        %v764 = vsel %vm476, %v744, 0
        %v767 = vsel %vm476, %v745, 0
        %v770 = vsel %vm476, %v746, 0
        %v773 = vsel %vm476, %v747, 0
        %v776 = vsel %vm476, %v748, 0
        %v779 = vsel %vm476, %v749, 0
        %v782 = vsel %vm476, %v750, 0
        %784 = vmatprep.subr.bf16.mxu0 %v422
        %785 = vmatpush1.bf16.msra.mxu0 %v421
        %786 = vmatprep.subr.bf16.mxu0 %v426
        %787 = vmatpush1.bf16.msra.mxu0 %v425
        %788 = vmatprep.subr.bf16.mxu0 %v430
        %789 = vmatpush1.bf16.msra.mxu0 %v429
        %790 = vmatprep.subr.bf16.mxu0 0
        %791 = vmatpush1.bf16.msra.mxu0 0
        %792 = vmatprep.subr.bf16.mxu0 0
        %793 = vmatpush1.bf16.msra.mxu0 0
        %794 = vmatprep.subr.bf16.mxu0 0
        %795 = vmatpush1.bf16.msra.mxu0 0
        %796 = vmatprep.subr.bf16.mxu0 0
        %797 = vmatpush1.bf16.msra.mxu0 0
        %798 = vmatprep.subr.bf16.mxu0 0
        %799 = vmatpush1.bf16.msra.mxu0 0
        %800 = vmatprep.subr.bf16.mxu0 0
        %801 = vmatpush1.bf16.msra.mxu0 0
        %802 = vmatprep.subr.bf16.mxu0 0
        %803 = vmatpush1.bf16.msra.mxu0 0
        %804 = vmatprep.subr.bf16.mxu0 0
        %805 = vmatpush1.bf16.msra.mxu0 0
        %806 = vmatprep.subr.bf16.mxu0 0
        %807 = vmatpush1.bf16.msra.mxu0 0
        %808 = vmatprep.subr.bf16.mxu0 0
        %809 = vmatpush1.bf16.msra.mxu0 0
        %810 = vmatprep.subr.bf16.mxu0 0
        %811 = vmatpush1.bf16.msra.mxu0 0
        %812 = vmatprep.subr.bf16.mxu0 0
        %813 = vmatpush1.bf16.msra.mxu0 0
        %814 = vmatprep.subr.bf16.mxu0 0
        %815 = vmatpush1.bf16.msra.mxu0 0
        %816 = vmatprep.mubr.bf16.mxu0 0
        %817 = vmatmul.mubr.bf16.gmra.mrb[0].mxu0 %v761
        %v818 = vpop.f32.mrb[0].mxu0
        %v819 = vadd.f32 %v536, %v818
        %v820 = vpop.f32.mrb[0].mxu0
        %v821 = vadd.f32 %v538, %v820
        %v822 = vpop.f32.mrb[0].mxu0
        %v823 = vadd.f32 %v540, %v822
        %v824 = vpop.f32.mrb[0].mxu0
        %v825 = vadd.f32 %v542, %v824
        %826 = vmatprep.mubr.bf16.mxu0 0
        %827 = vmatmul.mubr.bf16.gmra.mrb[0].mxu0 %v764
        %v828 = vpop.f32.mrb[0].mxu0
        %v829 = vadd.f32 %v546, %v828
        %v830 = vpop.f32.mrb[0].mxu0
        %v831 = vadd.f32 %v548, %v830
        %v832 = vpop.f32.mrb[0].mxu0
        %v833 = vadd.f32 %v550, %v832
        %v834 = vpop.f32.mrb[0].mxu0
        %v835 = vadd.f32 %v552, %v834
        %836 = vmatprep.mubr.bf16.mxu0 0
        %837 = vmatmul.mubr.bf16.gmra.mrb[0].mxu0 %v767
        %v838 = vpop.f32.mrb[0].mxu0
        %v839 = vadd.f32 %v556, %v838
        %v840 = vpop.f32.mrb[0].mxu0
        %v841 = vadd.f32 %v558, %v840
        %v842 = vpop.f32.mrb[0].mxu0
        %v843 = vadd.f32 %v560, %v842
        %v844 = vpop.f32.mrb[0].mxu0
        %v845 = vadd.f32 %v562, %v844
        %846 = vmatprep.mubr.bf16.mxu0 0
        %847 = vmatmul.mubr.bf16.gmra.mrb[0].mxu0 %v770
        %v848 = vpop.f32.mrb[0].mxu0
        %v849 = vadd.f32 %v566, %v848
        %v850 = vpop.f32.mrb[0].mxu0
        %v851 = vadd.f32 %v568, %v850
        %v852 = vpop.f32.mrb[0].mxu0
        %v853 = vadd.f32 %v570, %v852
        %v854 = vpop.f32.mrb[0].mxu0
        %v855 = vadd.f32 %v572, %v854
        %856 = vmatprep.mubr.bf16.mxu0 0
        %857 = vmatmul.mubr.bf16.gmra.mrb[0].mxu0 %v773
        %v858 = vpop.f32.mrb[0].mxu0
        %v859 = vadd.f32 %v576, %v858
        %v860 = vpop.f32.mrb[0].mxu0
        %v861 = vadd.f32 %v578, %v860
        %v862 = vpop.f32.mrb[0].mxu0
        %v863 = vadd.f32 %v580, %v862
        %v864 = vpop.f32.mrb[0].mxu0
        %v865 = vadd.f32 %v582, %v864
        %866 = vmatprep.mubr.bf16.mxu0 0
        %867 = vmatmul.mubr.bf16.gmra.mrb[0].mxu0 %v776
        %v868 = vpop.f32.mrb[0].mxu0
        %v869 = vadd.f32 %v586, %v868
        %v870 = vpop.f32.mrb[0].mxu0
        %v871 = vadd.f32 %v588, %v870
        %v872 = vpop.f32.mrb[0].mxu0
        %v873 = vadd.f32 %v590, %v872
        %v874 = vpop.f32.mrb[0].mxu0
        %v875 = vadd.f32 %v592, %v874
        %876 = vmatprep.mubr.bf16.mxu0 0
        %877 = vmatmul.mubr.bf16.gmra.mrb[0].mxu0 %v779
        %v878 = vpop.f32.mrb[0].mxu0
        %v879 = vadd.f32 %v596, %v878
        %v880 = vpop.f32.mrb[0].mxu0
        %v881 = vadd.f32 %v598, %v880
        %v882 = vpop.f32.mrb[0].mxu0
        %v883 = vadd.f32 %v600, %v882
        %v884 = vpop.f32.mrb[0].mxu0
        %v885 = vadd.f32 %v602, %v884
        %886 = vmatprep.mubr.bf16.mxu0 0
        %887 = vmatmul.mubr.bf16.gmra.mrb[0].mxu0 %v782
        %v888 = vpop.f32.mrb[0].mxu0
        %v889 = vadd.f32 %v606, %v888
        %v890 = vpop.f32.mrb[0].mxu0
        %v891 = vadd.f32 %v608, %v890
        %v892 = vpop.f32.mrb[0].mxu0
        %v893 = vadd.f32 %v610, %v892
        %v894 = vpop.f32.mrb[0].mxu0
        %v895 = vadd.f32 %v612, %v894
        %896 = vdwg.mxu0
        %897 = vmatprep.subr.bf16.mxu0 0
        %898 = vmatpush1.bf16.msra.mxu0 %v423
        %899 = vmatprep.subr.bf16.mxu0 0
        %900 = vmatpush1.bf16.msra.mxu0 %v427
        %901 = vmatprep.subr.bf16.mxu0 0
        %902 = vmatpush1.bf16.msra.mxu0 %v431
        %903 = vmatprep.subr.bf16.mxu0 0
        %904 = vmatpush1.bf16.msra.mxu0 0
        %905 = vmatprep.subr.bf16.mxu0 0
        %906 = vmatpush1.bf16.msra.mxu0 0
        %907 = vmatprep.subr.bf16.mxu0 0
        %908 = vmatpush1.bf16.msra.mxu0 0
        %909 = vmatprep.subr.bf16.mxu0 0
        %910 = vmatpush1.bf16.msra.mxu0 0
        %911 = vmatprep.subr.bf16.mxu0 0
        %912 = vmatpush1.bf16.msra.mxu0 0
        %913 = vmatprep.subr.bf16.mxu0 0
        %914 = vmatpush1.bf16.msra.mxu0 0
        %915 = vmatprep.subr.bf16.mxu0 0
        %916 = vmatpush1.bf16.msra.mxu0 0
        %917 = vmatprep.subr.bf16.mxu0 0
        %918 = vmatpush1.bf16.msra.mxu0 0
        %919 = vmatprep.subr.bf16.mxu0 0
        %920 = vmatpush1.bf16.msra.mxu0 0
        %921 = vmatprep.subr.bf16.mxu0 0
        %922 = vmatpush1.bf16.msra.mxu0 0
        %923 = vmatprep.subr.bf16.mxu0 0
        %924 = vmatpush1.bf16.msra.mxu0 0
        %925 = vmatprep.subr.bf16.mxu0 0
        %926 = vmatpush1.bf16.msra.mxu0 0
        %927 = vmatprep.subr.bf16.mxu0 0
        %928 = vmatpush1.bf16.msra.mxu0 0
        %929 = vmatprep.mubr.bf16.mxu0 0
        %930 = vmatmul.mubr.bf16.gmra.mrb[0].mxu0 %v761
        %v931 = vpop.f32.mrb[0].mxu0
        %v932 = vadd.f32 %v649, %v931
        %v933 = vpop.f32.mrb[0].mxu0
        %v934 = vpop.f32.mrb[0].mxu0
        %v935 = vadd.f32 %v652, %v934
        %v936 = vpop.f32.mrb[0].mxu0
        %937 = vmatprep.mubr.bf16.mxu0 0
        %938 = vmatmul.mubr.bf16.gmra.mrb[0].mxu0 %v764
        %v939 = vpop.f32.mrb[0].mxu0
        %v940 = vadd.f32 %v657, %v939
        %v941 = vpop.f32.mrb[0].mxu0
        %v942 = vpop.f32.mrb[0].mxu0
        %v943 = vadd.f32 %v660, %v942
        %v944 = vpop.f32.mrb[0].mxu0
        %945 = vmatprep.mubr.bf16.mxu0 0
        %946 = vmatmul.mubr.bf16.gmra.mrb[0].mxu0 %v767
        %v947 = vpop.f32.mrb[0].mxu0
        %v948 = vadd.f32 %v665, %v947
        %v949 = vpop.f32.mrb[0].mxu0
        %v950 = vpop.f32.mrb[0].mxu0
        %v951 = vadd.f32 %v668, %v950
        %v952 = vpop.f32.mrb[0].mxu0
        %953 = vmatprep.mubr.bf16.mxu0 0
        %954 = vmatmul.mubr.bf16.gmra.mrb[0].mxu0 %v770
        %v955 = vpop.f32.mrb[0].mxu0
        %v956 = vadd.f32 %v673, %v955
        %v957 = vpop.f32.mrb[0].mxu0
        %v958 = vpop.f32.mrb[0].mxu0
        %v959 = vadd.f32 %v676, %v958
        %v960 = vpop.f32.mrb[0].mxu0
        %961 = vmatprep.mubr.bf16.mxu0 0
        %962 = vmatmul.mubr.bf16.gmra.mrb[0].mxu0 %v773
        %v963 = vpop.f32.mrb[0].mxu0
        %v964 = vadd.f32 %v681, %v963
        %v965 = vpop.f32.mrb[0].mxu0
        %v966 = vpop.f32.mrb[0].mxu0
        %v967 = vadd.f32 %v684, %v966
        %v968 = vpop.f32.mrb[0].mxu0
        %969 = vmatprep.mubr.bf16.mxu0 0
        %970 = vmatmul.mubr.bf16.gmra.mrb[0].mxu0 %v776
        %v971 = vpop.f32.mrb[0].mxu0
        %v972 = vadd.f32 %v689, %v971
        %v973 = vpop.f32.mrb[0].mxu0
        %v974 = vpop.f32.mrb[0].mxu0
        %v975 = vadd.f32 %v692, %v974
        %v976 = vpop.f32.mrb[0].mxu0
        %977 = vmatprep.mubr.bf16.mxu0 0
        %978 = vmatmul.mubr.bf16.gmra.mrb[0].mxu0 %v779
        %v979 = vpop.f32.mrb[0].mxu0
        %v980 = vadd.f32 %v697, %v979
        %v981 = vpop.f32.mrb[0].mxu0
        %v982 = vpop.f32.mrb[0].mxu0
        %v983 = vadd.f32 %v700, %v982
        %v984 = vpop.f32.mrb[0].mxu0
        %985 = vmatprep.mubr.bf16.mxu0 0
        %986 = vmatmul.mubr.bf16.gmra.mrb[0].mxu0 %v782
        %v987 = vpop.f32.mrb[0].mxu0
        %v988 = vadd.f32 %v705, %v987
        %v989 = vpop.f32.mrb[0].mxu0
        %v990 = vpop.f32.mrb[0].mxu0
        %v991 = vadd.f32 %v708, %v990
        %v992 = vpop.f32.mrb[0].mxu0
        %993 = vdwg.mxu0
        %s994 = scalar_lea.vmem %s1, 128
        %v995 = vld [vmem:[%s994] sm:$0xf]
        %v996 = vld [vmem:[%s994 + $0x4] sm:$0xf]
        %v997 = vld [vmem:[%s994 + $0x8] sm:$0xf]
        %v998 = vld [vmem:[%s994 + $0xc] sm:$0xf]
        %v999 = vld [vmem:[%s994 + $0x10] sm:$0xf]
        %v1000 = vld [vmem:[%s994 + $0x14] sm:$0xf]
        %v1001 = vld [vmem:[%s994 + $0x18] sm:$0xf]
        %v1002 = vld [vmem:[%s994 + $0x1c] sm:$0xf]
        %v1003 = vld [vmem:[%s994 + $0x20] sm:$0xf]
        %v1004 = vld [vmem:[%s994 + $0x24] sm:$0xf]
        %v1005 = vld [vmem:[%s994 + $0x28] sm:$0xf]
        %v1006 = vld [vmem:[%s994 + $0x2c] sm:$0xf]
        %v1007 = vld [vmem:[%s994 + $0x30] sm:$0xf]
        %v1008 = vld [vmem:[%s994 + $0x34] sm:$0xf]
        %v1009 = vld [vmem:[%s994 + $0x38] sm:$0xf]
        %v1010 = vld [vmem:[%s994 + $0x3c] sm:$0xf]
        %v1027 = vunpack.c.l.b16 %v995
        %v1028 = vunpack.c.l.b16 %v996
        %v1029 = vunpack.c.l.b16 %v997
        %v1030 = vunpack.c.l.b16 %v998
        %v1031 = vunpack.c.l.b16 %v999
        %v1032 = vunpack.c.l.b16 %v1000
        %v1033 = vunpack.c.l.b16 %v1001
        %v1034 = vunpack.c.l.b16 %v1002
        %v1035 = vunpack.c.l.b16 %v1003
        %v1036 = vunpack.c.l.b16 %v1004
        %v1037 = vunpack.c.l.b16 %v1005
        %v1038 = vunpack.c.l.b16 %v1006
        %v1039 = vunpack.c.l.b16 %v1007
        %v1040 = vunpack.c.l.b16 %v1008
        %v1041 = vunpack.c.l.b16 %v1009
        %v1042 = vunpack.c.l.b16 %v1010
        %v1043 = vpack.c.b16 %v1028, %v1027
        %v1044 = vpack.c.b16 %v1030, %v1029
        %v1045 = vpack.c.b16 %v1032, %v1031
        %v1046 = vpack.c.b16 %v1034, %v1033
        %v1047 = vpack.c.b16 %v1036, %v1035
        %v1048 = vpack.c.b16 %v1038, %v1037
        %v1049 = vpack.c.b16 %v1040, %v1039
        %v1050 = vpack.c.b16 %v1042, %v1041
        %1051 = vrot.lane.b32.xlu0 %v421, 126
        %v1052 = vpop.permute.xlu0 %1051
        %1053 = vrot.lane.b32.xlu0 %v422, 126
        %v1054 = vpop.permute.xlu0 %1053
        %1055 = vrot.lane.b32.xlu0 %v423, 126
        %v1056 = vpop.permute.xlu0 %1055
        %1057 = vrot.lane.b32.xlu0 %v424, 126
        %v1058 = vpop.permute.xlu0 %1057
        %1059 = vrot.lane.b32.xlu0 %v425, 126
        %v1060 = vpop.permute.xlu0 %1059
        %1061 = vrot.lane.b32.xlu0 %v426, 126
        %v1062 = vpop.permute.xlu0 %1061
        %1063 = vrot.lane.b32.xlu0 %v427, 126
        %v1064 = vpop.permute.xlu0 %1063
        %1065 = vrot.lane.b32.xlu0 %v428, 126
        %v1066 = vpop.permute.xlu0 %1065
        %1067 = vrot.lane.b32.xlu0 %v429, 126
        %v1068 = vpop.permute.xlu0 %1067
        %1069 = vrot.lane.b32.xlu0 %v430, 126
        %v1070 = vpop.permute.xlu0 %1069
        %1071 = vrot.lane.b32.xlu0 %v431, 126
        %v1072 = vpop.permute.xlu0 %1071
        %1073 = vrot.lane.b32.xlu0 %v432, 126
        %v1074 = vpop.permute.xlu0 %1073
        %vm1075 = vcmask 1031168
        %v1076 = vsel %vm1075, %v1052, %v1054
        %v1077 = vsel %vm1075, %v1054, %v1056
        %v1078 = vsel %vm1075, %v1056, %v1058
        %v1079 = vsel %vm1075, %v1060, %v1062
        %v1080 = vsel %vm1075, %v1062, %v1064
        %v1081 = vsel %vm1075, %v1064, %v1066
        %v1082 = vsel %vm1075, %v1068, %v1070
        %v1083 = vsel %vm1075, %v1070, %v1072
        %v1084 = vsel %vm1075, %v1072, %v1074
        %v1095 = vsel %vm476, %v1043, 0
        %v1098 = vsel %vm476, %v1044, 0
        %v1101 = vsel %vm476, %v1045, 0
        %v1104 = vsel %vm476, %v1046, 0
        %v1107 = vsel %vm476, %v1047, 0
        %v1110 = vsel %vm476, %v1048, 0
        %v1113 = vsel %vm476, %v1049, 0
        %v1116 = vsel %vm476, %v1050, 0
        %1118 = vmatprep.subr.bf16.mxu0 %v1077
        %1119 = vmatpush1.bf16.msra.mxu0 %v1076
        %1120 = vmatprep.subr.bf16.mxu0 %v1080
        %1121 = vmatpush1.bf16.msra.mxu0 %v1079
        %1122 = vmatprep.subr.bf16.mxu0 %v1083
        %1123 = vmatpush1.bf16.msra.mxu0 %v1082
        %1124 = vmatprep.subr.bf16.mxu0 0
        %1125 = vmatpush1.bf16.msra.mxu0 0
        %1126 = vmatprep.subr.bf16.mxu0 0
        %1127 = vmatpush1.bf16.msra.mxu0 0
        %1128 = vmatprep.subr.bf16.mxu0 0
        %1129 = vmatpush1.bf16.msra.mxu0 0
        %1130 = vmatprep.subr.bf16.mxu0 0
        %1131 = vmatpush1.bf16.msra.mxu0 0
        %1132 = vmatprep.subr.bf16.mxu0 0
        %1133 = vmatpush1.bf16.msra.mxu0 0
        %1134 = vmatprep.subr.bf16.mxu0 0
        %1135 = vmatpush1.bf16.msra.mxu0 0
        %1136 = vmatprep.subr.bf16.mxu0 0
        %1137 = vmatpush1.bf16.msra.mxu0 0
        %1138 = vmatprep.subr.bf16.mxu0 0
        %1139 = vmatpush1.bf16.msra.mxu0 0
        %1140 = vmatprep.subr.bf16.mxu0 0
        %1141 = vmatpush1.bf16.msra.mxu0 0
        %1142 = vmatprep.subr.bf16.mxu0 0
        %1143 = vmatpush1.bf16.msra.mxu0 0
        %1144 = vmatprep.subr.bf16.mxu0 0
        %1145 = vmatpush1.bf16.msra.mxu0 0
        %1146 = vmatprep.subr.bf16.mxu0 0
        %1147 = vmatpush1.bf16.msra.mxu0 0
        %1148 = vmatprep.subr.bf16.mxu0 0
        %1149 = vmatpush1.bf16.msra.mxu0 0
        %1150 = vmatprep.mubr.bf16.mxu0 0
        %1151 = vmatmul.mubr.bf16.gmra.mrb[0].mxu0 %v1095
        %v1152 = vpop.f32.mrb[0].mxu0
        %v1153 = vadd.f32 0.0, %v1152
        %v1154 = vpop.f32.mrb[0].mxu0
        %v1155 = vadd.f32 0.0, %v1154
        %v1156 = vpop.f32.mrb[0].mxu0
        %v1157 = vadd.f32 0.0, %v1156
        %v1158 = vpop.f32.mrb[0].mxu0
        %v1159 = vadd.f32 0.0, %v1158
        %1160 = vmatprep.mubr.bf16.mxu0 0
        %1161 = vmatmul.mubr.bf16.gmra.mrb[0].mxu0 %v1098
        %v1162 = vpop.f32.mrb[0].mxu0
        %v1163 = vadd.f32 0.0, %v1162
        %v1164 = vpop.f32.mrb[0].mxu0
        %v1165 = vadd.f32 0.0, %v1164
        %v1166 = vpop.f32.mrb[0].mxu0
        %v1167 = vadd.f32 0.0, %v1166
        %v1168 = vpop.f32.mrb[0].mxu0
        %v1169 = vadd.f32 0.0, %v1168
        %1170 = vmatprep.mubr.bf16.mxu0 0
        %1171 = vmatmul.mubr.bf16.gmra.mrb[0].mxu0 %v1101
        %v1172 = vpop.f32.mrb[0].mxu0
        %v1173 = vadd.f32 0.0, %v1172
        %v1174 = vpop.f32.mrb[0].mxu0
        %v1175 = vadd.f32 0.0, %v1174
        %v1176 = vpop.f32.mrb[0].mxu0
        %v1177 = vadd.f32 0.0, %v1176
        %v1178 = vpop.f32.mrb[0].mxu0
        %v1179 = vadd.f32 0.0, %v1178
        %1180 = vmatprep.mubr.bf16.mxu0 0
        %1181 = vmatmul.mubr.bf16.gmra.mrb[0].mxu0 %v1104
        %v1182 = vpop.f32.mrb[0].mxu0
        %v1183 = vadd.f32 0.0, %v1182
        %v1184 = vpop.f32.mrb[0].mxu0
        %v1185 = vadd.f32 0.0, %v1184
        %v1186 = vpop.f32.mrb[0].mxu0
        %v1187 = vadd.f32 0.0, %v1186
        %v1188 = vpop.f32.mrb[0].mxu0
        %v1189 = vadd.f32 0.0, %v1188
        %1190 = vmatprep.mubr.bf16.mxu0 0
        %1191 = vmatmul.mubr.bf16.gmra.mrb[0].mxu0 %v1107
        %v1192 = vpop.f32.mrb[0].mxu0
        %v1193 = vadd.f32 0.0, %v1192
        %v1194 = vpop.f32.mrb[0].mxu0
        %v1195 = vadd.f32 0.0, %v1194
        %v1196 = vpop.f32.mrb[0].mxu0
        %v1197 = vadd.f32 0.0, %v1196
        %v1198 = vpop.f32.mrb[0].mxu0
        %v1199 = vadd.f32 0.0, %v1198
        %1200 = vmatprep.mubr.bf16.mxu0 0
        %1201 = vmatmul.mubr.bf16.gmra.mrb[0].mxu0 %v1110
        %v1202 = vpop.f32.mrb[0].mxu0
        %v1203 = vadd.f32 0.0, %v1202
        %v1204 = vpop.f32.mrb[0].mxu0
        %v1205 = vadd.f32 0.0, %v1204
        %v1206 = vpop.f32.mrb[0].mxu0
        %v1207 = vadd.f32 0.0, %v1206
        %v1208 = vpop.f32.mrb[0].mxu0
        %v1209 = vadd.f32 0.0, %v1208
        %1210 = vmatprep.mubr.bf16.mxu0 0
        %1211 = vmatmul.mubr.bf16.gmra.mrb[0].mxu0 %v1113
        %v1212 = vpop.f32.mrb[0].mxu0
        %v1213 = vadd.f32 0.0, %v1212
        %v1214 = vpop.f32.mrb[0].mxu0
        %v1215 = vadd.f32 0.0, %v1214
        %v1216 = vpop.f32.mrb[0].mxu0
        %v1217 = vadd.f32 0.0, %v1216
        %v1218 = vpop.f32.mrb[0].mxu0
        %v1219 = vadd.f32 0.0, %v1218
        %1220 = vmatprep.mubr.bf16.mxu0 0
        %1221 = vmatmul.mubr.bf16.gmra.mrb[0].mxu0 %v1116
        %v1222 = vpop.f32.mrb[0].mxu0
        %v1223 = vadd.f32 0.0, %v1222
        %v1224 = vpop.f32.mrb[0].mxu0
        %v1225 = vadd.f32 0.0, %v1224
        %v1226 = vpop.f32.mrb[0].mxu0
        %v1227 = vadd.f32 0.0, %v1226
        %v1228 = vpop.f32.mrb[0].mxu0
        %v1229 = vadd.f32 0.0, %v1228
        %1230 = vdwg.mxu0
        %1231 = vmatprep.subr.bf16.mxu0 0
        %1232 = vmatpush1.bf16.msra.mxu0 %v1078
        %1233 = vmatprep.subr.bf16.mxu0 0
        %1234 = vmatpush1.bf16.msra.mxu0 %v1081
        %1235 = vmatprep.subr.bf16.mxu0 0
        %1236 = vmatpush1.bf16.msra.mxu0 %v1084
        %1237 = vmatprep.subr.bf16.mxu0 0
        %1238 = vmatpush1.bf16.msra.mxu0 0
        %1239 = vmatprep.subr.bf16.mxu0 0
        %1240 = vmatpush1.bf16.msra.mxu0 0
        %1241 = vmatprep.subr.bf16.mxu0 0
        %1242 = vmatpush1.bf16.msra.mxu0 0
        %1243 = vmatprep.subr.bf16.mxu0 0
        %1244 = vmatpush1.bf16.msra.mxu0 0
        %1245 = vmatprep.subr.bf16.mxu0 0
        %1246 = vmatpush1.bf16.msra.mxu0 0
        %1247 = vmatprep.subr.bf16.mxu0 0
        %1248 = vmatpush1.bf16.msra.mxu0 0
        %1249 = vmatprep.subr.bf16.mxu0 0
        %1250 = vmatpush1.bf16.msra.mxu0 0
        %1251 = vmatprep.subr.bf16.mxu0 0
        %1252 = vmatpush1.bf16.msra.mxu0 0
        %1253 = vmatprep.subr.bf16.mxu0 0
        %1254 = vmatpush1.bf16.msra.mxu0 0
        %1255 = vmatprep.subr.bf16.mxu0 0
        %1256 = vmatpush1.bf16.msra.mxu0 0
        %1257 = vmatprep.subr.bf16.mxu0 0
        %1258 = vmatpush1.bf16.msra.mxu0 0
        %1259 = vmatprep.subr.bf16.mxu0 0
        %1260 = vmatpush1.bf16.msra.mxu0 0
        %1261 = vmatprep.subr.bf16.mxu0 0
        %1262 = vmatpush1.bf16.msra.mxu0 0
        %1263 = vmatprep.mubr.bf16.mxu0 0
        %1264 = vmatmul.mubr.bf16.gmra.mrb[0].mxu0 %v1095
        %v1265 = vpop.f32.mrb[0].mxu0
        %v1266 = vadd.f32 0.0, %v1265
        %v1267 = vpop.f32.mrb[0].mxu0
        %v1268 = vpop.f32.mrb[0].mxu0
        %v1269 = vadd.f32 0.0, %v1268
        %v1270 = vpop.f32.mrb[0].mxu0
        %1271 = vmatprep.mubr.bf16.mxu0 0
        %1272 = vmatmul.mubr.bf16.gmra.mrb[0].mxu0 %v1098
        %v1273 = vpop.f32.mrb[0].mxu0
        %v1274 = vadd.f32 0.0, %v1273
        %v1275 = vpop.f32.mrb[0].mxu0
        %v1276 = vpop.f32.mrb[0].mxu0
        %v1277 = vadd.f32 0.0, %v1276
        %v1278 = vpop.f32.mrb[0].mxu0
        %1279 = vmatprep.mubr.bf16.mxu0 0
        %1280 = vmatmul.mubr.bf16.gmra.mrb[0].mxu0 %v1101
        %v1281 = vpop.f32.mrb[0].mxu0
        %v1282 = vadd.f32 0.0, %v1281
        %v1283 = vpop.f32.mrb[0].mxu0
        %v1284 = vpop.f32.mrb[0].mxu0
        %v1285 = vadd.f32 0.0, %v1284
        %v1286 = vpop.f32.mrb[0].mxu0
        %1287 = vmatprep.mubr.bf16.mxu0 0
        %1288 = vmatmul.mubr.bf16.gmra.mrb[0].mxu0 %v1104
        %v1289 = vpop.f32.mrb[0].mxu0
        %v1290 = vadd.f32 0.0, %v1289
        %v1291 = vpop.f32.mrb[0].mxu0
        %v1292 = vpop.f32.mrb[0].mxu0
        %v1293 = vadd.f32 0.0, %v1292
        %v1294 = vpop.f32.mrb[0].mxu0
        %1295 = vmatprep.mubr.bf16.mxu0 0
        %1296 = vmatmul.mubr.bf16.gmra.mrb[0].mxu0 %v1107
        %v1297 = vpop.f32.mrb[0].mxu0
        %v1298 = vadd.f32 0.0, %v1297
        %v1299 = vpop.f32.mrb[0].mxu0
        %v1300 = vpop.f32.mrb[0].mxu0
        %v1301 = vadd.f32 0.0, %v1300
        %v1302 = vpop.f32.mrb[0].mxu0
        %1303 = vmatprep.mubr.bf16.mxu0 0
        %1304 = vmatmul.mubr.bf16.gmra.mrb[0].mxu0 %v1110
        %v1305 = vpop.f32.mrb[0].mxu0
        %v1306 = vadd.f32 0.0, %v1305
        %v1307 = vpop.f32.mrb[0].mxu0
        %v1308 = vpop.f32.mrb[0].mxu0
        %v1309 = vadd.f32 0.0, %v1308
        %v1310 = vpop.f32.mrb[0].mxu0
        %1311 = vmatprep.mubr.bf16.mxu0 0
        %1312 = vmatmul.mubr.bf16.gmra.mrb[0].mxu0 %v1113
        %v1313 = vpop.f32.mrb[0].mxu0
        %v1314 = vadd.f32 0.0, %v1313
        %v1315 = vpop.f32.mrb[0].mxu0
        %v1316 = vpop.f32.mrb[0].mxu0
        %v1317 = vadd.f32 0.0, %v1316
        %v1318 = vpop.f32.mrb[0].mxu0
        %1319 = vmatprep.mubr.bf16.mxu0 0
        %1320 = vmatmul.mubr.bf16.gmra.mrb[0].mxu0 %v1116
        %v1321 = vpop.f32.mrb[0].mxu0
        %v1322 = vadd.f32 0.0, %v1321
        %v1323 = vpop.f32.mrb[0].mxu0
        %v1324 = vpop.f32.mrb[0].mxu0
        %v1325 = vadd.f32 0.0, %v1324
        %v1326 = vpop.f32.mrb[0].mxu0
        %1327 = vdwg.mxu0
        %v1328 = vadd.f32 %v819, %v1153
        %v1329 = vadd.f32 %v821, %v1155
        %v1330 = vadd.f32 %v932, %v1266
        %v1331 = vadd.f32 %v823, %v1157
        %v1332 = vadd.f32 %v825, %v1159
        %v1333 = vadd.f32 %v935, %v1269
        %v1334 = vadd.f32 %v829, %v1163
        %v1335 = vadd.f32 %v831, %v1165
        %v1336 = vadd.f32 %v940, %v1274
        %v1337 = vadd.f32 %v833, %v1167
        %v1338 = vadd.f32 %v835, %v1169
        %v1339 = vadd.f32 %v943, %v1277
        %v1340 = vadd.f32 %v839, %v1173
        %v1341 = vadd.f32 %v841, %v1175
        %v1342 = vadd.f32 %v948, %v1282
        %v1343 = vadd.f32 %v843, %v1177
        %v1344 = vadd.f32 %v845, %v1179
        %v1345 = vadd.f32 %v951, %v1285
        %v1346 = vadd.f32 %v849, %v1183
        %v1347 = vadd.f32 %v851, %v1185
        %v1348 = vadd.f32 %v956, %v1290
        %v1349 = vadd.f32 %v853, %v1187
        %v1350 = vadd.f32 %v855, %v1189
        %v1351 = vadd.f32 %v959, %v1293
        %v1352 = vadd.f32 %v859, %v1193
        %v1353 = vadd.f32 %v861, %v1195
        %v1354 = vadd.f32 %v964, %v1298
        %v1355 = vadd.f32 %v863, %v1197
        %v1356 = vadd.f32 %v865, %v1199
        %v1357 = vadd.f32 %v967, %v1301
        %v1358 = vadd.f32 %v869, %v1203
        %v1359 = vadd.f32 %v871, %v1205
        %v1360 = vadd.f32 %v972, %v1306
        %v1361 = vadd.f32 %v873, %v1207
        %v1362 = vadd.f32 %v875, %v1209
        %v1363 = vadd.f32 %v975, %v1309
        %v1364 = vadd.f32 %v879, %v1213
        %v1365 = vadd.f32 %v881, %v1215
        %v1366 = vadd.f32 %v980, %v1314
        %v1367 = vadd.f32 %v883, %v1217
        %v1368 = vadd.f32 %v885, %v1219
        %v1369 = vadd.f32 %v983, %v1317
        %v1370 = vadd.f32 %v889, %v1223
        %v1371 = vadd.f32 %v891, %v1225
        %v1372 = vadd.f32 %v988, %v1322
        %v1373 = vadd.f32 %v893, %v1227
        %v1374 = vadd.f32 %v895, %v1229
        %v1375 = vadd.f32 %v991, %v1325
        %s1376 = scalar_lea.vmem %s1, 192
        %v1377 = vld [vmem:[%s1376] sm:$0xf]
        %v1378 = vld [vmem:[%s1376 + $0x4] sm:$0xf]
        %v1379 = vld [vmem:[%s1376 + $0x8] sm:$0xf]
        %v1380 = vld [vmem:[%s1376 + $0xc] sm:$0xf]
        %v1381 = vld [vmem:[%s1376 + $0x10] sm:$0xf]
        %v1382 = vld [vmem:[%s1376 + $0x14] sm:$0xf]
        %v1383 = vld [vmem:[%s1376 + $0x18] sm:$0xf]
        %v1384 = vld [vmem:[%s1376 + $0x1c] sm:$0xf]
        %v1385 = vld [vmem:[%s1376 + $0x20] sm:$0xf]
        %v1386 = vld [vmem:[%s1376 + $0x24] sm:$0xf]
        %v1387 = vld [vmem:[%s1376 + $0x28] sm:$0xf]
        %v1388 = vld [vmem:[%s1376 + $0x2c] sm:$0xf]
        %v1389 = vld [vmem:[%s1376 + $0x30] sm:$0xf]
        %v1390 = vld [vmem:[%s1376 + $0x34] sm:$0xf]
        %v1391 = vld [vmem:[%s1376 + $0x38] sm:$0xf]
        %v1392 = vld [vmem:[%s1376 + $0x3c] sm:$0xf]
        %v1409 = vunpack.c.l.b16 %v1377
        %v1410 = vunpack.c.l.b16 %v1378
        %v1411 = vunpack.c.l.b16 %v1379
        %v1412 = vunpack.c.l.b16 %v1380
        %v1413 = vunpack.c.l.b16 %v1381
        %v1414 = vunpack.c.l.b16 %v1382
        %v1415 = vunpack.c.l.b16 %v1383
        %v1416 = vunpack.c.l.b16 %v1384
        %v1417 = vunpack.c.l.b16 %v1385
        %v1418 = vunpack.c.l.b16 %v1386
        %v1419 = vunpack.c.l.b16 %v1387
        %v1420 = vunpack.c.l.b16 %v1388
        %v1421 = vunpack.c.l.b16 %v1389
        %v1422 = vunpack.c.l.b16 %v1390
        %v1423 = vunpack.c.l.b16 %v1391
        %v1424 = vunpack.c.l.b16 %v1392
        %v1425 = vpack.c.b16 %v1410, %v1409
        %v1426 = vpack.c.b16 %v1412, %v1411
        %v1427 = vpack.c.b16 %v1414, %v1413
        %v1428 = vpack.c.b16 %v1416, %v1415
        %v1429 = vpack.c.b16 %v1418, %v1417
        %v1430 = vpack.c.b16 %v1420, %v1419
        %v1431 = vpack.c.b16 %v1422, %v1421
        %v1432 = vpack.c.b16 %v1424, %v1423
        %1433 = vrot.lane.b32.xlu0 %v421, 110
        %v1434 = vpop.permute.xlu0 %1433
        %1435 = vrot.lane.b32.xlu0 %v422, 110
        %v1436 = vpop.permute.xlu0 %1435
        %1437 = vrot.lane.b32.xlu0 %v423, 110
        %v1438 = vpop.permute.xlu0 %1437
        %1439 = vrot.lane.b32.xlu0 %v424, 110
        %v1440 = vpop.permute.xlu0 %1439
        %1441 = vrot.lane.b32.xlu0 %v425, 110
        %v1442 = vpop.permute.xlu0 %1441
        %1443 = vrot.lane.b32.xlu0 %v426, 110
        %v1444 = vpop.permute.xlu0 %1443
        %1445 = vrot.lane.b32.xlu0 %v427, 110
        %v1446 = vpop.permute.xlu0 %1445
        %1447 = vrot.lane.b32.xlu0 %v428, 110
        %v1448 = vpop.permute.xlu0 %1447
        %1449 = vrot.lane.b32.xlu0 %v429, 110
        %v1450 = vpop.permute.xlu0 %1449
        %1451 = vrot.lane.b32.xlu0 %v430, 110
        %v1452 = vpop.permute.xlu0 %1451
        %1453 = vrot.lane.b32.xlu0 %v431, 110
        %v1454 = vpop.permute.xlu0 %1453
        %1455 = vrot.lane.b32.xlu0 %v432, 110
        %v1456 = vpop.permute.xlu0 %1455
        %vm1457 = vcmask 900096
        %v1458 = vsel %vm1457, %v1434, %v1436
        %v1459 = vsel %vm1457, %v1436, %v1438
        %v1460 = vsel %vm1457, %v1438, %v1440
        %v1461 = vsel %vm1457, %v1442, %v1444
        %v1462 = vsel %vm1457, %v1444, %v1446
        %v1463 = vsel %vm1457, %v1446, %v1448
        %v1464 = vsel %vm1457, %v1450, %v1452
        %v1465 = vsel %vm1457, %v1452, %v1454
        %v1466 = vsel %vm1457, %v1454, %v1456
        %v1477 = vsel %vm476, %v1425, 0
        %v1480 = vsel %vm476, %v1426, 0
        %v1483 = vsel %vm476, %v1427, 0
        %v1486 = vsel %vm476, %v1428, 0
        %v1489 = vsel %vm476, %v1429, 0
        %v1492 = vsel %vm476, %v1430, 0
        %v1495 = vsel %vm476, %v1431, 0
        %v1498 = vsel %vm476, %v1432, 0
        %1500 = vmatprep.subr.bf16.mxu0 %v1459
        %1501 = vmatpush1.bf16.msra.mxu0 %v1458
        %1502 = vmatprep.subr.bf16.mxu0 %v1462
        %1503 = vmatpush1.bf16.msra.mxu0 %v1461
        %1504 = vmatprep.subr.bf16.mxu0 %v1465
        %1505 = vmatpush1.bf16.msra.mxu0 %v1464
        %1506 = vmatprep.subr.bf16.mxu0 0
        %1507 = vmatpush1.bf16.msra.mxu0 0
        %1508 = vmatprep.subr.bf16.mxu0 0
        %1509 = vmatpush1.bf16.msra.mxu0 0
        %1510 = vmatprep.subr.bf16.mxu0 0
        %1511 = vmatpush1.bf16.msra.mxu0 0
        %1512 = vmatprep.subr.bf16.mxu0 0
        %1513 = vmatpush1.bf16.msra.mxu0 0
        %1514 = vmatprep.subr.bf16.mxu0 0
        %1515 = vmatpush1.bf16.msra.mxu0 0
        %1516 = vmatprep.subr.bf16.mxu0 0
        %1517 = vmatpush1.bf16.msra.mxu0 0
        %1518 = vmatprep.subr.bf16.mxu0 0
        %1519 = vmatpush1.bf16.msra.mxu0 0
        %1520 = vmatprep.subr.bf16.mxu0 0
        %1521 = vmatpush1.bf16.msra.mxu0 0
        %1522 = vmatprep.subr.bf16.mxu0 0
        %1523 = vmatpush1.bf16.msra.mxu0 0
        %1524 = vmatprep.subr.bf16.mxu0 0
        %1525 = vmatpush1.bf16.msra.mxu0 0
        %1526 = vmatprep.subr.bf16.mxu0 0
        %1527 = vmatpush1.bf16.msra.mxu0 0
        %1528 = vmatprep.subr.bf16.mxu0 0
        %1529 = vmatpush1.bf16.msra.mxu0 0
        %1530 = vmatprep.subr.bf16.mxu0 0
        %1531 = vmatpush1.bf16.msra.mxu0 0
        %1532 = vmatprep.mubr.bf16.mxu0 0
        %1533 = vmatmul.mubr.bf16.gmra.mrb[0].mxu0 %v1477
        %v1534 = vpop.f32.mrb[0].mxu0
        %v1535 = vadd.f32 0.0, %v1534
        %v1536 = vpop.f32.mrb[0].mxu0
        %v1537 = vadd.f32 0.0, %v1536
        %v1538 = vpop.f32.mrb[0].mxu0
        %v1539 = vadd.f32 0.0, %v1538
        %v1540 = vpop.f32.mrb[0].mxu0
        %v1541 = vadd.f32 0.0, %v1540
        %1542 = vmatprep.mubr.bf16.mxu0 0
        %1543 = vmatmul.mubr.bf16.gmra.mrb[0].mxu0 %v1480
        %v1544 = vpop.f32.mrb[0].mxu0
        %v1545 = vadd.f32 0.0, %v1544
        %v1546 = vpop.f32.mrb[0].mxu0
        %v1547 = vadd.f32 0.0, %v1546
        %v1548 = vpop.f32.mrb[0].mxu0
        %v1549 = vadd.f32 0.0, %v1548
        %v1550 = vpop.f32.mrb[0].mxu0
        %v1551 = vadd.f32 0.0, %v1550
        %1552 = vmatprep.mubr.bf16.mxu0 0
        %1553 = vmatmul.mubr.bf16.gmra.mrb[0].mxu0 %v1483
        %v1554 = vpop.f32.mrb[0].mxu0
        %v1555 = vadd.f32 0.0, %v1554
        %v1556 = vpop.f32.mrb[0].mxu0
        %v1557 = vadd.f32 0.0, %v1556
        %v1558 = vpop.f32.mrb[0].mxu0
        %v1559 = vadd.f32 0.0, %v1558
        %v1560 = vpop.f32.mrb[0].mxu0
        %v1561 = vadd.f32 0.0, %v1560
        %1562 = vmatprep.mubr.bf16.mxu0 0
        %1563 = vmatmul.mubr.bf16.gmra.mrb[0].mxu0 %v1486
        %v1564 = vpop.f32.mrb[0].mxu0
        %v1565 = vadd.f32 0.0, %v1564
        %v1566 = vpop.f32.mrb[0].mxu0
        %v1567 = vadd.f32 0.0, %v1566
        %v1568 = vpop.f32.mrb[0].mxu0
        %v1569 = vadd.f32 0.0, %v1568
        %v1570 = vpop.f32.mrb[0].mxu0
        %v1571 = vadd.f32 0.0, %v1570
        %1572 = vmatprep.mubr.bf16.mxu0 0
        %1573 = vmatmul.mubr.bf16.gmra.mrb[0].mxu0 %v1489
        %v1574 = vpop.f32.mrb[0].mxu0
        %v1575 = vadd.f32 0.0, %v1574
        %v1576 = vpop.f32.mrb[0].mxu0
        %v1577 = vadd.f32 0.0, %v1576
        %v1578 = vpop.f32.mrb[0].mxu0
        %v1579 = vadd.f32 0.0, %v1578
        %v1580 = vpop.f32.mrb[0].mxu0
        %v1581 = vadd.f32 0.0, %v1580
        %1582 = vmatprep.mubr.bf16.mxu0 0
        %1583 = vmatmul.mubr.bf16.gmra.mrb[0].mxu0 %v1492
        %v1584 = vpop.f32.mrb[0].mxu0
        %v1585 = vadd.f32 0.0, %v1584
        %v1586 = vpop.f32.mrb[0].mxu0
        %v1587 = vadd.f32 0.0, %v1586
        %v1588 = vpop.f32.mrb[0].mxu0
        %v1589 = vadd.f32 0.0, %v1588
        %v1590 = vpop.f32.mrb[0].mxu0
        %v1591 = vadd.f32 0.0, %v1590
        %1592 = vmatprep.mubr.bf16.mxu0 0
        %1593 = vmatmul.mubr.bf16.gmra.mrb[0].mxu0 %v1495
        %v1594 = vpop.f32.mrb[0].mxu0
        %v1595 = vadd.f32 0.0, %v1594
        %v1596 = vpop.f32.mrb[0].mxu0
        %v1597 = vadd.f32 0.0, %v1596
        %v1598 = vpop.f32.mrb[0].mxu0
        %v1599 = vadd.f32 0.0, %v1598
        %v1600 = vpop.f32.mrb[0].mxu0
        %v1601 = vadd.f32 0.0, %v1600
        %1602 = vmatprep.mubr.bf16.mxu0 0
        %1603 = vmatmul.mubr.bf16.gmra.mrb[0].mxu0 %v1498
        %v1604 = vpop.f32.mrb[0].mxu0
        %v1605 = vadd.f32 0.0, %v1604
        %v1606 = vpop.f32.mrb[0].mxu0
        %v1607 = vadd.f32 0.0, %v1606
        %v1608 = vpop.f32.mrb[0].mxu0
        %v1609 = vadd.f32 0.0, %v1608
        %v1610 = vpop.f32.mrb[0].mxu0
        %v1611 = vadd.f32 0.0, %v1610
        %1612 = vdwg.mxu0
        %1613 = vmatprep.subr.bf16.mxu0 0
        %1614 = vmatpush1.bf16.msra.mxu0 %v1460
        %1615 = vmatprep.subr.bf16.mxu0 0
        %1616 = vmatpush1.bf16.msra.mxu0 %v1463
        %1617 = vmatprep.subr.bf16.mxu0 0
        %1618 = vmatpush1.bf16.msra.mxu0 %v1466
        %1619 = vmatprep.subr.bf16.mxu0 0
        %1620 = vmatpush1.bf16.msra.mxu0 0
        %1621 = vmatprep.subr.bf16.mxu0 0
        %1622 = vmatpush1.bf16.msra.mxu0 0
        %1623 = vmatprep.subr.bf16.mxu0 0
        %1624 = vmatpush1.bf16.msra.mxu0 0
        %1625 = vmatprep.subr.bf16.mxu0 0
        %1626 = vmatpush1.bf16.msra.mxu0 0
        %1627 = vmatprep.subr.bf16.mxu0 0
        %1628 = vmatpush1.bf16.msra.mxu0 0
        %1629 = vmatprep.subr.bf16.mxu0 0
        %1630 = vmatpush1.bf16.msra.mxu0 0
        %1631 = vmatprep.subr.bf16.mxu0 0
        %1632 = vmatpush1.bf16.msra.mxu0 0
        %1633 = vmatprep.subr.bf16.mxu0 0
        %1634 = vmatpush1.bf16.msra.mxu0 0
        %1635 = vmatprep.subr.bf16.mxu0 0
        %1636 = vmatpush1.bf16.msra.mxu0 0
        %1637 = vmatprep.subr.bf16.mxu0 0
        %1638 = vmatpush1.bf16.msra.mxu0 0
        %1639 = vmatprep.subr.bf16.mxu0 0
        %1640 = vmatpush1.bf16.msra.mxu0 0
        %1641 = vmatprep.subr.bf16.mxu0 0
        %1642 = vmatpush1.bf16.msra.mxu0 0
        %1643 = vmatprep.subr.bf16.mxu0 0
        %1644 = vmatpush1.bf16.msra.mxu0 0
        %1645 = vmatprep.mubr.bf16.mxu0 0
        %1646 = vmatmul.mubr.bf16.gmra.mrb[0].mxu0 %v1477
        %v1647 = vpop.f32.mrb[0].mxu0
        %v1648 = vadd.f32 0.0, %v1647
        %v1649 = vpop.f32.mrb[0].mxu0
        %v1650 = vpop.f32.mrb[0].mxu0
        %v1651 = vadd.f32 0.0, %v1650
        %v1652 = vpop.f32.mrb[0].mxu0
        %1653 = vmatprep.mubr.bf16.mxu0 0
        %1654 = vmatmul.mubr.bf16.gmra.mrb[0].mxu0 %v1480
        %v1655 = vpop.f32.mrb[0].mxu0
        %v1656 = vadd.f32 0.0, %v1655
        %v1657 = vpop.f32.mrb[0].mxu0
        %v1658 = vpop.f32.mrb[0].mxu0
        %v1659 = vadd.f32 0.0, %v1658
        %v1660 = vpop.f32.mrb[0].mxu0
        %1661 = vmatprep.mubr.bf16.mxu0 0
        %1662 = vmatmul.mubr.bf16.gmra.mrb[0].mxu0 %v1483
        %v1663 = vpop.f32.mrb[0].mxu0
        %v1664 = vadd.f32 0.0, %v1663
        %v1665 = vpop.f32.mrb[0].mxu0
        %v1666 = vpop.f32.mrb[0].mxu0
        %v1667 = vadd.f32 0.0, %v1666
        %v1668 = vpop.f32.mrb[0].mxu0
        %1669 = vmatprep.mubr.bf16.mxu0 0
        %1670 = vmatmul.mubr.bf16.gmra.mrb[0].mxu0 %v1486
        %v1671 = vpop.f32.mrb[0].mxu0
        %v1672 = vadd.f32 0.0, %v1671
        %v1673 = vpop.f32.mrb[0].mxu0
        %v1674 = vpop.f32.mrb[0].mxu0
        %v1675 = vadd.f32 0.0, %v1674
        %v1676 = vpop.f32.mrb[0].mxu0
        %1677 = vmatprep.mubr.bf16.mxu0 0
        %1678 = vmatmul.mubr.bf16.gmra.mrb[0].mxu0 %v1489
        %v1679 = vpop.f32.mrb[0].mxu0
        %v1680 = vadd.f32 0.0, %v1679
        %v1681 = vpop.f32.mrb[0].mxu0
        %v1682 = vpop.f32.mrb[0].mxu0
        %v1683 = vadd.f32 0.0, %v1682
        %v1684 = vpop.f32.mrb[0].mxu0
        %1685 = vmatprep.mubr.bf16.mxu0 0
        %1686 = vmatmul.mubr.bf16.gmra.mrb[0].mxu0 %v1492
        %v1687 = vpop.f32.mrb[0].mxu0
        %v1688 = vadd.f32 0.0, %v1687
        %v1689 = vpop.f32.mrb[0].mxu0
        %v1690 = vpop.f32.mrb[0].mxu0
        %v1691 = vadd.f32 0.0, %v1690
        %v1692 = vpop.f32.mrb[0].mxu0
        %1693 = vmatprep.mubr.bf16.mxu0 0
        %1694 = vmatmul.mubr.bf16.gmra.mrb[0].mxu0 %v1495
        %v1695 = vpop.f32.mrb[0].mxu0
        %v1696 = vadd.f32 0.0, %v1695
        %v1697 = vpop.f32.mrb[0].mxu0
        %v1698 = vpop.f32.mrb[0].mxu0
        %v1699 = vadd.f32 0.0, %v1698
        %v1700 = vpop.f32.mrb[0].mxu0
        %1701 = vmatprep.mubr.bf16.mxu0 0
        %1702 = vmatmul.mubr.bf16.gmra.mrb[0].mxu0 %v1498
        %v1703 = vpop.f32.mrb[0].mxu0
        %v1704 = vadd.f32 0.0, %v1703
        %v1705 = vpop.f32.mrb[0].mxu0
        %v1706 = vpop.f32.mrb[0].mxu0
        %v1707 = vadd.f32 0.0, %v1706
        %v1708 = vpop.f32.mrb[0].mxu0
        %1709 = vdwg.mxu0
        %v1710 = vadd.f32 %v1328, %v1535
        %v1711 = vadd.f32 %v1329, %v1537
        %v1712 = vadd.f32 %v1330, %v1648
        %v1713 = vadd.f32 %v1331, %v1539
        %v1714 = vadd.f32 %v1332, %v1541
        %v1715 = vadd.f32 %v1333, %v1651
        %v1716 = vadd.f32 %v1334, %v1545
        %v1717 = vadd.f32 %v1335, %v1547
        %v1718 = vadd.f32 %v1336, %v1656
        %v1719 = vadd.f32 %v1337, %v1549
        %v1720 = vadd.f32 %v1338, %v1551
        %v1721 = vadd.f32 %v1339, %v1659
        %v1722 = vadd.f32 %v1340, %v1555
        %v1723 = vadd.f32 %v1341, %v1557
        %v1724 = vadd.f32 %v1342, %v1664
        %v1725 = vadd.f32 %v1343, %v1559
        %v1726 = vadd.f32 %v1344, %v1561
        %v1727 = vadd.f32 %v1345, %v1667
        %v1728 = vadd.f32 %v1346, %v1565
        %v1729 = vadd.f32 %v1347, %v1567
        %v1730 = vadd.f32 %v1348, %v1672
        %v1731 = vadd.f32 %v1349, %v1569
        %v1732 = vadd.f32 %v1350, %v1571
        %v1733 = vadd.f32 %v1351, %v1675
        %v1734 = vadd.f32 %v1352, %v1575
        %v1735 = vadd.f32 %v1353, %v1577
        %v1736 = vadd.f32 %v1354, %v1680
        %v1737 = vadd.f32 %v1355, %v1579
        %v1738 = vadd.f32 %v1356, %v1581
        %v1739 = vadd.f32 %v1357, %v1683
        %v1740 = vadd.f32 %v1358, %v1585
        %v1741 = vadd.f32 %v1359, %v1587
        %v1742 = vadd.f32 %v1360, %v1688
        %v1743 = vadd.f32 %v1361, %v1589
        %v1744 = vadd.f32 %v1362, %v1591
        %v1745 = vadd.f32 %v1363, %v1691
        %v1746 = vadd.f32 %v1364, %v1595
        %v1747 = vadd.f32 %v1365, %v1597
        %v1748 = vadd.f32 %v1366, %v1696
        %v1749 = vadd.f32 %v1367, %v1599
        %v1750 = vadd.f32 %v1368, %v1601
        %v1751 = vadd.f32 %v1369, %v1699
        %v1752 = vadd.f32 %v1370, %v1605
        %v1753 = vadd.f32 %v1371, %v1607
        %v1754 = vadd.f32 %v1372, %v1704
        %v1755 = vadd.f32 %v1373, %v1609
        %v1756 = vadd.f32 %v1374, %v1611
        %v1757 = vadd.f32 %v1375, %v1707
        %s1758 = scalar_lea.vmem %s1, 256
        %v1759 = vld [vmem:[%s1758] sm:$0xf]
        %v1760 = vld [vmem:[%s1758 + $0x4] sm:$0xf]
        %v1761 = vld [vmem:[%s1758 + $0x8] sm:$0xf]
        %v1762 = vld [vmem:[%s1758 + $0xc] sm:$0xf]
        %v1763 = vld [vmem:[%s1758 + $0x10] sm:$0xf]
        %v1764 = vld [vmem:[%s1758 + $0x14] sm:$0xf]
        %v1765 = vld [vmem:[%s1758 + $0x18] sm:$0xf]
        %v1766 = vld [vmem:[%s1758 + $0x1c] sm:$0xf]
        %v1767 = vld [vmem:[%s1758 + $0x20] sm:$0xf]
        %v1768 = vld [vmem:[%s1758 + $0x24] sm:$0xf]
        %v1769 = vld [vmem:[%s1758 + $0x28] sm:$0xf]
        %v1770 = vld [vmem:[%s1758 + $0x2c] sm:$0xf]
        %v1771 = vld [vmem:[%s1758 + $0x30] sm:$0xf]
        %v1772 = vld [vmem:[%s1758 + $0x34] sm:$0xf]
        %v1773 = vld [vmem:[%s1758 + $0x38] sm:$0xf]
        %v1774 = vld [vmem:[%s1758 + $0x3c] sm:$0xf]
        %v1791 = vunpack.c.l.b16 %v1759
        %v1792 = vunpack.c.l.b16 %v1760
        %v1793 = vunpack.c.l.b16 %v1761
        %v1794 = vunpack.c.l.b16 %v1762
        %v1795 = vunpack.c.l.b16 %v1763
        %v1796 = vunpack.c.l.b16 %v1764
        %v1797 = vunpack.c.l.b16 %v1765
        %v1798 = vunpack.c.l.b16 %v1766
        %v1799 = vunpack.c.l.b16 %v1767
        %v1800 = vunpack.c.l.b16 %v1768
        %v1801 = vunpack.c.l.b16 %v1769
        %v1802 = vunpack.c.l.b16 %v1770
        %v1803 = vunpack.c.l.b16 %v1771
        %v1804 = vunpack.c.l.b16 %v1772
        %v1805 = vunpack.c.l.b16 %v1773
        %v1806 = vunpack.c.l.b16 %v1774
        %v1807 = vpack.c.b16 %v1792, %v1791
        %v1808 = vpack.c.b16 %v1794, %v1793
        %v1809 = vpack.c.b16 %v1796, %v1795
        %v1810 = vpack.c.b16 %v1798, %v1797
        %v1811 = vpack.c.b16 %v1800, %v1799
        %v1812 = vpack.c.b16 %v1802, %v1801
        %v1813 = vpack.c.b16 %v1804, %v1803
        %v1814 = vpack.c.b16 %v1806, %v1805
        %1815 = vrot.lane.b32.xlu0 %v421, 109
        %v1816 = vpop.permute.xlu0 %1815
        %1817 = vrot.lane.b32.xlu0 %v422, 109
        %v1818 = vpop.permute.xlu0 %1817
        %1819 = vrot.lane.b32.xlu0 %v423, 109
        %v1820 = vpop.permute.xlu0 %1819
        %1821 = vrot.lane.b32.xlu0 %v424, 109
        %v1822 = vpop.permute.xlu0 %1821
        %1823 = vrot.lane.b32.xlu0 %v425, 109
        %v1824 = vpop.permute.xlu0 %1823
        %1825 = vrot.lane.b32.xlu0 %v426, 109
        %v1826 = vpop.permute.xlu0 %1825
        %1827 = vrot.lane.b32.xlu0 %v427, 109
        %v1828 = vpop.permute.xlu0 %1827
        %1829 = vrot.lane.b32.xlu0 %v428, 109
        %v1830 = vpop.permute.xlu0 %1829
        %1831 = vrot.lane.b32.xlu0 %v429, 109
        %v1832 = vpop.permute.xlu0 %1831
        %1833 = vrot.lane.b32.xlu0 %v430, 109
        %v1834 = vpop.permute.xlu0 %1833
        %1835 = vrot.lane.b32.xlu0 %v431, 109
        %v1836 = vpop.permute.xlu0 %1835
        %1837 = vrot.lane.b32.xlu0 %v432, 109
        %v1838 = vpop.permute.xlu0 %1837
        %vm1839 = vcmask 891904
        %v1840 = vsel %vm1839, %v1816, %v1818
        %v1841 = vsel %vm1839, %v1818, %v1820
        %v1842 = vsel %vm1839, %v1820, %v1822
        %v1843 = vsel %vm1839, %v1824, %v1826
        %v1844 = vsel %vm1839, %v1826, %v1828
        %v1845 = vsel %vm1839, %v1828, %v1830
        %v1846 = vsel %vm1839, %v1832, %v1834
        %v1847 = vsel %vm1839, %v1834, %v1836
        %v1848 = vsel %vm1839, %v1836, %v1838
        %v1859 = vsel %vm476, %v1807, 0
        %v1862 = vsel %vm476, %v1808, 0
        %v1865 = vsel %vm476, %v1809, 0
        %v1868 = vsel %vm476, %v1810, 0
        %v1871 = vsel %vm476, %v1811, 0
        %v1874 = vsel %vm476, %v1812, 0
        %v1877 = vsel %vm476, %v1813, 0
        %v1880 = vsel %vm476, %v1814, 0
        %1882 = vmatprep.subr.bf16.mxu0 %v1841
        %1883 = vmatpush1.bf16.msra.mxu0 %v1840
        %1884 = vmatprep.subr.bf16.mxu0 %v1844
        %1885 = vmatpush1.bf16.msra.mxu0 %v1843
        %1886 = vmatprep.subr.bf16.mxu0 %v1847
        %1887 = vmatpush1.bf16.msra.mxu0 %v1846
        %1888 = vmatprep.subr.bf16.mxu0 0
        %1889 = vmatpush1.bf16.msra.mxu0 0
        %1890 = vmatprep.subr.bf16.mxu0 0
        %1891 = vmatpush1.bf16.msra.mxu0 0
        %1892 = vmatprep.subr.bf16.mxu0 0
        %1893 = vmatpush1.bf16.msra.mxu0 0
        %1894 = vmatprep.subr.bf16.mxu0 0
        %1895 = vmatpush1.bf16.msra.mxu0 0
        %1896 = vmatprep.subr.bf16.mxu0 0
        %1897 = vmatpush1.bf16.msra.mxu0 0
        %1898 = vmatprep.subr.bf16.mxu0 0
        %1899 = vmatpush1.bf16.msra.mxu0 0
        %1900 = vmatprep.subr.bf16.mxu0 0
        %1901 = vmatpush1.bf16.msra.mxu0 0
        %1902 = vmatprep.subr.bf16.mxu0 0
        %1903 = vmatpush1.bf16.msra.mxu0 0
        %1904 = vmatprep.subr.bf16.mxu0 0
        %1905 = vmatpush1.bf16.msra.mxu0 0
        %1906 = vmatprep.subr.bf16.mxu0 0
        %1907 = vmatpush1.bf16.msra.mxu0 0
        %1908 = vmatprep.subr.bf16.mxu0 0
        %1909 = vmatpush1.bf16.msra.mxu0 0
        %1910 = vmatprep.subr.bf16.mxu0 0
        %1911 = vmatpush1.bf16.msra.mxu0 0
        %1912 = vmatprep.subr.bf16.mxu0 0
        %1913 = vmatpush1.bf16.msra.mxu0 0
        %1914 = vmatprep.mubr.bf16.mxu0 0
        %1915 = vmatmul.mubr.bf16.gmra.mrb[0].mxu0 %v1859
        %v1916 = vpop.f32.mrb[0].mxu0
        %v1917 = vadd.f32 0.0, %v1916
        %v1918 = vpop.f32.mrb[0].mxu0
        %v1919 = vadd.f32 0.0, %v1918
        %v1920 = vpop.f32.mrb[0].mxu0
        %v1921 = vadd.f32 0.0, %v1920
        %v1922 = vpop.f32.mrb[0].mxu0
        %v1923 = vadd.f32 0.0, %v1922
        %1924 = vmatprep.mubr.bf16.mxu0 0
        %1925 = vmatmul.mubr.bf16.gmra.mrb[0].mxu0 %v1862
        %v1926 = vpop.f32.mrb[0].mxu0
        %v1927 = vadd.f32 0.0, %v1926
        %v1928 = vpop.f32.mrb[0].mxu0
        %v1929 = vadd.f32 0.0, %v1928
        %v1930 = vpop.f32.mrb[0].mxu0
        %v1931 = vadd.f32 0.0, %v1930
        %v1932 = vpop.f32.mrb[0].mxu0
        %v1933 = vadd.f32 0.0, %v1932
        %1934 = vmatprep.mubr.bf16.mxu0 0
        %1935 = vmatmul.mubr.bf16.gmra.mrb[0].mxu0 %v1865
        %v1936 = vpop.f32.mrb[0].mxu0
        %v1937 = vadd.f32 0.0, %v1936
        %v1938 = vpop.f32.mrb[0].mxu0
        %v1939 = vadd.f32 0.0, %v1938
        %v1940 = vpop.f32.mrb[0].mxu0
        %v1941 = vadd.f32 0.0, %v1940
        %v1942 = vpop.f32.mrb[0].mxu0
        %v1943 = vadd.f32 0.0, %v1942
        %1944 = vmatprep.mubr.bf16.mxu0 0
        %1945 = vmatmul.mubr.bf16.gmra.mrb[0].mxu0 %v1868
        %v1946 = vpop.f32.mrb[0].mxu0
        %v1947 = vadd.f32 0.0, %v1946
        %v1948 = vpop.f32.mrb[0].mxu0
        %v1949 = vadd.f32 0.0, %v1948
        %v1950 = vpop.f32.mrb[0].mxu0
        %v1951 = vadd.f32 0.0, %v1950
        %v1952 = vpop.f32.mrb[0].mxu0
        %v1953 = vadd.f32 0.0, %v1952
        %1954 = vmatprep.mubr.bf16.mxu0 0
        %1955 = vmatmul.mubr.bf16.gmra.mrb[0].mxu0 %v1871
        %v1956 = vpop.f32.mrb[0].mxu0
        %v1957 = vadd.f32 0.0, %v1956
        %v1958 = vpop.f32.mrb[0].mxu0
        %v1959 = vadd.f32 0.0, %v1958
        %v1960 = vpop.f32.mrb[0].mxu0
        %v1961 = vadd.f32 0.0, %v1960
        %v1962 = vpop.f32.mrb[0].mxu0
        %v1963 = vadd.f32 0.0, %v1962
        %1964 = vmatprep.mubr.bf16.mxu0 0
        %1965 = vmatmul.mubr.bf16.gmra.mrb[0].mxu0 %v1874
        %v1966 = vpop.f32.mrb[0].mxu0
        %v1967 = vadd.f32 0.0, %v1966
        %v1968 = vpop.f32.mrb[0].mxu0
        %v1969 = vadd.f32 0.0, %v1968
        %v1970 = vpop.f32.mrb[0].mxu0
        %v1971 = vadd.f32 0.0, %v1970
        %v1972 = vpop.f32.mrb[0].mxu0
        %v1973 = vadd.f32 0.0, %v1972
        %1974 = vmatprep.mubr.bf16.mxu0 0
        %1975 = vmatmul.mubr.bf16.gmra.mrb[0].mxu0 %v1877
        %v1976 = vpop.f32.mrb[0].mxu0
        %v1977 = vadd.f32 0.0, %v1976
        %v1978 = vpop.f32.mrb[0].mxu0
        %v1979 = vadd.f32 0.0, %v1978
        %v1980 = vpop.f32.mrb[0].mxu0
        %v1981 = vadd.f32 0.0, %v1980
        %v1982 = vpop.f32.mrb[0].mxu0
        %v1983 = vadd.f32 0.0, %v1982
        %1984 = vmatprep.mubr.bf16.mxu0 0
        %1985 = vmatmul.mubr.bf16.gmra.mrb[0].mxu0 %v1880
        %v1986 = vpop.f32.mrb[0].mxu0
        %v1987 = vadd.f32 0.0, %v1986
        %v1988 = vpop.f32.mrb[0].mxu0
        %v1989 = vadd.f32 0.0, %v1988
        %v1990 = vpop.f32.mrb[0].mxu0
        %v1991 = vadd.f32 0.0, %v1990
        %v1992 = vpop.f32.mrb[0].mxu0
        %v1993 = vadd.f32 0.0, %v1992
        %1994 = vdwg.mxu0
        %1995 = vmatprep.subr.bf16.mxu0 0
        %1996 = vmatpush1.bf16.msra.mxu0 %v1842
        %1997 = vmatprep.subr.bf16.mxu0 0
        %1998 = vmatpush1.bf16.msra.mxu0 %v1845
        %1999 = vmatprep.subr.bf16.mxu0 0
        %2000 = vmatpush1.bf16.msra.mxu0 %v1848
        %2001 = vmatprep.subr.bf16.mxu0 0
        %2002 = vmatpush1.bf16.msra.mxu0 0
        %2003 = vmatprep.subr.bf16.mxu0 0
        %2004 = vmatpush1.bf16.msra.mxu0 0
        %2005 = vmatprep.subr.bf16.mxu0 0
        %2006 = vmatpush1.bf16.msra.mxu0 0
        %2007 = vmatprep.subr.bf16.mxu0 0
        %2008 = vmatpush1.bf16.msra.mxu0 0
        %2009 = vmatprep.subr.bf16.mxu0 0
        %2010 = vmatpush1.bf16.msra.mxu0 0
        %2011 = vmatprep.subr.bf16.mxu0 0
        %2012 = vmatpush1.bf16.msra.mxu0 0
        %2013 = vmatprep.subr.bf16.mxu0 0
        %2014 = vmatpush1.bf16.msra.mxu0 0
        %2015 = vmatprep.subr.bf16.mxu0 0
        %2016 = vmatpush1.bf16.msra.mxu0 0
        %2017 = vmatprep.subr.bf16.mxu0 0
        %2018 = vmatpush1.bf16.msra.mxu0 0
        %2019 = vmatprep.subr.bf16.mxu0 0
        %2020 = vmatpush1.bf16.msra.mxu0 0
        %2021 = vmatprep.subr.bf16.mxu0 0
        %2022 = vmatpush1.bf16.msra.mxu0 0
        %2023 = vmatprep.subr.bf16.mxu0 0
        %2024 = vmatpush1.bf16.msra.mxu0 0
        %2025 = vmatprep.subr.bf16.mxu0 0
        %2026 = vmatpush1.bf16.msra.mxu0 0
        %2027 = vmatprep.mubr.bf16.mxu0 0
        %2028 = vmatmul.mubr.bf16.gmra.mrb[0].mxu0 %v1859
        %v2029 = vpop.f32.mrb[0].mxu0
        %v2030 = vadd.f32 0.0, %v2029
        %v2031 = vpop.f32.mrb[0].mxu0
        %v2032 = vpop.f32.mrb[0].mxu0
        %v2033 = vadd.f32 0.0, %v2032
        %v2034 = vpop.f32.mrb[0].mxu0
        %2035 = vmatprep.mubr.bf16.mxu0 0
        %2036 = vmatmul.mubr.bf16.gmra.mrb[0].mxu0 %v1862
        %v2037 = vpop.f32.mrb[0].mxu0
        %v2038 = vadd.f32 0.0, %v2037
        %v2039 = vpop.f32.mrb[0].mxu0
        %v2040 = vpop.f32.mrb[0].mxu0
        %v2041 = vadd.f32 0.0, %v2040
        %v2042 = vpop.f32.mrb[0].mxu0
        %2043 = vmatprep.mubr.bf16.mxu0 0
        %2044 = vmatmul.mubr.bf16.gmra.mrb[0].mxu0 %v1865
        %v2045 = vpop.f32.mrb[0].mxu0
        %v2046 = vadd.f32 0.0, %v2045
        %v2047 = vpop.f32.mrb[0].mxu0
        %v2048 = vpop.f32.mrb[0].mxu0
        %v2049 = vadd.f32 0.0, %v2048
        %v2050 = vpop.f32.mrb[0].mxu0
        %2051 = vmatprep.mubr.bf16.mxu0 0
        %2052 = vmatmul.mubr.bf16.gmra.mrb[0].mxu0 %v1868
        %v2053 = vpop.f32.mrb[0].mxu0
        %v2054 = vadd.f32 0.0, %v2053
        %v2055 = vpop.f32.mrb[0].mxu0
        %v2056 = vpop.f32.mrb[0].mxu0
        %v2057 = vadd.f32 0.0, %v2056
        %v2058 = vpop.f32.mrb[0].mxu0
        %2059 = vmatprep.mubr.bf16.mxu0 0
        %2060 = vmatmul.mubr.bf16.gmra.mrb[0].mxu0 %v1871
        %v2061 = vpop.f32.mrb[0].mxu0
        %v2062 = vadd.f32 0.0, %v2061
        %v2063 = vpop.f32.mrb[0].mxu0
        %v2064 = vpop.f32.mrb[0].mxu0
        %v2065 = vadd.f32 0.0, %v2064
        %v2066 = vpop.f32.mrb[0].mxu0
        %2067 = vmatprep.mubr.bf16.mxu0 0
        %2068 = vmatmul.mubr.bf16.gmra.mrb[0].mxu0 %v1874
        %v2069 = vpop.f32.mrb[0].mxu0
        %v2070 = vadd.f32 0.0, %v2069
        %v2071 = vpop.f32.mrb[0].mxu0
        %v2072 = vpop.f32.mrb[0].mxu0
        %v2073 = vadd.f32 0.0, %v2072
        %v2074 = vpop.f32.mrb[0].mxu0
        %2075 = vmatprep.mubr.bf16.mxu0 0
        %2076 = vmatmul.mubr.bf16.gmra.mrb[0].mxu0 %v1877
        %v2077 = vpop.f32.mrb[0].mxu0
        %v2078 = vadd.f32 0.0, %v2077
        %v2079 = vpop.f32.mrb[0].mxu0
        %v2080 = vpop.f32.mrb[0].mxu0
        %v2081 = vadd.f32 0.0, %v2080
        %v2082 = vpop.f32.mrb[0].mxu0
        %2083 = vmatprep.mubr.bf16.mxu0 0
        %2084 = vmatmul.mubr.bf16.gmra.mrb[0].mxu0 %v1880
        %v2085 = vpop.f32.mrb[0].mxu0
        %v2086 = vadd.f32 0.0, %v2085
        %v2087 = vpop.f32.mrb[0].mxu0
        %v2088 = vpop.f32.mrb[0].mxu0
        %v2089 = vadd.f32 0.0, %v2088
        %v2090 = vpop.f32.mrb[0].mxu0
        %2091 = vdwg.mxu0
        %v2092 = vadd.f32 %v1710, %v1917
        %v2093 = vadd.f32 %v1711, %v1919
        %v2094 = vadd.f32 %v1712, %v2030
        %v2095 = vadd.f32 %v1713, %v1921
        %v2096 = vadd.f32 %v1714, %v1923
        %v2097 = vadd.f32 %v1715, %v2033
        %v2098 = vadd.f32 %v1716, %v1927
        %v2099 = vadd.f32 %v1717, %v1929
        %v2100 = vadd.f32 %v1718, %v2038
        %v2101 = vadd.f32 %v1719, %v1931
        %v2102 = vadd.f32 %v1720, %v1933
        %v2103 = vadd.f32 %v1721, %v2041
        %v2104 = vadd.f32 %v1722, %v1937
        %v2105 = vadd.f32 %v1723, %v1939
        %v2106 = vadd.f32 %v1724, %v2046
        %v2107 = vadd.f32 %v1725, %v1941
        %v2108 = vadd.f32 %v1726, %v1943
        %v2109 = vadd.f32 %v1727, %v2049
        %v2110 = vadd.f32 %v1728, %v1947
        %v2111 = vadd.f32 %v1729, %v1949
        %v2112 = vadd.f32 %v1730, %v2054
        %v2113 = vadd.f32 %v1731, %v1951
        %v2114 = vadd.f32 %v1732, %v1953
        %v2115 = vadd.f32 %v1733, %v2057
        %v2116 = vadd.f32 %v1734, %v1957
        %v2117 = vadd.f32 %v1735, %v1959
        %v2118 = vadd.f32 %v1736, %v2062
        %v2119 = vadd.f32 %v1737, %v1961
        %v2120 = vadd.f32 %v1738, %v1963
        %v2121 = vadd.f32 %v1739, %v2065
        %v2122 = vadd.f32 %v1740, %v1967
        %v2123 = vadd.f32 %v1741, %v1969
        %v2124 = vadd.f32 %v1742, %v2070
        %v2125 = vadd.f32 %v1743, %v1971
        %v2126 = vadd.f32 %v1744, %v1973
        %v2127 = vadd.f32 %v1745, %v2073
        %v2128 = vadd.f32 %v1746, %v1977
        %v2129 = vadd.f32 %v1747, %v1979
        %v2130 = vadd.f32 %v1748, %v2078
        %v2131 = vadd.f32 %v1749, %v1981
        %v2132 = vadd.f32 %v1750, %v1983
        %v2133 = vadd.f32 %v1751, %v2081
        %v2134 = vadd.f32 %v1752, %v1987
        %v2135 = vadd.f32 %v1753, %v1989
        %v2136 = vadd.f32 %v1754, %v2086
        %v2137 = vadd.f32 %v1755, %v1991
        %v2138 = vadd.f32 %v1756, %v1993
        %v2139 = vadd.f32 %v1757, %v2089
        %s2140 = scalar_lea.vmem %s1, 320
        %v2141 = vld [vmem:[%s2140] sm:$0xf]
        %v2142 = vld [vmem:[%s2140 + $0x4] sm:$0xf]
        %v2143 = vld [vmem:[%s2140 + $0x8] sm:$0xf]
        %v2144 = vld [vmem:[%s2140 + $0xc] sm:$0xf]
        %v2145 = vld [vmem:[%s2140 + $0x10] sm:$0xf]
        %v2146 = vld [vmem:[%s2140 + $0x14] sm:$0xf]
        %v2147 = vld [vmem:[%s2140 + $0x18] sm:$0xf]
        %v2148 = vld [vmem:[%s2140 + $0x1c] sm:$0xf]
        %v2149 = vld [vmem:[%s2140 + $0x20] sm:$0xf]
        %v2150 = vld [vmem:[%s2140 + $0x24] sm:$0xf]
        %v2151 = vld [vmem:[%s2140 + $0x28] sm:$0xf]
        %v2152 = vld [vmem:[%s2140 + $0x2c] sm:$0xf]
        %v2153 = vld [vmem:[%s2140 + $0x30] sm:$0xf]
        %v2154 = vld [vmem:[%s2140 + $0x34] sm:$0xf]
        %v2155 = vld [vmem:[%s2140 + $0x38] sm:$0xf]
        %v2156 = vld [vmem:[%s2140 + $0x3c] sm:$0xf]
        %v2173 = vunpack.c.l.b16 %v2141
        %v2174 = vunpack.c.l.b16 %v2142
        %v2175 = vunpack.c.l.b16 %v2143
        %v2176 = vunpack.c.l.b16 %v2144
        %v2177 = vunpack.c.l.b16 %v2145
        %v2178 = vunpack.c.l.b16 %v2146
        %v2179 = vunpack.c.l.b16 %v2147
        %v2180 = vunpack.c.l.b16 %v2148
        %v2181 = vunpack.c.l.b16 %v2149
        %v2182 = vunpack.c.l.b16 %v2150
        %v2183 = vunpack.c.l.b16 %v2151
        %v2184 = vunpack.c.l.b16 %v2152
        %v2185 = vunpack.c.l.b16 %v2153
        %v2186 = vunpack.c.l.b16 %v2154
        %v2187 = vunpack.c.l.b16 %v2155
        %v2188 = vunpack.c.l.b16 %v2156
        %v2189 = vpack.c.b16 %v2174, %v2173
        %v2190 = vpack.c.b16 %v2176, %v2175
        %v2191 = vpack.c.b16 %v2178, %v2177
        %v2192 = vpack.c.b16 %v2180, %v2179
        %v2193 = vpack.c.b16 %v2182, %v2181
        %v2194 = vpack.c.b16 %v2184, %v2183
        %v2195 = vpack.c.b16 %v2186, %v2185
        %v2196 = vpack.c.b16 %v2188, %v2187
        %2197 = vrot.lane.b32.xlu0 %v421, 108
        %v2198 = vpop.permute.xlu0 %2197
        %2199 = vrot.lane.b32.xlu0 %v422, 108
        %v2200 = vpop.permute.xlu0 %2199
        %2201 = vrot.lane.b32.xlu0 %v423, 108
        %v2202 = vpop.permute.xlu0 %2201
        %2203 = vrot.lane.b32.xlu0 %v424, 108
        %v2204 = vpop.permute.xlu0 %2203
        %2205 = vrot.lane.b32.xlu0 %v425, 108
        %v2206 = vpop.permute.xlu0 %2205
        %2207 = vrot.lane.b32.xlu0 %v426, 108
        %v2208 = vpop.permute.xlu0 %2207
        %2209 = vrot.lane.b32.xlu0 %v427, 108
        %v2210 = vpop.permute.xlu0 %2209
        %2211 = vrot.lane.b32.xlu0 %v428, 108
        %v2212 = vpop.permute.xlu0 %2211
        %2213 = vrot.lane.b32.xlu0 %v429, 108
        %v2214 = vpop.permute.xlu0 %2213
        %2215 = vrot.lane.b32.xlu0 %v430, 108
        %v2216 = vpop.permute.xlu0 %2215
        %2217 = vrot.lane.b32.xlu0 %v431, 108
        %v2218 = vpop.permute.xlu0 %2217
        %2219 = vrot.lane.b32.xlu0 %v432, 108
        %v2220 = vpop.permute.xlu0 %2219
        %vm2221 = vcmask 883712
        %v2222 = vsel %vm2221, %v2198, %v2200
        %v2223 = vsel %vm2221, %v2200, %v2202
        %v2224 = vsel %vm2221, %v2202, %v2204
        %v2225 = vsel %vm2221, %v2206, %v2208
        %v2226 = vsel %vm2221, %v2208, %v2210
        %v2227 = vsel %vm2221, %v2210, %v2212
        %v2228 = vsel %vm2221, %v2214, %v2216
        %v2229 = vsel %vm2221, %v2216, %v2218
        %v2230 = vsel %vm2221, %v2218, %v2220
        %v2241 = vsel %vm476, %v2189, 0
        %v2244 = vsel %vm476, %v2190, 0
        %v2247 = vsel %vm476, %v2191, 0
        %v2250 = vsel %vm476, %v2192, 0
        %v2253 = vsel %vm476, %v2193, 0
        %v2256 = vsel %vm476, %v2194, 0
        %v2259 = vsel %vm476, %v2195, 0
        %v2262 = vsel %vm476, %v2196, 0
        %2264 = vmatprep.subr.bf16.mxu0 %v2223
        %2265 = vmatpush1.bf16.msra.mxu0 %v2222
        %2266 = vmatprep.subr.bf16.mxu0 %v2226
        %2267 = vmatpush1.bf16.msra.mxu0 %v2225
        %2268 = vmatprep.subr.bf16.mxu0 %v2229
        %2269 = vmatpush1.bf16.msra.mxu0 %v2228
        %2270 = vmatprep.subr.bf16.mxu0 0
        %2271 = vmatpush1.bf16.msra.mxu0 0
        %2272 = vmatprep.subr.bf16.mxu0 0
        %2273 = vmatpush1.bf16.msra.mxu0 0
        %2274 = vmatprep.subr.bf16.mxu0 0
        %2275 = vmatpush1.bf16.msra.mxu0 0
        %2276 = vmatprep.subr.bf16.mxu0 0
        %2277 = vmatpush1.bf16.msra.mxu0 0
        %2278 = vmatprep.subr.bf16.mxu0 0
        %2279 = vmatpush1.bf16.msra.mxu0 0
        %2280 = vmatprep.subr.bf16.mxu0 0
        %2281 = vmatpush1.bf16.msra.mxu0 0
        %2282 = vmatprep.subr.bf16.mxu0 0
        %2283 = vmatpush1.bf16.msra.mxu0 0
        %2284 = vmatprep.subr.bf16.mxu0 0
        %2285 = vmatpush1.bf16.msra.mxu0 0
        %2286 = vmatprep.subr.bf16.mxu0 0
        %2287 = vmatpush1.bf16.msra.mxu0 0
        %2288 = vmatprep.subr.bf16.mxu0 0
        %2289 = vmatpush1.bf16.msra.mxu0 0
        %2290 = vmatprep.subr.bf16.mxu0 0
        %2291 = vmatpush1.bf16.msra.mxu0 0
        %2292 = vmatprep.subr.bf16.mxu0 0
        %2293 = vmatpush1.bf16.msra.mxu0 0
        %2294 = vmatprep.subr.bf16.mxu0 0
        %2295 = vmatpush1.bf16.msra.mxu0 0
        %2296 = vmatprep.mubr.bf16.mxu0 0
        %2297 = vmatmul.mubr.bf16.gmra.mrb[0].mxu0 %v2241
        %v2298 = vpop.f32.mrb[0].mxu0
        %v2299 = vadd.f32 0.0, %v2298
        %v2300 = vpop.f32.mrb[0].mxu0
        %v2301 = vadd.f32 0.0, %v2300
        %v2302 = vpop.f32.mrb[0].mxu0
        %v2303 = vadd.f32 0.0, %v2302
        %v2304 = vpop.f32.mrb[0].mxu0
        %v2305 = vadd.f32 0.0, %v2304
        %2306 = vmatprep.mubr.bf16.mxu0 0
        %2307 = vmatmul.mubr.bf16.gmra.mrb[0].mxu0 %v2244
        %v2308 = vpop.f32.mrb[0].mxu0
        %v2309 = vadd.f32 0.0, %v2308
        %v2310 = vpop.f32.mrb[0].mxu0
        %v2311 = vadd.f32 0.0, %v2310
        %v2312 = vpop.f32.mrb[0].mxu0
        %v2313 = vadd.f32 0.0, %v2312
        %v2314 = vpop.f32.mrb[0].mxu0
        %v2315 = vadd.f32 0.0, %v2314
        %2316 = vmatprep.mubr.bf16.mxu0 0
        %2317 = vmatmul.mubr.bf16.gmra.mrb[0].mxu0 %v2247
        %v2318 = vpop.f32.mrb[0].mxu0
        %v2319 = vadd.f32 0.0, %v2318
        %v2320 = vpop.f32.mrb[0].mxu0
        %v2321 = vadd.f32 0.0, %v2320
        %v2322 = vpop.f32.mrb[0].mxu0
        %v2323 = vadd.f32 0.0, %v2322
        %v2324 = vpop.f32.mrb[0].mxu0
        %v2325 = vadd.f32 0.0, %v2324
        %2326 = vmatprep.mubr.bf16.mxu0 0
        %2327 = vmatmul.mubr.bf16.gmra.mrb[0].mxu0 %v2250
        %v2328 = vpop.f32.mrb[0].mxu0
        %v2329 = vadd.f32 0.0, %v2328
        %v2330 = vpop.f32.mrb[0].mxu0
        %v2331 = vadd.f32 0.0, %v2330
        %v2332 = vpop.f32.mrb[0].mxu0
        %v2333 = vadd.f32 0.0, %v2332
        %v2334 = vpop.f32.mrb[0].mxu0
        %v2335 = vadd.f32 0.0, %v2334
        %2336 = vmatprep.mubr.bf16.mxu0 0
        %2337 = vmatmul.mubr.bf16.gmra.mrb[0].mxu0 %v2253
        %v2338 = vpop.f32.mrb[0].mxu0
        %v2339 = vadd.f32 0.0, %v2338
        %v2340 = vpop.f32.mrb[0].mxu0
        %v2341 = vadd.f32 0.0, %v2340
        %v2342 = vpop.f32.mrb[0].mxu0
        %v2343 = vadd.f32 0.0, %v2342
        %v2344 = vpop.f32.mrb[0].mxu0
        %v2345 = vadd.f32 0.0, %v2344
        %2346 = vmatprep.mubr.bf16.mxu0 0
        %2347 = vmatmul.mubr.bf16.gmra.mrb[0].mxu0 %v2256
        %v2348 = vpop.f32.mrb[0].mxu0
        %v2349 = vadd.f32 0.0, %v2348
        %v2350 = vpop.f32.mrb[0].mxu0
        %v2351 = vadd.f32 0.0, %v2350
        %v2352 = vpop.f32.mrb[0].mxu0
        %v2353 = vadd.f32 0.0, %v2352
        %v2354 = vpop.f32.mrb[0].mxu0
        %v2355 = vadd.f32 0.0, %v2354
        %2356 = vmatprep.mubr.bf16.mxu0 0
        %2357 = vmatmul.mubr.bf16.gmra.mrb[0].mxu0 %v2259
        %v2358 = vpop.f32.mrb[0].mxu0
        %v2359 = vadd.f32 0.0, %v2358
        %v2360 = vpop.f32.mrb[0].mxu0
        %v2361 = vadd.f32 0.0, %v2360
        %v2362 = vpop.f32.mrb[0].mxu0
        %v2363 = vadd.f32 0.0, %v2362
        %v2364 = vpop.f32.mrb[0].mxu0
        %v2365 = vadd.f32 0.0, %v2364
        %2366 = vmatprep.mubr.bf16.mxu0 0
        %2367 = vmatmul.mubr.bf16.gmra.mrb[0].mxu0 %v2262
        %v2368 = vpop.f32.mrb[0].mxu0
        %v2369 = vadd.f32 0.0, %v2368
        %v2370 = vpop.f32.mrb[0].mxu0
        %v2371 = vadd.f32 0.0, %v2370
        %v2372 = vpop.f32.mrb[0].mxu0
        %v2373 = vadd.f32 0.0, %v2372
        %v2374 = vpop.f32.mrb[0].mxu0
        %v2375 = vadd.f32 0.0, %v2374
        %2376 = vdwg.mxu0
        %2377 = vmatprep.subr.bf16.mxu0 0
        %2378 = vmatpush1.bf16.msra.mxu0 %v2224
        %2379 = vmatprep.subr.bf16.mxu0 0
        %2380 = vmatpush1.bf16.msra.mxu0 %v2227
        %2381 = vmatprep.subr.bf16.mxu0 0
        %2382 = vmatpush1.bf16.msra.mxu0 %v2230
        %2383 = vmatprep.subr.bf16.mxu0 0
        %2384 = vmatpush1.bf16.msra.mxu0 0
        %2385 = vmatprep.subr.bf16.mxu0 0
        %2386 = vmatpush1.bf16.msra.mxu0 0
        %2387 = vmatprep.subr.bf16.mxu0 0
        %2388 = vmatpush1.bf16.msra.mxu0 0
        %2389 = vmatprep.subr.bf16.mxu0 0
        %2390 = vmatpush1.bf16.msra.mxu0 0
        %2391 = vmatprep.subr.bf16.mxu0 0
        %2392 = vmatpush1.bf16.msra.mxu0 0
        %2393 = vmatprep.subr.bf16.mxu0 0
        %2394 = vmatpush1.bf16.msra.mxu0 0
        %2395 = vmatprep.subr.bf16.mxu0 0
        %2396 = vmatpush1.bf16.msra.mxu0 0
        %2397 = vmatprep.subr.bf16.mxu0 0
        %2398 = vmatpush1.bf16.msra.mxu0 0
        %2399 = vmatprep.subr.bf16.mxu0 0
        %2400 = vmatpush1.bf16.msra.mxu0 0
        %2401 = vmatprep.subr.bf16.mxu0 0
        %2402 = vmatpush1.bf16.msra.mxu0 0
        %2403 = vmatprep.subr.bf16.mxu0 0
        %2404 = vmatpush1.bf16.msra.mxu0 0
        %2405 = vmatprep.subr.bf16.mxu0 0
        %2406 = vmatpush1.bf16.msra.mxu0 0
        %2407 = vmatprep.subr.bf16.mxu0 0
        %2408 = vmatpush1.bf16.msra.mxu0 0
        %2409 = vmatprep.mubr.bf16.mxu0 0
        %2410 = vmatmul.mubr.bf16.gmra.mrb[0].mxu0 %v2241
        %v2411 = vpop.f32.mrb[0].mxu0
        %v2412 = vadd.f32 0.0, %v2411
        %v2413 = vpop.f32.mrb[0].mxu0
        %v2414 = vpop.f32.mrb[0].mxu0
        %v2415 = vadd.f32 0.0, %v2414
        %v2416 = vpop.f32.mrb[0].mxu0
        %2417 = vmatprep.mubr.bf16.mxu0 0
        %2418 = vmatmul.mubr.bf16.gmra.mrb[0].mxu0 %v2244
        %v2419 = vpop.f32.mrb[0].mxu0
        %v2420 = vadd.f32 0.0, %v2419
        %v2421 = vpop.f32.mrb[0].mxu0
        %v2422 = vpop.f32.mrb[0].mxu0
        %v2423 = vadd.f32 0.0, %v2422
        %v2424 = vpop.f32.mrb[0].mxu0
        %2425 = vmatprep.mubr.bf16.mxu0 0
        %2426 = vmatmul.mubr.bf16.gmra.mrb[0].mxu0 %v2247
        %v2427 = vpop.f32.mrb[0].mxu0
        %v2428 = vadd.f32 0.0, %v2427
        %v2429 = vpop.f32.mrb[0].mxu0
        %v2430 = vpop.f32.mrb[0].mxu0
        %v2431 = vadd.f32 0.0, %v2430
        %v2432 = vpop.f32.mrb[0].mxu0
        %2433 = vmatprep.mubr.bf16.mxu0 0
        %2434 = vmatmul.mubr.bf16.gmra.mrb[0].mxu0 %v2250
        %v2435 = vpop.f32.mrb[0].mxu0
        %v2436 = vadd.f32 0.0, %v2435
        %v2437 = vpop.f32.mrb[0].mxu0
        %v2438 = vpop.f32.mrb[0].mxu0
        %v2439 = vadd.f32 0.0, %v2438
        %v2440 = vpop.f32.mrb[0].mxu0
        %2441 = vmatprep.mubr.bf16.mxu0 0
        %2442 = vmatmul.mubr.bf16.gmra.mrb[0].mxu0 %v2253
        %v2443 = vpop.f32.mrb[0].mxu0
        %v2444 = vadd.f32 0.0, %v2443
        %v2445 = vpop.f32.mrb[0].mxu0
        %v2446 = vpop.f32.mrb[0].mxu0
        %v2447 = vadd.f32 0.0, %v2446
        %v2448 = vpop.f32.mrb[0].mxu0
        %2449 = vmatprep.mubr.bf16.mxu0 0
        %2450 = vmatmul.mubr.bf16.gmra.mrb[0].mxu0 %v2256
        %v2451 = vpop.f32.mrb[0].mxu0
        %v2452 = vadd.f32 0.0, %v2451
        %v2453 = vpop.f32.mrb[0].mxu0
        %v2454 = vpop.f32.mrb[0].mxu0
        %v2455 = vadd.f32 0.0, %v2454
        %v2456 = vpop.f32.mrb[0].mxu0
        %2457 = vmatprep.mubr.bf16.mxu0 0
        %2458 = vmatmul.mubr.bf16.gmra.mrb[0].mxu0 %v2259
        %v2459 = vpop.f32.mrb[0].mxu0
        %v2460 = vadd.f32 0.0, %v2459
        %v2461 = vpop.f32.mrb[0].mxu0
        %v2462 = vpop.f32.mrb[0].mxu0
        %v2463 = vadd.f32 0.0, %v2462
        %v2464 = vpop.f32.mrb[0].mxu0
        %2465 = vmatprep.mubr.bf16.mxu0 0
        %2466 = vmatmul.mubr.bf16.gmra.mrb[0].mxu0 %v2262
        %v2467 = vpop.f32.mrb[0].mxu0
        %v2468 = vadd.f32 0.0, %v2467
        %v2469 = vpop.f32.mrb[0].mxu0
        %v2470 = vpop.f32.mrb[0].mxu0
        %v2471 = vadd.f32 0.0, %v2470
        %v2472 = vpop.f32.mrb[0].mxu0
        %2473 = vdwg.mxu0
        %v2474 = vadd.f32 %v2092, %v2299
        %v2475 = vadd.f32 %v2093, %v2301
        %v2476 = vadd.f32 %v2094, %v2412
        %v2477 = vadd.f32 %v2095, %v2303
        %v2478 = vadd.f32 %v2096, %v2305
        %v2479 = vadd.f32 %v2097, %v2415
        %v2480 = vadd.f32 %v2098, %v2309
        %v2481 = vadd.f32 %v2099, %v2311
        %v2482 = vadd.f32 %v2100, %v2420
        %v2483 = vadd.f32 %v2101, %v2313
        %v2484 = vadd.f32 %v2102, %v2315
        %v2485 = vadd.f32 %v2103, %v2423
        %v2486 = vadd.f32 %v2104, %v2319
        %v2487 = vadd.f32 %v2105, %v2321
        %v2488 = vadd.f32 %v2106, %v2428
        %v2489 = vadd.f32 %v2107, %v2323
        %v2490 = vadd.f32 %v2108, %v2325
        %v2491 = vadd.f32 %v2109, %v2431
        %v2492 = vadd.f32 %v2110, %v2329
        %v2493 = vadd.f32 %v2111, %v2331
        %v2494 = vadd.f32 %v2112, %v2436
        %v2495 = vadd.f32 %v2113, %v2333
        %v2496 = vadd.f32 %v2114, %v2335
        %v2497 = vadd.f32 %v2115, %v2439
        %v2498 = vadd.f32 %v2116, %v2339
        %v2499 = vadd.f32 %v2117, %v2341
        %v2500 = vadd.f32 %v2118, %v2444
        %v2501 = vadd.f32 %v2119, %v2343
        %v2502 = vadd.f32 %v2120, %v2345
        %v2503 = vadd.f32 %v2121, %v2447
        %v2504 = vadd.f32 %v2122, %v2349
        %v2505 = vadd.f32 %v2123, %v2351
        %v2506 = vadd.f32 %v2124, %v2452
        %v2507 = vadd.f32 %v2125, %v2353
        %v2508 = vadd.f32 %v2126, %v2355
        %v2509 = vadd.f32 %v2127, %v2455
        %v2510 = vadd.f32 %v2128, %v2359
        %v2511 = vadd.f32 %v2129, %v2361
        %v2512 = vadd.f32 %v2130, %v2460
        %v2513 = vadd.f32 %v2131, %v2363
        %v2514 = vadd.f32 %v2132, %v2365
        %v2515 = vadd.f32 %v2133, %v2463
        %v2516 = vadd.f32 %v2134, %v2369
        %v2517 = vadd.f32 %v2135, %v2371
        %v2518 = vadd.f32 %v2136, %v2468
        %v2519 = vadd.f32 %v2137, %v2373
        %v2520 = vadd.f32 %v2138, %v2375
        %v2521 = vadd.f32 %v2139, %v2471
        %s2522 = scalar_lea.vmem %s1, 384
        %v2523 = vld [vmem:[%s2522] sm:$0xf]
        %v2524 = vld [vmem:[%s2522 + $0x4] sm:$0xf]
        %v2525 = vld [vmem:[%s2522 + $0x8] sm:$0xf]
        %v2526 = vld [vmem:[%s2522 + $0xc] sm:$0xf]
        %v2527 = vld [vmem:[%s2522 + $0x10] sm:$0xf]
        %v2528 = vld [vmem:[%s2522 + $0x14] sm:$0xf]
        %v2529 = vld [vmem:[%s2522 + $0x18] sm:$0xf]
        %v2530 = vld [vmem:[%s2522 + $0x1c] sm:$0xf]
        %v2531 = vld [vmem:[%s2522 + $0x20] sm:$0xf]
        %v2532 = vld [vmem:[%s2522 + $0x24] sm:$0xf]
        %v2533 = vld [vmem:[%s2522 + $0x28] sm:$0xf]
        %v2534 = vld [vmem:[%s2522 + $0x2c] sm:$0xf]
        %v2535 = vld [vmem:[%s2522 + $0x30] sm:$0xf]
        %v2536 = vld [vmem:[%s2522 + $0x34] sm:$0xf]
        %v2537 = vld [vmem:[%s2522 + $0x38] sm:$0xf]
        %v2538 = vld [vmem:[%s2522 + $0x3c] sm:$0xf]
        %v2555 = vunpack.c.l.b16 %v2523
        %v2556 = vunpack.c.l.b16 %v2524
        %v2557 = vunpack.c.l.b16 %v2525
        %v2558 = vunpack.c.l.b16 %v2526
        %v2559 = vunpack.c.l.b16 %v2527
        %v2560 = vunpack.c.l.b16 %v2528
        %v2561 = vunpack.c.l.b16 %v2529
        %v2562 = vunpack.c.l.b16 %v2530
        %v2563 = vunpack.c.l.b16 %v2531
        %v2564 = vunpack.c.l.b16 %v2532
        %v2565 = vunpack.c.l.b16 %v2533
        %v2566 = vunpack.c.l.b16 %v2534
        %v2567 = vunpack.c.l.b16 %v2535
        %v2568 = vunpack.c.l.b16 %v2536
        %v2569 = vunpack.c.l.b16 %v2537
        %v2570 = vunpack.c.l.b16 %v2538
        %v2571 = vpack.c.b16 %v2556, %v2555
        %v2572 = vpack.c.b16 %v2558, %v2557
        %v2573 = vpack.c.b16 %v2560, %v2559
        %v2574 = vpack.c.b16 %v2562, %v2561
        %v2575 = vpack.c.b16 %v2564, %v2563
        %v2576 = vpack.c.b16 %v2566, %v2565
        %v2577 = vpack.c.b16 %v2568, %v2567
        %v2578 = vpack.c.b16 %v2570, %v2569
        %2579 = vrot.lane.b32.xlu0 %v421, 92
        %v2580 = vpop.permute.xlu0 %2579
        %2581 = vrot.lane.b32.xlu0 %v422, 92
        %v2582 = vpop.permute.xlu0 %2581
        %2583 = vrot.lane.b32.xlu0 %v423, 92
        %v2584 = vpop.permute.xlu0 %2583
        %2585 = vrot.lane.b32.xlu0 %v424, 92
        %v2586 = vpop.permute.xlu0 %2585
        %2587 = vrot.lane.b32.xlu0 %v425, 92
        %v2588 = vpop.permute.xlu0 %2587
        %2589 = vrot.lane.b32.xlu0 %v426, 92
        %v2590 = vpop.permute.xlu0 %2589
        %2591 = vrot.lane.b32.xlu0 %v427, 92
        %v2592 = vpop.permute.xlu0 %2591
        %2593 = vrot.lane.b32.xlu0 %v428, 92
        %v2594 = vpop.permute.xlu0 %2593
        %2595 = vrot.lane.b32.xlu0 %v429, 92
        %v2596 = vpop.permute.xlu0 %2595
        %2597 = vrot.lane.b32.xlu0 %v430, 92
        %v2598 = vpop.permute.xlu0 %2597
        %2599 = vrot.lane.b32.xlu0 %v431, 92
        %v2600 = vpop.permute.xlu0 %2599
        %2601 = vrot.lane.b32.xlu0 %v432, 92
        %v2602 = vpop.permute.xlu0 %2601
        %vm2603 = vcmask 752640
        %v2604 = vsel %vm2603, %v2580, %v2582
        %v2605 = vsel %vm2603, %v2582, %v2584
        %v2606 = vsel %vm2603, %v2584, %v2586
        %v2607 = vsel %vm2603, %v2588, %v2590
        %v2608 = vsel %vm2603, %v2590, %v2592
        %v2609 = vsel %vm2603, %v2592, %v2594
        %v2610 = vsel %vm2603, %v2596, %v2598
        %v2611 = vsel %vm2603, %v2598, %v2600
        %v2612 = vsel %vm2603, %v2600, %v2602
        %v2623 = vsel %vm476, %v2571, 0
        %v2626 = vsel %vm476, %v2572, 0
        %v2629 = vsel %vm476, %v2573, 0
        %v2632 = vsel %vm476, %v2574, 0
        %v2635 = vsel %vm476, %v2575, 0
        %v2638 = vsel %vm476, %v2576, 0
        %v2641 = vsel %vm476, %v2577, 0
        %v2644 = vsel %vm476, %v2578, 0
        %2646 = vmatprep.subr.bf16.mxu0 %v2605
        %2647 = vmatpush1.bf16.msra.mxu0 %v2604
        %2648 = vmatprep.subr.bf16.mxu0 %v2608
        %2649 = vmatpush1.bf16.msra.mxu0 %v2607
        %2650 = vmatprep.subr.bf16.mxu0 %v2611
        %2651 = vmatpush1.bf16.msra.mxu0 %v2610
        %2652 = vmatprep.subr.bf16.mxu0 0
        %2653 = vmatpush1.bf16.msra.mxu0 0
        %2654 = vmatprep.subr.bf16.mxu0 0
        %2655 = vmatpush1.bf16.msra.mxu0 0
        %2656 = vmatprep.subr.bf16.mxu0 0
        %2657 = vmatpush1.bf16.msra.mxu0 0
        %2658 = vmatprep.subr.bf16.mxu0 0
        %2659 = vmatpush1.bf16.msra.mxu0 0
        %2660 = vmatprep.subr.bf16.mxu0 0
        %2661 = vmatpush1.bf16.msra.mxu0 0
        %2662 = vmatprep.subr.bf16.mxu0 0
        %2663 = vmatpush1.bf16.msra.mxu0 0
        %2664 = vmatprep.subr.bf16.mxu0 0
        %2665 = vmatpush1.bf16.msra.mxu0 0
        %2666 = vmatprep.subr.bf16.mxu0 0
        %2667 = vmatpush1.bf16.msra.mxu0 0
        %2668 = vmatprep.subr.bf16.mxu0 0
        %2669 = vmatpush1.bf16.msra.mxu0 0
        %2670 = vmatprep.subr.bf16.mxu0 0
        %2671 = vmatpush1.bf16.msra.mxu0 0
        %2672 = vmatprep.subr.bf16.mxu0 0
        %2673 = vmatpush1.bf16.msra.mxu0 0
        %2674 = vmatprep.subr.bf16.mxu0 0
        %2675 = vmatpush1.bf16.msra.mxu0 0
        %2676 = vmatprep.subr.bf16.mxu0 0
        %2677 = vmatpush1.bf16.msra.mxu0 0
        %2678 = vmatprep.mubr.bf16.mxu0 0
        %2679 = vmatmul.mubr.bf16.gmra.mrb[0].mxu0 %v2623
        %v2680 = vpop.f32.mrb[0].mxu0
        %v2681 = vadd.f32 0.0, %v2680
        %v2682 = vpop.f32.mrb[0].mxu0
        %v2683 = vadd.f32 0.0, %v2682
        %v2684 = vpop.f32.mrb[0].mxu0
        %v2685 = vadd.f32 0.0, %v2684
        %v2686 = vpop.f32.mrb[0].mxu0
        %v2687 = vadd.f32 0.0, %v2686
        %2688 = vmatprep.mubr.bf16.mxu0 0
        %2689 = vmatmul.mubr.bf16.gmra.mrb[0].mxu0 %v2626
        %v2690 = vpop.f32.mrb[0].mxu0
        %v2691 = vadd.f32 0.0, %v2690
        %v2692 = vpop.f32.mrb[0].mxu0
        %v2693 = vadd.f32 0.0, %v2692
        %v2694 = vpop.f32.mrb[0].mxu0
        %v2695 = vadd.f32 0.0, %v2694
        %v2696 = vpop.f32.mrb[0].mxu0
        %v2697 = vadd.f32 0.0, %v2696
        %2698 = vmatprep.mubr.bf16.mxu0 0
        %2699 = vmatmul.mubr.bf16.gmra.mrb[0].mxu0 %v2629
        %v2700 = vpop.f32.mrb[0].mxu0
        %v2701 = vadd.f32 0.0, %v2700
        %v2702 = vpop.f32.mrb[0].mxu0
        %v2703 = vadd.f32 0.0, %v2702
        %v2704 = vpop.f32.mrb[0].mxu0
        %v2705 = vadd.f32 0.0, %v2704
        %v2706 = vpop.f32.mrb[0].mxu0
        %v2707 = vadd.f32 0.0, %v2706
        %2708 = vmatprep.mubr.bf16.mxu0 0
        %2709 = vmatmul.mubr.bf16.gmra.mrb[0].mxu0 %v2632
        %v2710 = vpop.f32.mrb[0].mxu0
        %v2711 = vadd.f32 0.0, %v2710
        %v2712 = vpop.f32.mrb[0].mxu0
        %v2713 = vadd.f32 0.0, %v2712
        %v2714 = vpop.f32.mrb[0].mxu0
        %v2715 = vadd.f32 0.0, %v2714
        %v2716 = vpop.f32.mrb[0].mxu0
        %v2717 = vadd.f32 0.0, %v2716
        %2718 = vmatprep.mubr.bf16.mxu0 0
        %2719 = vmatmul.mubr.bf16.gmra.mrb[0].mxu0 %v2635
        %v2720 = vpop.f32.mrb[0].mxu0
        %v2721 = vadd.f32 0.0, %v2720
        %v2722 = vpop.f32.mrb[0].mxu0
        %v2723 = vadd.f32 0.0, %v2722
        %v2724 = vpop.f32.mrb[0].mxu0
        %v2725 = vadd.f32 0.0, %v2724
        %v2726 = vpop.f32.mrb[0].mxu0
        %v2727 = vadd.f32 0.0, %v2726
        %2728 = vmatprep.mubr.bf16.mxu0 0
        %2729 = vmatmul.mubr.bf16.gmra.mrb[0].mxu0 %v2638
        %v2730 = vpop.f32.mrb[0].mxu0
        %v2731 = vadd.f32 0.0, %v2730
        %v2732 = vpop.f32.mrb[0].mxu0
        %v2733 = vadd.f32 0.0, %v2732
        %v2734 = vpop.f32.mrb[0].mxu0
        %v2735 = vadd.f32 0.0, %v2734
        %v2736 = vpop.f32.mrb[0].mxu0
        %v2737 = vadd.f32 0.0, %v2736
        %2738 = vmatprep.mubr.bf16.mxu0 0
        %2739 = vmatmul.mubr.bf16.gmra.mrb[0].mxu0 %v2641
        %v2740 = vpop.f32.mrb[0].mxu0
        %v2741 = vadd.f32 0.0, %v2740
        %v2742 = vpop.f32.mrb[0].mxu0
        %v2743 = vadd.f32 0.0, %v2742
        %v2744 = vpop.f32.mrb[0].mxu0
        %v2745 = vadd.f32 0.0, %v2744
        %v2746 = vpop.f32.mrb[0].mxu0
        %v2747 = vadd.f32 0.0, %v2746
        %2748 = vmatprep.mubr.bf16.mxu0 0
        %2749 = vmatmul.mubr.bf16.gmra.mrb[0].mxu0 %v2644
        %v2750 = vpop.f32.mrb[0].mxu0
        %v2751 = vadd.f32 0.0, %v2750
        %v2752 = vpop.f32.mrb[0].mxu0
        %v2753 = vadd.f32 0.0, %v2752
        %v2754 = vpop.f32.mrb[0].mxu0
        %v2755 = vadd.f32 0.0, %v2754
        %v2756 = vpop.f32.mrb[0].mxu0
        %v2757 = vadd.f32 0.0, %v2756
        %2758 = vdwg.mxu0
        %2759 = vmatprep.subr.bf16.mxu0 0
        %2760 = vmatpush1.bf16.msra.mxu0 %v2606
        %2761 = vmatprep.subr.bf16.mxu0 0
        %2762 = vmatpush1.bf16.msra.mxu0 %v2609
        %2763 = vmatprep.subr.bf16.mxu0 0
        %2764 = vmatpush1.bf16.msra.mxu0 %v2612
        %2765 = vmatprep.subr.bf16.mxu0 0
        %2766 = vmatpush1.bf16.msra.mxu0 0
        %2767 = vmatprep.subr.bf16.mxu0 0
        %2768 = vmatpush1.bf16.msra.mxu0 0
        %2769 = vmatprep.subr.bf16.mxu0 0
        %2770 = vmatpush1.bf16.msra.mxu0 0
        %2771 = vmatprep.subr.bf16.mxu0 0
        %2772 = vmatpush1.bf16.msra.mxu0 0
        %2773 = vmatprep.subr.bf16.mxu0 0
        %2774 = vmatpush1.bf16.msra.mxu0 0
        %2775 = vmatprep.subr.bf16.mxu0 0
        %2776 = vmatpush1.bf16.msra.mxu0 0
        %2777 = vmatprep.subr.bf16.mxu0 0
        %2778 = vmatpush1.bf16.msra.mxu0 0
        %2779 = vmatprep.subr.bf16.mxu0 0
        %2780 = vmatpush1.bf16.msra.mxu0 0
        %2781 = vmatprep.subr.bf16.mxu0 0
        %2782 = vmatpush1.bf16.msra.mxu0 0
        %2783 = vmatprep.subr.bf16.mxu0 0
        %2784 = vmatpush1.bf16.msra.mxu0 0
        %2785 = vmatprep.subr.bf16.mxu0 0
        %2786 = vmatpush1.bf16.msra.mxu0 0
        %2787 = vmatprep.subr.bf16.mxu0 0
        %2788 = vmatpush1.bf16.msra.mxu0 0
        %2789 = vmatprep.subr.bf16.mxu0 0
        %2790 = vmatpush1.bf16.msra.mxu0 0
        %2791 = vmatprep.mubr.bf16.mxu0 0
        %2792 = vmatmul.mubr.bf16.gmra.mrb[0].mxu0 %v2623
        %v2793 = vpop.f32.mrb[0].mxu0
        %v2794 = vadd.f32 0.0, %v2793
        %v2795 = vpop.f32.mrb[0].mxu0
        %v2796 = vpop.f32.mrb[0].mxu0
        %v2797 = vadd.f32 0.0, %v2796
        %v2798 = vpop.f32.mrb[0].mxu0
        %2799 = vmatprep.mubr.bf16.mxu0 0
        %2800 = vmatmul.mubr.bf16.gmra.mrb[0].mxu0 %v2626
        %v2801 = vpop.f32.mrb[0].mxu0
        %v2802 = vadd.f32 0.0, %v2801
        %v2803 = vpop.f32.mrb[0].mxu0
        %v2804 = vpop.f32.mrb[0].mxu0
        %v2805 = vadd.f32 0.0, %v2804
        %v2806 = vpop.f32.mrb[0].mxu0
        %2807 = vmatprep.mubr.bf16.mxu0 0
        %2808 = vmatmul.mubr.bf16.gmra.mrb[0].mxu0 %v2629
        %v2809 = vpop.f32.mrb[0].mxu0
        %v2810 = vadd.f32 0.0, %v2809
        %v2811 = vpop.f32.mrb[0].mxu0
        %v2812 = vpop.f32.mrb[0].mxu0
        %v2813 = vadd.f32 0.0, %v2812
        %v2814 = vpop.f32.mrb[0].mxu0
        %2815 = vmatprep.mubr.bf16.mxu0 0
        %2816 = vmatmul.mubr.bf16.gmra.mrb[0].mxu0 %v2632
        %v2817 = vpop.f32.mrb[0].mxu0
        %v2818 = vadd.f32 0.0, %v2817
        %v2819 = vpop.f32.mrb[0].mxu0
        %v2820 = vpop.f32.mrb[0].mxu0
        %v2821 = vadd.f32 0.0, %v2820
        %v2822 = vpop.f32.mrb[0].mxu0
        %2823 = vmatprep.mubr.bf16.mxu0 0
        %2824 = vmatmul.mubr.bf16.gmra.mrb[0].mxu0 %v2635
        %v2825 = vpop.f32.mrb[0].mxu0
        %v2826 = vadd.f32 0.0, %v2825
        %v2827 = vpop.f32.mrb[0].mxu0
        %v2828 = vpop.f32.mrb[0].mxu0
        %v2829 = vadd.f32 0.0, %v2828
        %v2830 = vpop.f32.mrb[0].mxu0
        %2831 = vmatprep.mubr.bf16.mxu0 0
        %2832 = vmatmul.mubr.bf16.gmra.mrb[0].mxu0 %v2638
        %v2833 = vpop.f32.mrb[0].mxu0
        %v2834 = vadd.f32 0.0, %v2833
        %v2835 = vpop.f32.mrb[0].mxu0
        %v2836 = vpop.f32.mrb[0].mxu0
        %v2837 = vadd.f32 0.0, %v2836
        %v2838 = vpop.f32.mrb[0].mxu0
        %2839 = vmatprep.mubr.bf16.mxu0 0
        %2840 = vmatmul.mubr.bf16.gmra.mrb[0].mxu0 %v2641
        %v2841 = vpop.f32.mrb[0].mxu0
        %v2842 = vadd.f32 0.0, %v2841
        %v2843 = vpop.f32.mrb[0].mxu0
        %v2844 = vpop.f32.mrb[0].mxu0
        %v2845 = vadd.f32 0.0, %v2844
        %v2846 = vpop.f32.mrb[0].mxu0
        %2847 = vmatprep.mubr.bf16.mxu0 0
        %2848 = vmatmul.mubr.bf16.gmra.mrb[0].mxu0 %v2644
        %v2849 = vpop.f32.mrb[0].mxu0
        %v2850 = vadd.f32 0.0, %v2849
        %v2851 = vpop.f32.mrb[0].mxu0
        %v2852 = vpop.f32.mrb[0].mxu0
        %v2853 = vadd.f32 0.0, %v2852
        %v2854 = vpop.f32.mrb[0].mxu0
        %2855 = vdwg.mxu0
        %v2856 = vadd.f32 %v2474, %v2681
        %v2857 = vadd.f32 %v2475, %v2683
        %v2858 = vadd.f32 %v2476, %v2794
        %v2859 = vadd.f32 %v2477, %v2685
        %v2860 = vadd.f32 %v2478, %v2687
        %v2861 = vadd.f32 %v2479, %v2797
        %v2862 = vadd.f32 %v2480, %v2691
        %v2863 = vadd.f32 %v2481, %v2693
        %v2864 = vadd.f32 %v2482, %v2802
        %v2865 = vadd.f32 %v2483, %v2695
        %v2866 = vadd.f32 %v2484, %v2697
        %v2867 = vadd.f32 %v2485, %v2805
        %v2868 = vadd.f32 %v2486, %v2701
        %v2869 = vadd.f32 %v2487, %v2703
        %v2870 = vadd.f32 %v2488, %v2810
        %v2871 = vadd.f32 %v2489, %v2705
        %v2872 = vadd.f32 %v2490, %v2707
        %v2873 = vadd.f32 %v2491, %v2813
        %v2874 = vadd.f32 %v2492, %v2711
        %v2875 = vadd.f32 %v2493, %v2713
        %v2876 = vadd.f32 %v2494, %v2818
        %v2877 = vadd.f32 %v2495, %v2715
        %v2878 = vadd.f32 %v2496, %v2717
        %v2879 = vadd.f32 %v2497, %v2821
        %v2880 = vadd.f32 %v2498, %v2721
        %v2881 = vadd.f32 %v2499, %v2723
        %v2882 = vadd.f32 %v2500, %v2826
        %v2883 = vadd.f32 %v2501, %v2725
        %v2884 = vadd.f32 %v2502, %v2727
        %v2885 = vadd.f32 %v2503, %v2829
        %v2886 = vadd.f32 %v2504, %v2731
        %v2887 = vadd.f32 %v2505, %v2733
        %v2888 = vadd.f32 %v2506, %v2834
        %v2889 = vadd.f32 %v2507, %v2735
        %v2890 = vadd.f32 %v2508, %v2737
        %v2891 = vadd.f32 %v2509, %v2837
        %v2892 = vadd.f32 %v2510, %v2741
        %v2893 = vadd.f32 %v2511, %v2743
        %v2894 = vadd.f32 %v2512, %v2842
        %v2895 = vadd.f32 %v2513, %v2745
        %v2896 = vadd.f32 %v2514, %v2747
        %v2897 = vadd.f32 %v2515, %v2845
        %v2898 = vadd.f32 %v2516, %v2751
        %v2899 = vadd.f32 %v2517, %v2753
        %v2900 = vadd.f32 %v2518, %v2850
        %v2901 = vadd.f32 %v2519, %v2755
        %v2902 = vadd.f32 %v2520, %v2757
        %v2903 = vadd.f32 %v2521, %v2853
        %s2904 = scalar_lea.vmem %s1, 448
        %v2905 = vld [vmem:[%s2904] sm:$0xf]
        %v2906 = vld [vmem:[%s2904 + $0x4] sm:$0xf]
        %v2907 = vld [vmem:[%s2904 + $0x8] sm:$0xf]
        %v2908 = vld [vmem:[%s2904 + $0xc] sm:$0xf]
        %v2909 = vld [vmem:[%s2904 + $0x10] sm:$0xf]
        %v2910 = vld [vmem:[%s2904 + $0x14] sm:$0xf]
        %v2911 = vld [vmem:[%s2904 + $0x18] sm:$0xf]
        %v2912 = vld [vmem:[%s2904 + $0x1c] sm:$0xf]
        %v2913 = vld [vmem:[%s2904 + $0x20] sm:$0xf]
        %v2914 = vld [vmem:[%s2904 + $0x24] sm:$0xf]
        %v2915 = vld [vmem:[%s2904 + $0x28] sm:$0xf]
        %v2916 = vld [vmem:[%s2904 + $0x2c] sm:$0xf]
        %v2917 = vld [vmem:[%s2904 + $0x30] sm:$0xf]
        %v2918 = vld [vmem:[%s2904 + $0x34] sm:$0xf]
        %v2919 = vld [vmem:[%s2904 + $0x38] sm:$0xf]
        %v2920 = vld [vmem:[%s2904 + $0x3c] sm:$0xf]
        %v2937 = vunpack.c.l.b16 %v2905
        %v2938 = vunpack.c.l.b16 %v2906
        %v2939 = vunpack.c.l.b16 %v2907
        %v2940 = vunpack.c.l.b16 %v2908
        %v2941 = vunpack.c.l.b16 %v2909
        %v2942 = vunpack.c.l.b16 %v2910
        %v2943 = vunpack.c.l.b16 %v2911
        %v2944 = vunpack.c.l.b16 %v2912
        %v2945 = vunpack.c.l.b16 %v2913
        %v2946 = vunpack.c.l.b16 %v2914
        %v2947 = vunpack.c.l.b16 %v2915
        %v2948 = vunpack.c.l.b16 %v2916
        %v2949 = vunpack.c.l.b16 %v2917
        %v2950 = vunpack.c.l.b16 %v2918
        %v2951 = vunpack.c.l.b16 %v2919
        %v2952 = vunpack.c.l.b16 %v2920
        %v2953 = vpack.c.b16 %v2938, %v2937
        %v2954 = vpack.c.b16 %v2940, %v2939
        %v2955 = vpack.c.b16 %v2942, %v2941
        %v2956 = vpack.c.b16 %v2944, %v2943
        %v2957 = vpack.c.b16 %v2946, %v2945
        %v2958 = vpack.c.b16 %v2948, %v2947
        %v2959 = vpack.c.b16 %v2950, %v2949
        %v2960 = vpack.c.b16 %v2952, %v2951
        %2961 = vrot.lane.b32.xlu0 %v421, 91
        %v2962 = vpop.permute.xlu0 %2961
        %2963 = vrot.lane.b32.xlu0 %v422, 91
        %v2964 = vpop.permute.xlu0 %2963
        %2965 = vrot.lane.b32.xlu0 %v423, 91
        %v2966 = vpop.permute.xlu0 %2965
        %2967 = vrot.lane.b32.xlu0 %v424, 91
        %v2968 = vpop.permute.xlu0 %2967
        %2969 = vrot.lane.b32.xlu0 %v425, 91
        %v2970 = vpop.permute.xlu0 %2969
        %2971 = vrot.lane.b32.xlu0 %v426, 91
        %v2972 = vpop.permute.xlu0 %2971
        %2973 = vrot.lane.b32.xlu0 %v427, 91
        %v2974 = vpop.permute.xlu0 %2973
        %2975 = vrot.lane.b32.xlu0 %v428, 91
        %v2976 = vpop.permute.xlu0 %2975
        %2977 = vrot.lane.b32.xlu0 %v429, 91
        %v2978 = vpop.permute.xlu0 %2977
        %2979 = vrot.lane.b32.xlu0 %v430, 91
        %v2980 = vpop.permute.xlu0 %2979
        %2981 = vrot.lane.b32.xlu0 %v431, 91
        %v2982 = vpop.permute.xlu0 %2981
        %2983 = vrot.lane.b32.xlu0 %v432, 91
        %v2984 = vpop.permute.xlu0 %2983
        %vm2985 = vcmask 744448
        %v2986 = vsel %vm2985, %v2962, %v2964
        %v2987 = vsel %vm2985, %v2964, %v2966
        %v2988 = vsel %vm2985, %v2966, %v2968
        %v2989 = vsel %vm2985, %v2970, %v2972
        %v2990 = vsel %vm2985, %v2972, %v2974
        %v2991 = vsel %vm2985, %v2974, %v2976
        %v2992 = vsel %vm2985, %v2978, %v2980
        %v2993 = vsel %vm2985, %v2980, %v2982
        %v2994 = vsel %vm2985, %v2982, %v2984
        %v3005 = vsel %vm476, %v2953, 0
        %v3008 = vsel %vm476, %v2954, 0
        %v3011 = vsel %vm476, %v2955, 0
        %v3014 = vsel %vm476, %v2956, 0
        %v3017 = vsel %vm476, %v2957, 0
        %v3020 = vsel %vm476, %v2958, 0
        %v3023 = vsel %vm476, %v2959, 0
        %v3026 = vsel %vm476, %v2960, 0
        %3028 = vmatprep.subr.bf16.mxu0 %v2987
        %3029 = vmatpush1.bf16.msra.mxu0 %v2986
        %3030 = vmatprep.subr.bf16.mxu0 %v2990
        %3031 = vmatpush1.bf16.msra.mxu0 %v2989
        %3032 = vmatprep.subr.bf16.mxu0 %v2993
        %3033 = vmatpush1.bf16.msra.mxu0 %v2992
        %3034 = vmatprep.subr.bf16.mxu0 0
        %3035 = vmatpush1.bf16.msra.mxu0 0
        %3036 = vmatprep.subr.bf16.mxu0 0
        %3037 = vmatpush1.bf16.msra.mxu0 0
        %3038 = vmatprep.subr.bf16.mxu0 0
        %3039 = vmatpush1.bf16.msra.mxu0 0
        %3040 = vmatprep.subr.bf16.mxu0 0
        %3041 = vmatpush1.bf16.msra.mxu0 0
        %3042 = vmatprep.subr.bf16.mxu0 0
        %3043 = vmatpush1.bf16.msra.mxu0 0
        %3044 = vmatprep.subr.bf16.mxu0 0
        %3045 = vmatpush1.bf16.msra.mxu0 0
        %3046 = vmatprep.subr.bf16.mxu0 0
        %3047 = vmatpush1.bf16.msra.mxu0 0
        %3048 = vmatprep.subr.bf16.mxu0 0
        %3049 = vmatpush1.bf16.msra.mxu0 0
        %3050 = vmatprep.subr.bf16.mxu0 0
        %3051 = vmatpush1.bf16.msra.mxu0 0
        %3052 = vmatprep.subr.bf16.mxu0 0
        %3053 = vmatpush1.bf16.msra.mxu0 0
        %3054 = vmatprep.subr.bf16.mxu0 0
        %3055 = vmatpush1.bf16.msra.mxu0 0
        %3056 = vmatprep.subr.bf16.mxu0 0
        %3057 = vmatpush1.bf16.msra.mxu0 0
        %3058 = vmatprep.subr.bf16.mxu0 0
        %3059 = vmatpush1.bf16.msra.mxu0 0
        %3060 = vmatprep.mubr.bf16.mxu0 0
        %3061 = vmatmul.mubr.bf16.gmra.mrb[0].mxu0 %v3005
        %v3062 = vpop.f32.mrb[0].mxu0
        %v3063 = vadd.f32 0.0, %v3062
        %v3064 = vpop.f32.mrb[0].mxu0
        %v3065 = vadd.f32 0.0, %v3064
        %v3066 = vpop.f32.mrb[0].mxu0
        %v3067 = vadd.f32 0.0, %v3066
        %v3068 = vpop.f32.mrb[0].mxu0
        %v3069 = vadd.f32 0.0, %v3068
        %3070 = vmatprep.mubr.bf16.mxu0 0
        %3071 = vmatmul.mubr.bf16.gmra.mrb[0].mxu0 %v3008
        %v3072 = vpop.f32.mrb[0].mxu0
        %v3073 = vadd.f32 0.0, %v3072
        %v3074 = vpop.f32.mrb[0].mxu0
        %v3075 = vadd.f32 0.0, %v3074
        %v3076 = vpop.f32.mrb[0].mxu0
        %v3077 = vadd.f32 0.0, %v3076
        %v3078 = vpop.f32.mrb[0].mxu0
        %v3079 = vadd.f32 0.0, %v3078
        %3080 = vmatprep.mubr.bf16.mxu0 0
        %3081 = vmatmul.mubr.bf16.gmra.mrb[0].mxu0 %v3011
        %v3082 = vpop.f32.mrb[0].mxu0
        %v3083 = vadd.f32 0.0, %v3082
        %v3084 = vpop.f32.mrb[0].mxu0
        %v3085 = vadd.f32 0.0, %v3084
        %v3086 = vpop.f32.mrb[0].mxu0
        %v3087 = vadd.f32 0.0, %v3086
        %v3088 = vpop.f32.mrb[0].mxu0
        %v3089 = vadd.f32 0.0, %v3088
        %3090 = vmatprep.mubr.bf16.mxu0 0
        %3091 = vmatmul.mubr.bf16.gmra.mrb[0].mxu0 %v3014
        %v3092 = vpop.f32.mrb[0].mxu0
        %v3093 = vadd.f32 0.0, %v3092
        %v3094 = vpop.f32.mrb[0].mxu0
        %v3095 = vadd.f32 0.0, %v3094
        %v3096 = vpop.f32.mrb[0].mxu0
        %v3097 = vadd.f32 0.0, %v3096
        %v3098 = vpop.f32.mrb[0].mxu0
        %v3099 = vadd.f32 0.0, %v3098
        %3100 = vmatprep.mubr.bf16.mxu0 0
        %3101 = vmatmul.mubr.bf16.gmra.mrb[0].mxu0 %v3017
        %v3102 = vpop.f32.mrb[0].mxu0
        %v3103 = vadd.f32 0.0, %v3102
        %v3104 = vpop.f32.mrb[0].mxu0
        %v3105 = vadd.f32 0.0, %v3104
        %v3106 = vpop.f32.mrb[0].mxu0
        %v3107 = vadd.f32 0.0, %v3106
        %v3108 = vpop.f32.mrb[0].mxu0
        %v3109 = vadd.f32 0.0, %v3108
        %3110 = vmatprep.mubr.bf16.mxu0 0
        %3111 = vmatmul.mubr.bf16.gmra.mrb[0].mxu0 %v3020
        %v3112 = vpop.f32.mrb[0].mxu0
        %v3113 = vadd.f32 0.0, %v3112
        %v3114 = vpop.f32.mrb[0].mxu0
        %v3115 = vadd.f32 0.0, %v3114
        %v3116 = vpop.f32.mrb[0].mxu0
        %v3117 = vadd.f32 0.0, %v3116
        %v3118 = vpop.f32.mrb[0].mxu0
        %v3119 = vadd.f32 0.0, %v3118
        %3120 = vmatprep.mubr.bf16.mxu0 0
        %3121 = vmatmul.mubr.bf16.gmra.mrb[0].mxu0 %v3023
        %v3122 = vpop.f32.mrb[0].mxu0
        %v3123 = vadd.f32 0.0, %v3122
        %v3124 = vpop.f32.mrb[0].mxu0
        %v3125 = vadd.f32 0.0, %v3124
        %v3126 = vpop.f32.mrb[0].mxu0
        %v3127 = vadd.f32 0.0, %v3126
        %v3128 = vpop.f32.mrb[0].mxu0
        %v3129 = vadd.f32 0.0, %v3128
        %3130 = vmatprep.mubr.bf16.mxu0 0
        %3131 = vmatmul.mubr.bf16.gmra.mrb[0].mxu0 %v3026
        %v3132 = vpop.f32.mrb[0].mxu0
        %v3133 = vadd.f32 0.0, %v3132
        %v3134 = vpop.f32.mrb[0].mxu0
        %v3135 = vadd.f32 0.0, %v3134
        %v3136 = vpop.f32.mrb[0].mxu0
        %v3137 = vadd.f32 0.0, %v3136
        %v3138 = vpop.f32.mrb[0].mxu0
        %v3139 = vadd.f32 0.0, %v3138
        %3140 = vdwg.mxu0
        %3141 = vmatprep.subr.bf16.mxu0 0
        %3142 = vmatpush1.bf16.msra.mxu0 %v2988
        %3143 = vmatprep.subr.bf16.mxu0 0
        %3144 = vmatpush1.bf16.msra.mxu0 %v2991
        %3145 = vmatprep.subr.bf16.mxu0 0
        %3146 = vmatpush1.bf16.msra.mxu0 %v2994
        %3147 = vmatprep.subr.bf16.mxu0 0
        %3148 = vmatpush1.bf16.msra.mxu0 0
        %3149 = vmatprep.subr.bf16.mxu0 0
        %3150 = vmatpush1.bf16.msra.mxu0 0
        %3151 = vmatprep.subr.bf16.mxu0 0
        %3152 = vmatpush1.bf16.msra.mxu0 0
        %3153 = vmatprep.subr.bf16.mxu0 0
        %3154 = vmatpush1.bf16.msra.mxu0 0
        %3155 = vmatprep.subr.bf16.mxu0 0
        %3156 = vmatpush1.bf16.msra.mxu0 0
        %3157 = vmatprep.subr.bf16.mxu0 0
        %3158 = vmatpush1.bf16.msra.mxu0 0
        %3159 = vmatprep.subr.bf16.mxu0 0
        %3160 = vmatpush1.bf16.msra.mxu0 0
        %3161 = vmatprep.subr.bf16.mxu0 0
        %3162 = vmatpush1.bf16.msra.mxu0 0
        %3163 = vmatprep.subr.bf16.mxu0 0
        %3164 = vmatpush1.bf16.msra.mxu0 0
        %3165 = vmatprep.subr.bf16.mxu0 0
        %3166 = vmatpush1.bf16.msra.mxu0 0
        %3167 = vmatprep.subr.bf16.mxu0 0
        %3168 = vmatpush1.bf16.msra.mxu0 0
        %3169 = vmatprep.subr.bf16.mxu0 0
        %3170 = vmatpush1.bf16.msra.mxu0 0
        %3171 = vmatprep.subr.bf16.mxu0 0
        %3172 = vmatpush1.bf16.msra.mxu0 0
        %3173 = vmatprep.mubr.bf16.mxu0 0
        %3174 = vmatmul.mubr.bf16.gmra.mrb[0].mxu0 %v3005
        %v3175 = vpop.f32.mrb[0].mxu0
        %v3176 = vadd.f32 0.0, %v3175
        %v3177 = vpop.f32.mrb[0].mxu0
        %v3178 = vpop.f32.mrb[0].mxu0
        %v3179 = vadd.f32 0.0, %v3178
        %v3180 = vpop.f32.mrb[0].mxu0
        %3181 = vmatprep.mubr.bf16.mxu0 0
        %3182 = vmatmul.mubr.bf16.gmra.mrb[0].mxu0 %v3008
        %v3183 = vpop.f32.mrb[0].mxu0
        %v3184 = vadd.f32 0.0, %v3183
        %v3185 = vpop.f32.mrb[0].mxu0
        %v3186 = vpop.f32.mrb[0].mxu0
        %v3187 = vadd.f32 0.0, %v3186
        %v3188 = vpop.f32.mrb[0].mxu0
        %3189 = vmatprep.mubr.bf16.mxu0 0
        %3190 = vmatmul.mubr.bf16.gmra.mrb[0].mxu0 %v3011
        %v3191 = vpop.f32.mrb[0].mxu0
        %v3192 = vadd.f32 0.0, %v3191
        %v3193 = vpop.f32.mrb[0].mxu0
        %v3194 = vpop.f32.mrb[0].mxu0
        %v3195 = vadd.f32 0.0, %v3194
        %v3196 = vpop.f32.mrb[0].mxu0
        %3197 = vmatprep.mubr.bf16.mxu0 0
        %3198 = vmatmul.mubr.bf16.gmra.mrb[0].mxu0 %v3014
        %v3199 = vpop.f32.mrb[0].mxu0
        %v3200 = vadd.f32 0.0, %v3199
        %v3201 = vpop.f32.mrb[0].mxu0
        %v3202 = vpop.f32.mrb[0].mxu0
        %v3203 = vadd.f32 0.0, %v3202
        %v3204 = vpop.f32.mrb[0].mxu0
        %3205 = vmatprep.mubr.bf16.mxu0 0
        %3206 = vmatmul.mubr.bf16.gmra.mrb[0].mxu0 %v3017
        %v3207 = vpop.f32.mrb[0].mxu0
        %v3208 = vadd.f32 0.0, %v3207
        %v3209 = vpop.f32.mrb[0].mxu0
        %v3210 = vpop.f32.mrb[0].mxu0
        %v3211 = vadd.f32 0.0, %v3210
        %v3212 = vpop.f32.mrb[0].mxu0
        %3213 = vmatprep.mubr.bf16.mxu0 0
        %3214 = vmatmul.mubr.bf16.gmra.mrb[0].mxu0 %v3020
        %v3215 = vpop.f32.mrb[0].mxu0
        %v3216 = vadd.f32 0.0, %v3215
        %v3217 = vpop.f32.mrb[0].mxu0
        %v3218 = vpop.f32.mrb[0].mxu0
        %v3219 = vadd.f32 0.0, %v3218
        %v3220 = vpop.f32.mrb[0].mxu0
        %3221 = vmatprep.mubr.bf16.mxu0 0
        %3222 = vmatmul.mubr.bf16.gmra.mrb[0].mxu0 %v3023
        %v3223 = vpop.f32.mrb[0].mxu0
        %v3224 = vadd.f32 0.0, %v3223
        %v3225 = vpop.f32.mrb[0].mxu0
        %v3226 = vpop.f32.mrb[0].mxu0
        %v3227 = vadd.f32 0.0, %v3226
        %v3228 = vpop.f32.mrb[0].mxu0
        %3229 = vmatprep.mubr.bf16.mxu0 0
        %3230 = vmatmul.mubr.bf16.gmra.mrb[0].mxu0 %v3026
        %v3231 = vpop.f32.mrb[0].mxu0
        %v3232 = vadd.f32 0.0, %v3231
        %v3233 = vpop.f32.mrb[0].mxu0
        %v3234 = vpop.f32.mrb[0].mxu0
        %v3235 = vadd.f32 0.0, %v3234
        %v3236 = vpop.f32.mrb[0].mxu0
        %3237 = vdwg.mxu0
        %v3238 = vadd.f32 %v2856, %v3063
        %v3239 = vadd.f32 %v2857, %v3065
        %v3240 = vadd.f32 %v2858, %v3176
        %v3241 = vadd.f32 %v2859, %v3067
        %v3242 = vadd.f32 %v2860, %v3069
        %v3243 = vadd.f32 %v2861, %v3179
        %v3244 = vadd.f32 %v2862, %v3073
        %v3245 = vadd.f32 %v2863, %v3075
        %v3246 = vadd.f32 %v2864, %v3184
        %v3247 = vadd.f32 %v2865, %v3077
        %v3248 = vadd.f32 %v2866, %v3079
        %v3249 = vadd.f32 %v2867, %v3187
        %v3250 = vadd.f32 %v2868, %v3083
        %v3251 = vadd.f32 %v2869, %v3085
        %v3252 = vadd.f32 %v2870, %v3192
        %v3253 = vadd.f32 %v2871, %v3087
        %v3254 = vadd.f32 %v2872, %v3089
        %v3255 = vadd.f32 %v2873, %v3195
        %v3256 = vadd.f32 %v2874, %v3093
        %v3257 = vadd.f32 %v2875, %v3095
        %v3258 = vadd.f32 %v2876, %v3200
        %v3259 = vadd.f32 %v2877, %v3097
        %v3260 = vadd.f32 %v2878, %v3099
        %v3261 = vadd.f32 %v2879, %v3203
        %v3262 = vadd.f32 %v2880, %v3103
        %v3263 = vadd.f32 %v2881, %v3105
        %v3264 = vadd.f32 %v2882, %v3208
        %v3265 = vadd.f32 %v2883, %v3107
        %v3266 = vadd.f32 %v2884, %v3109
        %v3267 = vadd.f32 %v2885, %v3211
        %v3268 = vadd.f32 %v2886, %v3113
        %v3269 = vadd.f32 %v2887, %v3115
        %v3270 = vadd.f32 %v2888, %v3216
        %v3271 = vadd.f32 %v2889, %v3117
        %v3272 = vadd.f32 %v2890, %v3119
        %v3273 = vadd.f32 %v2891, %v3219
        %v3274 = vadd.f32 %v2892, %v3123
        %v3275 = vadd.f32 %v2893, %v3125
        %v3276 = vadd.f32 %v2894, %v3224
        %v3277 = vadd.f32 %v2895, %v3127
        %v3278 = vadd.f32 %v2896, %v3129
        %v3279 = vadd.f32 %v2897, %v3227
        %v3280 = vadd.f32 %v2898, %v3133
        %v3281 = vadd.f32 %v2899, %v3135
        %v3282 = vadd.f32 %v2900, %v3232
        %v3283 = vadd.f32 %v2901, %v3137
        %v3284 = vadd.f32 %v2902, %v3139
        %v3285 = vadd.f32 %v2903, %v3235
        %s3286 = scalar_lea.vmem %s1, 512
        %v3287 = vld [vmem:[%s3286] sm:$0xf]
        %v3288 = vld [vmem:[%s3286 + $0x4] sm:$0xf]
        %v3289 = vld [vmem:[%s3286 + $0x8] sm:$0xf]
        %v3290 = vld [vmem:[%s3286 + $0xc] sm:$0xf]
        %v3291 = vld [vmem:[%s3286 + $0x10] sm:$0xf]
        %v3292 = vld [vmem:[%s3286 + $0x14] sm:$0xf]
        %v3293 = vld [vmem:[%s3286 + $0x18] sm:$0xf]
        %v3294 = vld [vmem:[%s3286 + $0x1c] sm:$0xf]
        %v3295 = vld [vmem:[%s3286 + $0x20] sm:$0xf]
        %v3296 = vld [vmem:[%s3286 + $0x24] sm:$0xf]
        %v3297 = vld [vmem:[%s3286 + $0x28] sm:$0xf]
        %v3298 = vld [vmem:[%s3286 + $0x2c] sm:$0xf]
        %v3299 = vld [vmem:[%s3286 + $0x30] sm:$0xf]
        %v3300 = vld [vmem:[%s3286 + $0x34] sm:$0xf]
        %v3301 = vld [vmem:[%s3286 + $0x38] sm:$0xf]
        %v3302 = vld [vmem:[%s3286 + $0x3c] sm:$0xf]
        %v3319 = vunpack.c.l.b16 %v3287
        %v3320 = vunpack.c.l.b16 %v3288
        %v3321 = vunpack.c.l.b16 %v3289
        %v3322 = vunpack.c.l.b16 %v3290
        %v3323 = vunpack.c.l.b16 %v3291
        %v3324 = vunpack.c.l.b16 %v3292
        %v3325 = vunpack.c.l.b16 %v3293
        %v3326 = vunpack.c.l.b16 %v3294
        %v3327 = vunpack.c.l.b16 %v3295
        %v3328 = vunpack.c.l.b16 %v3296
        %v3329 = vunpack.c.l.b16 %v3297
        %v3330 = vunpack.c.l.b16 %v3298
        %v3331 = vunpack.c.l.b16 %v3299
        %v3332 = vunpack.c.l.b16 %v3300
        %v3333 = vunpack.c.l.b16 %v3301
        %v3334 = vunpack.c.l.b16 %v3302
        %v3335 = vpack.c.b16 %v3320, %v3319
        %v3336 = vpack.c.b16 %v3322, %v3321
        %v3337 = vpack.c.b16 %v3324, %v3323
        %v3338 = vpack.c.b16 %v3326, %v3325
        %v3339 = vpack.c.b16 %v3328, %v3327
        %v3340 = vpack.c.b16 %v3330, %v3329
        %v3341 = vpack.c.b16 %v3332, %v3331
        %v3342 = vpack.c.b16 %v3334, %v3333
        %3343 = vrot.lane.b32.xlu0 %v421, 90
        %v3344 = vpop.permute.xlu0 %3343
        %3345 = vrot.lane.b32.xlu0 %v422, 90
        %v3346 = vpop.permute.xlu0 %3345
        %3347 = vrot.lane.b32.xlu0 %v423, 90
        %v3348 = vpop.permute.xlu0 %3347
        %3349 = vrot.lane.b32.xlu0 %v424, 90
        %v3350 = vpop.permute.xlu0 %3349
        %3351 = vrot.lane.b32.xlu0 %v425, 90
        %v3352 = vpop.permute.xlu0 %3351
        %3353 = vrot.lane.b32.xlu0 %v426, 90
        %v3354 = vpop.permute.xlu0 %3353
        %3355 = vrot.lane.b32.xlu0 %v427, 90
        %v3356 = vpop.permute.xlu0 %3355
        %3357 = vrot.lane.b32.xlu0 %v428, 90
        %v3358 = vpop.permute.xlu0 %3357
        %3359 = vrot.lane.b32.xlu0 %v429, 90
        %v3360 = vpop.permute.xlu0 %3359
        %3361 = vrot.lane.b32.xlu0 %v430, 90
        %v3362 = vpop.permute.xlu0 %3361
        %3363 = vrot.lane.b32.xlu0 %v431, 90
        %v3364 = vpop.permute.xlu0 %3363
        %3365 = vrot.lane.b32.xlu0 %v432, 90
        %v3366 = vpop.permute.xlu0 %3365
        %vm3367 = vcmask 736256
        %v3368 = vsel %vm3367, %v3344, %v3346
        %v3369 = vsel %vm3367, %v3346, %v3348
        %v3370 = vsel %vm3367, %v3348, %v3350
        %v3371 = vsel %vm3367, %v3352, %v3354
        %v3372 = vsel %vm3367, %v3354, %v3356
        %v3373 = vsel %vm3367, %v3356, %v3358
        %v3374 = vsel %vm3367, %v3360, %v3362
        %v3375 = vsel %vm3367, %v3362, %v3364
        %v3376 = vsel %vm3367, %v3364, %v3366
        %v3387 = vsel %vm476, %v3335, 0
        %v3390 = vsel %vm476, %v3336, 0
        %v3393 = vsel %vm476, %v3337, 0
        %v3396 = vsel %vm476, %v3338, 0
        %v3399 = vsel %vm476, %v3339, 0
        %v3402 = vsel %vm476, %v3340, 0
        %v3405 = vsel %vm476, %v3341, 0
        %v3408 = vsel %vm476, %v3342, 0
        %3410 = vmatprep.subr.bf16.mxu0 %v3369
        %3411 = vmatpush1.bf16.msra.mxu0 %v3368
        %3412 = vmatprep.subr.bf16.mxu0 %v3372
        %3413 = vmatpush1.bf16.msra.mxu0 %v3371
        %3414 = vmatprep.subr.bf16.mxu0 %v3375
        %3415 = vmatpush1.bf16.msra.mxu0 %v3374
        %3416 = vmatprep.subr.bf16.mxu0 0
        %3417 = vmatpush1.bf16.msra.mxu0 0
        %3418 = vmatprep.subr.bf16.mxu0 0
        %3419 = vmatpush1.bf16.msra.mxu0 0
        %3420 = vmatprep.subr.bf16.mxu0 0
        %3421 = vmatpush1.bf16.msra.mxu0 0
        %3422 = vmatprep.subr.bf16.mxu0 0
        %3423 = vmatpush1.bf16.msra.mxu0 0
        %3424 = vmatprep.subr.bf16.mxu0 0
        %3425 = vmatpush1.bf16.msra.mxu0 0
        %3426 = vmatprep.subr.bf16.mxu0 0
        %3427 = vmatpush1.bf16.msra.mxu0 0
        %3428 = vmatprep.subr.bf16.mxu0 0
        %3429 = vmatpush1.bf16.msra.mxu0 0
        %3430 = vmatprep.subr.bf16.mxu0 0
        %3431 = vmatpush1.bf16.msra.mxu0 0
        %3432 = vmatprep.subr.bf16.mxu0 0
        %3433 = vmatpush1.bf16.msra.mxu0 0
        %3434 = vmatprep.subr.bf16.mxu0 0
        %3435 = vmatpush1.bf16.msra.mxu0 0
        %3436 = vmatprep.subr.bf16.mxu0 0
        %3437 = vmatpush1.bf16.msra.mxu0 0
        %3438 = vmatprep.subr.bf16.mxu0 0
        %3439 = vmatpush1.bf16.msra.mxu0 0
        %3440 = vmatprep.subr.bf16.mxu0 0
        %3441 = vmatpush1.bf16.msra.mxu0 0
        %3442 = vmatprep.mubr.bf16.mxu0 0
        %3443 = vmatmul.mubr.bf16.gmra.mrb[0].mxu0 %v3387
        %v3444 = vpop.f32.mrb[0].mxu0
        %v3445 = vadd.f32 0.0, %v3444
        %v3446 = vpop.f32.mrb[0].mxu0
        %v3447 = vadd.f32 0.0, %v3446
        %v3448 = vpop.f32.mrb[0].mxu0
        %v3449 = vadd.f32 0.0, %v3448
        %v3450 = vpop.f32.mrb[0].mxu0
        %v3451 = vadd.f32 0.0, %v3450
        %3452 = vmatprep.mubr.bf16.mxu0 0
        %3453 = vmatmul.mubr.bf16.gmra.mrb[0].mxu0 %v3390
        %v3454 = vpop.f32.mrb[0].mxu0
        %v3455 = vadd.f32 0.0, %v3454
        %v3456 = vpop.f32.mrb[0].mxu0
        %v3457 = vadd.f32 0.0, %v3456
        %v3458 = vpop.f32.mrb[0].mxu0
        %v3459 = vadd.f32 0.0, %v3458
        %v3460 = vpop.f32.mrb[0].mxu0
        %v3461 = vadd.f32 0.0, %v3460
        %3462 = vmatprep.mubr.bf16.mxu0 0
        %3463 = vmatmul.mubr.bf16.gmra.mrb[0].mxu0 %v3393
        %v3464 = vpop.f32.mrb[0].mxu0
        %v3465 = vadd.f32 0.0, %v3464
        %v3466 = vpop.f32.mrb[0].mxu0
        %v3467 = vadd.f32 0.0, %v3466
        %v3468 = vpop.f32.mrb[0].mxu0
        %v3469 = vadd.f32 0.0, %v3468
        %v3470 = vpop.f32.mrb[0].mxu0
        %v3471 = vadd.f32 0.0, %v3470
        %3472 = vmatprep.mubr.bf16.mxu0 0
        %3473 = vmatmul.mubr.bf16.gmra.mrb[0].mxu0 %v3396
        %v3474 = vpop.f32.mrb[0].mxu0
        %v3475 = vadd.f32 0.0, %v3474
        %v3476 = vpop.f32.mrb[0].mxu0
        %v3477 = vadd.f32 0.0, %v3476
        %v3478 = vpop.f32.mrb[0].mxu0
        %v3479 = vadd.f32 0.0, %v3478
        %v3480 = vpop.f32.mrb[0].mxu0
        %v3481 = vadd.f32 0.0, %v3480
        %3482 = vmatprep.mubr.bf16.mxu0 0
        %3483 = vmatmul.mubr.bf16.gmra.mrb[0].mxu0 %v3399
        %v3484 = vpop.f32.mrb[0].mxu0
        %v3485 = vadd.f32 0.0, %v3484
        %v3486 = vpop.f32.mrb[0].mxu0
        %v3487 = vadd.f32 0.0, %v3486
        %v3488 = vpop.f32.mrb[0].mxu0
        %v3489 = vadd.f32 0.0, %v3488
        %v3490 = vpop.f32.mrb[0].mxu0
        %v3491 = vadd.f32 0.0, %v3490
        %3492 = vmatprep.mubr.bf16.mxu0 0
        %3493 = vmatmul.mubr.bf16.gmra.mrb[0].mxu0 %v3402
        %v3494 = vpop.f32.mrb[0].mxu0
        %v3495 = vadd.f32 0.0, %v3494
        %v3496 = vpop.f32.mrb[0].mxu0
        %v3497 = vadd.f32 0.0, %v3496
        %v3498 = vpop.f32.mrb[0].mxu0
        %v3499 = vadd.f32 0.0, %v3498
        %v3500 = vpop.f32.mrb[0].mxu0
        %v3501 = vadd.f32 0.0, %v3500
        %3502 = vmatprep.mubr.bf16.mxu0 0
        %3503 = vmatmul.mubr.bf16.gmra.mrb[0].mxu0 %v3405
        %v3504 = vpop.f32.mrb[0].mxu0
        %v3505 = vadd.f32 0.0, %v3504
        %v3506 = vpop.f32.mrb[0].mxu0
        %v3507 = vadd.f32 0.0, %v3506
        %v3508 = vpop.f32.mrb[0].mxu0
        %v3509 = vadd.f32 0.0, %v3508
        %v3510 = vpop.f32.mrb[0].mxu0
        %v3511 = vadd.f32 0.0, %v3510
        %3512 = vmatprep.mubr.bf16.mxu0 0
        %3513 = vmatmul.mubr.bf16.gmra.mrb[0].mxu0 %v3408
        %v3514 = vpop.f32.mrb[0].mxu0
        %v3515 = vadd.f32 0.0, %v3514
        %v3516 = vpop.f32.mrb[0].mxu0
        %v3517 = vadd.f32 0.0, %v3516
        %v3518 = vpop.f32.mrb[0].mxu0
        %v3519 = vadd.f32 0.0, %v3518
        %v3520 = vpop.f32.mrb[0].mxu0
        %v3521 = vadd.f32 0.0, %v3520
        %3522 = vdwg.mxu0
        %3523 = vmatprep.subr.bf16.mxu0 0
        %3524 = vmatpush1.bf16.msra.mxu0 %v3370
        %3525 = vmatprep.subr.bf16.mxu0 0
        %3526 = vmatpush1.bf16.msra.mxu0 %v3373
        %3527 = vmatprep.subr.bf16.mxu0 0
        %3528 = vmatpush1.bf16.msra.mxu0 %v3376
        %3529 = vmatprep.subr.bf16.mxu0 0
        %3530 = vmatpush1.bf16.msra.mxu0 0
        %3531 = vmatprep.subr.bf16.mxu0 0
        %3532 = vmatpush1.bf16.msra.mxu0 0
        %3533 = vmatprep.subr.bf16.mxu0 0
        %3534 = vmatpush1.bf16.msra.mxu0 0
        %3535 = vmatprep.subr.bf16.mxu0 0
        %3536 = vmatpush1.bf16.msra.mxu0 0
        %3537 = vmatprep.subr.bf16.mxu0 0
        %3538 = vmatpush1.bf16.msra.mxu0 0
        %3539 = vmatprep.subr.bf16.mxu0 0
        %3540 = vmatpush1.bf16.msra.mxu0 0
        %3541 = vmatprep.subr.bf16.mxu0 0
        %3542 = vmatpush1.bf16.msra.mxu0 0
        %3543 = vmatprep.subr.bf16.mxu0 0
        %3544 = vmatpush1.bf16.msra.mxu0 0
        %3545 = vmatprep.subr.bf16.mxu0 0
        %3546 = vmatpush1.bf16.msra.mxu0 0
        %3547 = vmatprep.subr.bf16.mxu0 0
        %3548 = vmatpush1.bf16.msra.mxu0 0
        %3549 = vmatprep.subr.bf16.mxu0 0
        %3550 = vmatpush1.bf16.msra.mxu0 0
        %3551 = vmatprep.subr.bf16.mxu0 0
        %3552 = vmatpush1.bf16.msra.mxu0 0
        %3553 = vmatprep.subr.bf16.mxu0 0
        %3554 = vmatpush1.bf16.msra.mxu0 0
        %3555 = vmatprep.mubr.bf16.mxu0 0
        %3556 = vmatmul.mubr.bf16.gmra.mrb[0].mxu0 %v3387
        %v3557 = vpop.f32.mrb[0].mxu0
        %v3558 = vadd.f32 0.0, %v3557
        %v3559 = vpop.f32.mrb[0].mxu0
        %v3560 = vpop.f32.mrb[0].mxu0
        %v3561 = vadd.f32 0.0, %v3560
        %v3562 = vpop.f32.mrb[0].mxu0
        %3563 = vmatprep.mubr.bf16.mxu0 0
        %3564 = vmatmul.mubr.bf16.gmra.mrb[0].mxu0 %v3390
        %v3565 = vpop.f32.mrb[0].mxu0
        %v3566 = vadd.f32 0.0, %v3565
        %v3567 = vpop.f32.mrb[0].mxu0
        %v3568 = vpop.f32.mrb[0].mxu0
        %v3569 = vadd.f32 0.0, %v3568
        %v3570 = vpop.f32.mrb[0].mxu0
        %3571 = vmatprep.mubr.bf16.mxu0 0
        %3572 = vmatmul.mubr.bf16.gmra.mrb[0].mxu0 %v3393
        %v3573 = vpop.f32.mrb[0].mxu0
        %v3574 = vadd.f32 0.0, %v3573
        %v3575 = vpop.f32.mrb[0].mxu0
        %v3576 = vpop.f32.mrb[0].mxu0
        %v3577 = vadd.f32 0.0, %v3576
        %v3578 = vpop.f32.mrb[0].mxu0
        %3579 = vmatprep.mubr.bf16.mxu0 0
        %3580 = vmatmul.mubr.bf16.gmra.mrb[0].mxu0 %v3396
        %v3581 = vpop.f32.mrb[0].mxu0
        %v3582 = vadd.f32 0.0, %v3581
        %v3583 = vpop.f32.mrb[0].mxu0
        %v3584 = vpop.f32.mrb[0].mxu0
        %v3585 = vadd.f32 0.0, %v3584
        %v3586 = vpop.f32.mrb[0].mxu0
        %3587 = vmatprep.mubr.bf16.mxu0 0
        %3588 = vmatmul.mubr.bf16.gmra.mrb[0].mxu0 %v3399
        %v3589 = vpop.f32.mrb[0].mxu0
        %v3590 = vadd.f32 0.0, %v3589
        %v3591 = vpop.f32.mrb[0].mxu0
        %v3592 = vpop.f32.mrb[0].mxu0
        %v3593 = vadd.f32 0.0, %v3592
        %v3594 = vpop.f32.mrb[0].mxu0
        %3595 = vmatprep.mubr.bf16.mxu0 0
        %3596 = vmatmul.mubr.bf16.gmra.mrb[0].mxu0 %v3402
        %v3597 = vpop.f32.mrb[0].mxu0
        %v3598 = vadd.f32 0.0, %v3597
        %v3599 = vpop.f32.mrb[0].mxu0
        %v3600 = vpop.f32.mrb[0].mxu0
        %v3601 = vadd.f32 0.0, %v3600
        %v3602 = vpop.f32.mrb[0].mxu0
        %3603 = vmatprep.mubr.bf16.mxu0 0
        %3604 = vmatmul.mubr.bf16.gmra.mrb[0].mxu0 %v3405
        %v3605 = vpop.f32.mrb[0].mxu0
        %v3606 = vadd.f32 0.0, %v3605
        %v3607 = vpop.f32.mrb[0].mxu0
        %v3608 = vpop.f32.mrb[0].mxu0
        %v3609 = vadd.f32 0.0, %v3608
        %v3610 = vpop.f32.mrb[0].mxu0
        %3611 = vmatprep.mubr.bf16.mxu0 0
        %3612 = vmatmul.mubr.bf16.gmra.mrb[0].mxu0 %v3408
        %v3613 = vpop.f32.mrb[0].mxu0
        %v3614 = vadd.f32 0.0, %v3613
        %v3615 = vpop.f32.mrb[0].mxu0
        %v3616 = vpop.f32.mrb[0].mxu0
        %v3617 = vadd.f32 0.0, %v3616
        %v3618 = vpop.f32.mrb[0].mxu0
        %3619 = vdwg.mxu0
        %v3620 = vadd.f32 %v3238, %v3445
        %v3621 = vadd.f32 %v3239, %v3447
        %v3622 = vadd.f32 %v3240, %v3558
        %v3623 = vadd.f32 %v3241, %v3449
        %v3624 = vadd.f32 %v3242, %v3451
        %v3625 = vadd.f32 %v3243, %v3561
        %v3626 = vadd.f32 %v3244, %v3455
        %v3627 = vadd.f32 %v3245, %v3457
        %v3628 = vadd.f32 %v3246, %v3566
        %v3629 = vadd.f32 %v3247, %v3459
        %v3630 = vadd.f32 %v3248, %v3461
        %v3631 = vadd.f32 %v3249, %v3569
        %v3632 = vadd.f32 %v3250, %v3465
        %v3633 = vadd.f32 %v3251, %v3467
        %v3634 = vadd.f32 %v3252, %v3574
        %v3635 = vadd.f32 %v3253, %v3469
        %v3636 = vadd.f32 %v3254, %v3471
        %v3637 = vadd.f32 %v3255, %v3577
        %v3638 = vadd.f32 %v3256, %v3475
        %v3639 = vadd.f32 %v3257, %v3477
        %v3640 = vadd.f32 %v3258, %v3582
        %v3641 = vadd.f32 %v3259, %v3479
        %v3642 = vadd.f32 %v3260, %v3481
        %v3643 = vadd.f32 %v3261, %v3585
        %v3644 = vadd.f32 %v3262, %v3485
        %v3645 = vadd.f32 %v3263, %v3487
        %v3646 = vadd.f32 %v3264, %v3590
        %v3647 = vadd.f32 %v3265, %v3489
        %v3648 = vadd.f32 %v3266, %v3491
        %v3649 = vadd.f32 %v3267, %v3593
        %v3650 = vadd.f32 %v3268, %v3495
        %v3651 = vadd.f32 %v3269, %v3497
        %v3652 = vadd.f32 %v3270, %v3598
        %v3653 = vadd.f32 %v3271, %v3499
        %v3654 = vadd.f32 %v3272, %v3501
        %v3655 = vadd.f32 %v3273, %v3601
        %v3656 = vadd.f32 %v3274, %v3505
        %v3657 = vadd.f32 %v3275, %v3507
        %v3658 = vadd.f32 %v3276, %v3606
        %v3659 = vadd.f32 %v3277, %v3509
        %v3660 = vadd.f32 %v3278, %v3511
        %v3661 = vadd.f32 %v3279, %v3609
        %v3662 = vadd.f32 %v3280, %v3515
        %v3663 = vadd.f32 %v3281, %v3517
        %v3664 = vadd.f32 %v3282, %v3614
        %v3665 = vadd.f32 %v3283, %v3519
        %v3666 = vadd.f32 %v3284, %v3521
        %v3667 = vadd.f32 %v3285, %v3617
        %v3668 = vld [vmem:[%s2] sm:$0xff]
        %v3669 = vld [vmem:[%s2 + $0x8] sm:$0xff]
        %v3670 = vld [vmem:[%s2 + $0x10] sm:$0xff]
        %v3671 = vld [vmem:[%s2 + $0x18] sm:$0xff]
        %v3672 = vld [vmem:[%s2 + $0x20] sm:$0xff]
        %v3673 = vld [vmem:[%s2 + $0x28] sm:$0xff]
        %v3674 = vld [vmem:[%s2 + $0x30] sm:$0xff]
        %v3675 = vld [vmem:[%s2 + $0x38] sm:$0xff]
        %v3676 = vld [vmem:[%s2 + $0x40] sm:$0xff]
        %v3677 = vld [vmem:[%s2 + $0x48] sm:$0xff]
        %v3678 = vld [vmem:[%s2 + $0x50] sm:$0xff]
        %v3679 = vld [vmem:[%s2 + $0x58] sm:$0xff]
        %v3680 = vld [vmem:[%s2 + $0x60] sm:$0xff]
        %v3681 = vld [vmem:[%s2 + $0x68] sm:$0xff]
        %v3682 = vld [vmem:[%s2 + $0x70] sm:$0xff]
        %v3683 = vld [vmem:[%s2 + $0x78] sm:$0xff]
        %3685 = vset.pattern.permute.xlu0 0
        %3686 = vperm.xlu0 %3685, %v3668
        %v3687 = vpop.permute.xlu0 %3686
        %3690 = vset.pattern.permute.xlu0 0
        %3691 = vperm.xlu0 %3690, %v3669
        %v3692 = vpop.permute.xlu0 %3691
        %3695 = vset.pattern.permute.xlu0 0
        %3696 = vperm.xlu0 %3695, %v3670
        %v3697 = vpop.permute.xlu0 %3696
        %3700 = vset.pattern.permute.xlu0 0
        %3701 = vperm.xlu0 %3700, %v3671
        %v3702 = vpop.permute.xlu0 %3701
        %3705 = vset.pattern.permute.xlu0 0
        %3706 = vperm.xlu0 %3705, %v3672
        %v3707 = vpop.permute.xlu0 %3706
        %3710 = vset.pattern.permute.xlu0 0
        %3711 = vperm.xlu0 %3710, %v3673
        %v3712 = vpop.permute.xlu0 %3711
        %3715 = vset.pattern.permute.xlu0 0
        %3716 = vperm.xlu0 %3715, %v3674
        %v3717 = vpop.permute.xlu0 %3716
        %3720 = vset.pattern.permute.xlu0 0
        %3721 = vperm.xlu0 %3720, %v3675
        %v3722 = vpop.permute.xlu0 %3721
        %3725 = vset.pattern.permute.xlu0 0
        %3726 = vperm.xlu0 %3725, %v3676
        %v3727 = vpop.permute.xlu0 %3726
        %3730 = vset.pattern.permute.xlu0 0
        %3731 = vperm.xlu0 %3730, %v3677
        %v3732 = vpop.permute.xlu0 %3731
        %3735 = vset.pattern.permute.xlu0 0
        %3736 = vperm.xlu0 %3735, %v3678
        %v3737 = vpop.permute.xlu0 %3736
        %3740 = vset.pattern.permute.xlu0 0
        %3741 = vperm.xlu0 %3740, %v3679
        %v3742 = vpop.permute.xlu0 %3741
        %3745 = vset.pattern.permute.xlu0 0
        %3746 = vperm.xlu0 %3745, %v3680
        %v3747 = vpop.permute.xlu0 %3746
        %3750 = vset.pattern.permute.xlu0 0
        %3751 = vperm.xlu0 %3750, %v3681
        %v3752 = vpop.permute.xlu0 %3751
        %3755 = vset.pattern.permute.xlu0 0
        %3756 = vperm.xlu0 %3755, %v3682
        %v3757 = vpop.permute.xlu0 %3756
        %3760 = vset.pattern.permute.xlu0 0
        %3761 = vperm.xlu0 %3760, %v3683
        %v3762 = vpop.permute.xlu0 %3761
        %v3764 = vadd.f32 %v3620, %v3687
        %v3765 = vadd.f32 %v3621, %v3687
        %v3766 = vadd.f32 %v3622, %v3687
        %v3767 = vadd.f32 %v3623, %v3692
        %v3768 = vadd.f32 %v3624, %v3692
        %v3769 = vadd.f32 %v3625, %v3692
        %v3770 = vadd.f32 %v3626, %v3697
        %v3771 = vadd.f32 %v3627, %v3697
        %v3772 = vadd.f32 %v3628, %v3697
        %v3773 = vadd.f32 %v3629, %v3702
        %v3774 = vadd.f32 %v3630, %v3702
        %v3775 = vadd.f32 %v3631, %v3702
        %v3776 = vadd.f32 %v3632, %v3707
        %v3777 = vadd.f32 %v3633, %v3707
        %v3778 = vadd.f32 %v3634, %v3707
        %v3779 = vadd.f32 %v3635, %v3712
        %v3780 = vadd.f32 %v3636, %v3712
        %v3781 = vadd.f32 %v3637, %v3712
        %v3782 = vadd.f32 %v3638, %v3717
        %v3783 = vadd.f32 %v3639, %v3717
        %v3784 = vadd.f32 %v3640, %v3717
        %v3785 = vadd.f32 %v3641, %v3722
        %v3786 = vadd.f32 %v3642, %v3722
        %v3787 = vadd.f32 %v3643, %v3722
        %v3788 = vadd.f32 %v3644, %v3727
        %v3789 = vadd.f32 %v3645, %v3727
        %v3790 = vadd.f32 %v3646, %v3727
        %v3791 = vadd.f32 %v3647, %v3732
        %v3792 = vadd.f32 %v3648, %v3732
        %v3793 = vadd.f32 %v3649, %v3732
        %v3794 = vadd.f32 %v3650, %v3737
        %v3795 = vadd.f32 %v3651, %v3737
        %v3796 = vadd.f32 %v3652, %v3737
        %v3797 = vadd.f32 %v3653, %v3742
        %v3798 = vadd.f32 %v3654, %v3742
        %v3799 = vadd.f32 %v3655, %v3742
        %v3800 = vadd.f32 %v3656, %v3747
        %v3801 = vadd.f32 %v3657, %v3747
        %v3802 = vadd.f32 %v3658, %v3747
        %v3803 = vadd.f32 %v3659, %v3752
        %v3804 = vadd.f32 %v3660, %v3752
        %v3805 = vadd.f32 %v3661, %v3752
        %v3806 = vadd.f32 %v3662, %v3757
        %v3807 = vadd.f32 %v3663, %v3757
        %v3808 = vadd.f32 %v3664, %v3757
        %v3809 = vadd.f32 %v3665, %v3762
        %v3810 = vadd.f32 %v3666, %v3762
        %v3811 = vadd.f32 %v3667, %v3762
        %v3812 = vxor.u32 %v3764, 2147483648
        %v3813 = vxor.u32 %v3765, 2147483648
        %v3814 = vxor.u32 %v3766, 2147483648
        %v3815 = vxor.u32 %v3767, 2147483648
        %v3816 = vxor.u32 %v3768, 2147483648
        %v3817 = vxor.u32 %v3769, 2147483648
        %v3818 = vxor.u32 %v3770, 2147483648
        %v3819 = vxor.u32 %v3771, 2147483648
        %v3820 = vxor.u32 %v3772, 2147483648
        %v3821 = vxor.u32 %v3773, 2147483648
        %v3822 = vxor.u32 %v3774, 2147483648
        %v3823 = vxor.u32 %v3775, 2147483648
        %v3824 = vmul.f32 %v3812, 1.442695
        %v3825 = vpow.pop %v3824
        %v3826 = vmul.f32 %v3813, 1.442695
        %v3827 = vpow.pop %v3826
        %v3828 = vmul.f32 %v3814, 1.442695
        %v3829 = vpow.pop %v3828
        %v3830 = vmul.f32 %v3815, 1.442695
        %v3831 = vpow.pop %v3830
        %v3832 = vmul.f32 %v3816, 1.442695
        %v3833 = vpow.pop %v3832
        %v3834 = vmul.f32 %v3817, 1.442695
        %v3835 = vpow.pop %v3834
        %v3836 = vmul.f32 %v3818, 1.442695
        %v3837 = vpow.pop %v3836
        %v3838 = vmul.f32 %v3819, 1.442695
        %v3839 = vpow.pop %v3838
        %v3840 = vmul.f32 %v3820, 1.442695
        %v3841 = vpow.pop %v3840
        %v3842 = vmul.f32 %v3821, 1.442695
        %v3843 = vpow.pop %v3842
        %v3844 = vmul.f32 %v3822, 1.442695
        %v3845 = vpow.pop %v3844
        %v3846 = vmul.f32 %v3823, 1.442695
        %v3847 = vpow.pop %v3846
        %v3848 = vadd.f32 %v3825, 1.0
        %v3849 = vadd.f32 %v3827, 1.0
        %v3850 = vadd.f32 %v3829, 1.0
        %v3851 = vadd.f32 %v3831, 1.0
        %v3852 = vadd.f32 %v3833, 1.0
        %v3853 = vadd.f32 %v3835, 1.0
        %v3854 = vadd.f32 %v3837, 1.0
        %v3855 = vadd.f32 %v3839, 1.0
        %v3856 = vadd.f32 %v3841, 1.0
        %v3857 = vadd.f32 %v3843, 1.0
        %v3858 = vadd.f32 %v3845, 1.0
        %v3859 = vadd.f32 %v3847, 1.0
        %v3860 = vrcp.pop %v3848
        %v3861 = vmul.f32 1.0, %v3860
        %v3862 = vrcp.pop %v3849
        %v3863 = vmul.f32 1.0, %v3862
        %v3864 = vrcp.pop %v3850
        %v3865 = vmul.f32 1.0, %v3864
        %v3866 = vrcp.pop %v3851
        %v3867 = vmul.f32 1.0, %v3866
        %v3868 = vrcp.pop %v3852
        %v3869 = vmul.f32 1.0, %v3868
        %v3870 = vrcp.pop %v3853
        %v3871 = vmul.f32 1.0, %v3870
        %v3872 = vrcp.pop %v3854
        %v3873 = vmul.f32 1.0, %v3872
        %v3874 = vrcp.pop %v3855
        %v3875 = vmul.f32 1.0, %v3874
        %v3876 = vrcp.pop %v3856
        %v3877 = vmul.f32 1.0, %v3876
        %v3878 = vrcp.pop %v3857
        %v3879 = vmul.f32 1.0, %v3878
        %v3880 = vrcp.pop %v3858
        %v3881 = vmul.f32 1.0, %v3880
        %v3882 = vrcp.pop %v3859
        %v3883 = vmul.f32 1.0, %v3882
        %v3884 = vxor.u32 %v3776, 2147483648
        %v3885 = vxor.u32 %v3777, 2147483648
        %v3886 = vxor.u32 %v3778, 2147483648
        %v3887 = vxor.u32 %v3779, 2147483648
        %v3888 = vxor.u32 %v3780, 2147483648
        %v3889 = vxor.u32 %v3781, 2147483648
        %v3890 = vxor.u32 %v3782, 2147483648
        %v3891 = vxor.u32 %v3783, 2147483648
        %v3892 = vxor.u32 %v3784, 2147483648
        %v3893 = vxor.u32 %v3785, 2147483648
        %v3894 = vxor.u32 %v3786, 2147483648
        %v3895 = vxor.u32 %v3787, 2147483648
        %v3896 = vmul.f32 %v3884, 1.442695
        %v3897 = vpow.pop %v3896
        %v3898 = vmul.f32 %v3885, 1.442695
        %v3899 = vpow.pop %v3898
        %v3900 = vmul.f32 %v3886, 1.442695
        %v3901 = vpow.pop %v3900
        %v3902 = vmul.f32 %v3887, 1.442695
        %v3903 = vpow.pop %v3902
        %v3904 = vmul.f32 %v3888, 1.442695
        %v3905 = vpow.pop %v3904
        %v3906 = vmul.f32 %v3889, 1.442695
        %v3907 = vpow.pop %v3906
        %v3908 = vmul.f32 %v3890, 1.442695
        %v3909 = vpow.pop %v3908
        %v3910 = vmul.f32 %v3891, 1.442695
        %v3911 = vpow.pop %v3910
        %v3912 = vmul.f32 %v3892, 1.442695
        %v3913 = vpow.pop %v3912
        %v3914 = vmul.f32 %v3893, 1.442695
        %v3915 = vpow.pop %v3914
        %v3916 = vmul.f32 %v3894, 1.442695
        %v3917 = vpow.pop %v3916
        %v3918 = vmul.f32 %v3895, 1.442695
        %v3919 = vpow.pop %v3918
        %v3920 = vadd.f32 %v3897, 1.0
        %v3921 = vadd.f32 %v3899, 1.0
        %v3922 = vadd.f32 %v3901, 1.0
        %v3923 = vadd.f32 %v3903, 1.0
        %v3924 = vadd.f32 %v3905, 1.0
        %v3925 = vadd.f32 %v3907, 1.0
        %v3926 = vadd.f32 %v3909, 1.0
        %v3927 = vadd.f32 %v3911, 1.0
        %v3928 = vadd.f32 %v3913, 1.0
        %v3929 = vadd.f32 %v3915, 1.0
        %v3930 = vadd.f32 %v3917, 1.0
        %v3931 = vadd.f32 %v3919, 1.0
        %v3932 = vrcp.pop %v3920
        %v3933 = vmul.f32 1.0, %v3932
        %v3934 = vrcp.pop %v3921
        %v3935 = vmul.f32 1.0, %v3934
        %v3936 = vrcp.pop %v3922
        %v3937 = vmul.f32 1.0, %v3936
        %v3938 = vrcp.pop %v3923
        %v3939 = vmul.f32 1.0, %v3938
        %v3940 = vrcp.pop %v3924
        %v3941 = vmul.f32 1.0, %v3940
        %v3942 = vrcp.pop %v3925
        %v3943 = vmul.f32 1.0, %v3942
        %v3944 = vrcp.pop %v3926
        %v3945 = vmul.f32 1.0, %v3944
        %v3946 = vrcp.pop %v3927
        %v3947 = vmul.f32 1.0, %v3946
        %v3948 = vrcp.pop %v3928
        %v3949 = vmul.f32 1.0, %v3948
        %v3950 = vrcp.pop %v3929
        %v3951 = vmul.f32 1.0, %v3950
        %v3952 = vrcp.pop %v3930
        %v3953 = vmul.f32 1.0, %v3952
        %v3954 = vrcp.pop %v3931
        %v3955 = vmul.f32 1.0, %v3954
        %v3956 = vxor.u32 %v3788, 2147483648
        %v3957 = vxor.u32 %v3789, 2147483648
        %v3958 = vxor.u32 %v3790, 2147483648
        %v3959 = vxor.u32 %v3791, 2147483648
        %v3960 = vxor.u32 %v3792, 2147483648
        %v3961 = vxor.u32 %v3793, 2147483648
        %v3962 = vxor.u32 %v3794, 2147483648
        %v3963 = vxor.u32 %v3795, 2147483648
        %v3964 = vxor.u32 %v3796, 2147483648
        %v3965 = vxor.u32 %v3797, 2147483648
        %v3966 = vxor.u32 %v3798, 2147483648
        %v3967 = vxor.u32 %v3799, 2147483648
        %v3968 = vmul.f32 %v3956, 1.442695
        %v3969 = vpow.pop %v3968
        %v3970 = vmul.f32 %v3957, 1.442695
        %v3971 = vpow.pop %v3970
        %v3972 = vmul.f32 %v3958, 1.442695
        %v3973 = vpow.pop %v3972
        %v3974 = vmul.f32 %v3959, 1.442695
        %v3975 = vpow.pop %v3974
        %v3976 = vmul.f32 %v3960, 1.442695
        %v3977 = vpow.pop %v3976
        %v3978 = vmul.f32 %v3961, 1.442695
        %v3979 = vpow.pop %v3978
        %v3980 = vmul.f32 %v3962, 1.442695
        %v3981 = vpow.pop %v3980
        %v3982 = vmul.f32 %v3963, 1.442695
        %v3983 = vpow.pop %v3982
        %v3984 = vmul.f32 %v3964, 1.442695
        %v3985 = vpow.pop %v3984
        %v3986 = vmul.f32 %v3965, 1.442695
        %v3987 = vpow.pop %v3986
        %v3988 = vmul.f32 %v3966, 1.442695
        %v3989 = vpow.pop %v3988
        %v3990 = vmul.f32 %v3967, 1.442695
        %v3991 = vpow.pop %v3990
        %v3992 = vadd.f32 %v3969, 1.0
        %v3993 = vadd.f32 %v3971, 1.0
        %v3994 = vadd.f32 %v3973, 1.0
        %v3995 = vadd.f32 %v3975, 1.0
        %v3996 = vadd.f32 %v3977, 1.0
        %v3997 = vadd.f32 %v3979, 1.0
        %v3998 = vadd.f32 %v3981, 1.0
        %v3999 = vadd.f32 %v3983, 1.0
        %v4000 = vadd.f32 %v3985, 1.0
        %v4001 = vadd.f32 %v3987, 1.0
        %v4002 = vadd.f32 %v3989, 1.0
        %v4003 = vadd.f32 %v3991, 1.0
        %v4004 = vrcp.pop %v3992
        %v4005 = vmul.f32 1.0, %v4004
        %v4006 = vrcp.pop %v3993
        %v4007 = vmul.f32 1.0, %v4006
        %v4008 = vrcp.pop %v3994
        %v4009 = vmul.f32 1.0, %v4008
        %v4010 = vrcp.pop %v3995
        %v4011 = vmul.f32 1.0, %v4010
        %v4012 = vrcp.pop %v3996
        %v4013 = vmul.f32 1.0, %v4012
        %v4014 = vrcp.pop %v3997
        %v4015 = vmul.f32 1.0, %v4014
        %v4016 = vrcp.pop %v3998
        %v4017 = vmul.f32 1.0, %v4016
        %v4018 = vrcp.pop %v3999
        %v4019 = vmul.f32 1.0, %v4018
        %v4020 = vrcp.pop %v4000
        %v4021 = vmul.f32 1.0, %v4020
        %v4022 = vrcp.pop %v4001
        %v4023 = vmul.f32 1.0, %v4022
        %v4024 = vrcp.pop %v4002
        %v4025 = vmul.f32 1.0, %v4024
        %v4026 = vrcp.pop %v4003
        %v4027 = vmul.f32 1.0, %v4026
        %v4028 = vtanh.pop %v3800
        %v4029 = vtanh.pop %v3801
        %v4030 = vtanh.pop %v3802
        %v4031 = vtanh.pop %v3803
        %v4032 = vtanh.pop %v3804
        %v4033 = vtanh.pop %v3805
        %v4034 = vtanh.pop %v3806
        %v4035 = vtanh.pop %v3807
        %v4036 = vtanh.pop %v3808
        %v4037 = vtanh.pop %v3809
        %v4038 = vtanh.pop %v3810
        %v4039 = vtanh.pop %v3811
        %v4040 = vld [vmem:[%s256] sm:$0xff]
        %v4041 = vld [vmem:[%s256 + $0x8] sm:$0xff]
        %v4042 = vld [vmem:[%s256 + $0x10] sm:$0xff]
        %v4043 = vld [vmem:[%s256 + $0x18] sm:$0xff]
        %v4044 = vld [vmem:[%s256 + $0x20] sm:$0xff]
        %v4045 = vld [vmem:[%s256 + $0x28] sm:$0xff]
        %v4046 = vld [vmem:[%s256 + $0x30] sm:$0xff]
        %v4047 = vld [vmem:[%s256 + $0x38] sm:$0xff]
        %v4048 = vld [vmem:[%s256 + $0x40] sm:$0xff]
        %v4049 = vld [vmem:[%s256 + $0x48] sm:$0xff]
        %v4050 = vld [vmem:[%s256 + $0x50] sm:$0xff]
        %v4051 = vld [vmem:[%s256 + $0x58] sm:$0xff]
        %v4052 = vmul.f32 %v3933, %v4040
        %v4053 = vmul.f32 %v3935, %v4041
        %v4054 = vmul.f32 %v3937, %v4042
        %v4055 = vmul.f32 %v3939, %v4043
        %v4056 = vmul.f32 %v3941, %v4044
        %v4057 = vmul.f32 %v3943, %v4045
        %v4058 = vmul.f32 %v3945, %v4046
        %v4059 = vmul.f32 %v3947, %v4047
        %v4060 = vmul.f32 %v3949, %v4048
        %v4061 = vmul.f32 %v3951, %v4049
        %v4062 = vmul.f32 %v3953, %v4050
        %v4063 = vmul.f32 %v3955, %v4051
        %v4064 = vmul.f32 %v3861, %v4028
        %v4065 = vmul.f32 %v3863, %v4029
        %v4066 = vmul.f32 %v3865, %v4030
        %v4067 = vmul.f32 %v3867, %v4031
        %v4068 = vmul.f32 %v3869, %v4032
        %v4069 = vmul.f32 %v3871, %v4033
        %v4070 = vmul.f32 %v3873, %v4034
        %v4071 = vmul.f32 %v3875, %v4035
        %v4072 = vmul.f32 %v3877, %v4036
        %v4073 = vmul.f32 %v3879, %v4037
        %v4074 = vmul.f32 %v3881, %v4038
        %v4075 = vmul.f32 %v3883, %v4039
        %v4076 = vadd.f32 %v4052, %v4064
        %v4077 = vadd.f32 %v4053, %v4065
        %v4078 = vadd.f32 %v4054, %v4066
        %v4079 = vadd.f32 %v4055, %v4067
        %v4080 = vadd.f32 %v4056, %v4068
        %v4081 = vadd.f32 %v4057, %v4069
        %v4082 = vadd.f32 %v4058, %v4070
        %v4083 = vadd.f32 %v4059, %v4071
        %v4084 = vadd.f32 %v4060, %v4072
        %v4085 = vadd.f32 %v4061, %v4073
        %v4086 = vadd.f32 %v4062, %v4074
        %v4087 = vadd.f32 %v4063, %v4075
        %v4088 = vtanh.pop %v4076
        %v4089 = vtanh.pop %v4077
        %v4090 = vtanh.pop %v4078
        %v4091 = vtanh.pop %v4079
        %v4092 = vtanh.pop %v4080
        %v4093 = vtanh.pop %v4081
        %v4094 = vtanh.pop %v4082
        %v4095 = vtanh.pop %v4083
        %v4096 = vtanh.pop %v4084
        %v4097 = vtanh.pop %v4085
        %v4098 = vtanh.pop %v4086
        %v4099 = vtanh.pop %v4087
        %v4100 = vmul.f32 %v4005, %v4088
        %v4101 = vmul.f32 %v4007, %v4089
        %v4102 = vmul.f32 %v4009, %v4090
        %v4103 = vmul.f32 %v4011, %v4091
        %v4104 = vmul.f32 %v4013, %v4092
        %v4105 = vmul.f32 %v4015, %v4093
        %v4106 = vmul.f32 %v4017, %v4094
        %v4107 = vmul.f32 %v4019, %v4095
        %v4108 = vmul.f32 %v4021, %v4096
        %v4109 = vmul.f32 %v4023, %v4097
        %v4110 = vmul.f32 %v4025, %v4098
        %v4111 = vmul.f32 %v4027, %v4099
        %4112 = vst [vmem:[%s283] sm:$0xff] %v4100
        %4113 = vst [vmem:[%s283 + $0x8] sm:$0xff] %v4101
        %4114 = vst [vmem:[%s283 + $0x10] sm:$0xff] %v4102
        %4115 = vst [vmem:[%s283 + $0x18] sm:$0xff] %v4103
        %4116 = vst [vmem:[%s283 + $0x20] sm:$0xff] %v4104
        %4117 = vst [vmem:[%s283 + $0x28] sm:$0xff] %v4105
        %4118 = vst [vmem:[%s283 + $0x30] sm:$0xff] %v4106
        %4119 = vst [vmem:[%s283 + $0x38] sm:$0xff] %v4107
        %4120 = vst [vmem:[%s283 + $0x40] sm:$0xff] %v4108
        %4121 = vst [vmem:[%s283 + $0x48] sm:$0xff] %v4109
        %4122 = vst [vmem:[%s283 + $0x50] sm:$0xff] %v4110
        %4123 = vst [vmem:[%s283 + $0x58] sm:$0xff] %v4111
        %4124 = vst [vmem:[%s290] sm:$0xff] %v4076
        %4125 = vst [vmem:[%s290 + $0x8] sm:$0xff] %v4077
        %4126 = vst [vmem:[%s290 + $0x10] sm:$0xff] %v4078
        %4127 = vst [vmem:[%s290 + $0x18] sm:$0xff] %v4079
        %4128 = vst [vmem:[%s290 + $0x20] sm:$0xff] %v4080
        %4129 = vst [vmem:[%s290 + $0x28] sm:$0xff] %v4081
        %4130 = vst [vmem:[%s290 + $0x30] sm:$0xff] %v4082
        %4131 = vst [vmem:[%s290 + $0x38] sm:$0xff] %v4083
        %4132 = vst [vmem:[%s290 + $0x40] sm:$0xff] %v4084
        %4133 = vst [vmem:[%s290 + $0x48] sm:$0xff] %v4085
        %4134 = vst [vmem:[%s290 + $0x50] sm:$0xff] %v4086
        %4135 = vst [vmem:[%s290 + $0x58] sm:$0xff] %v4087
        %s4136 = sand.u32 %s125, 1
        %s4137 = scalar_lea.sflag [#allocation4], %s4136
        %s4138 = sand.u32 %s125, 1
        %s4139 = smul.addr %s4138, 96
        %s4140 = scalar_lea.vmem [#allocation3], %s4139
        %s4141 = sand.u32 %s151, 1
        %s4142 = scalar_lea.sflag [#allocation6], %s4141
        %s4143 = sand.u32 %s151, 1
        %s4144 = smul.addr %s4143, 96
        %s4145 = scalar_lea.vmem [#allocation5], %s4144
        // Predicated region
        $region60: #{tpu_custom_call.1} parent=54 // pred_check
          %p4146 = pneg %p135
        $region61: #{tpu_custom_call.1} parent=54 // pred_check_branch
          %4148 = sbr.rel (%p4146) target = $region63
        $region62: #{tpu_custom_call.1} parent=54 // pred_region
          %s4149 = smul.u32 3, %s23
          %s4151 = ssub.s32 1536, 1536
          %4152 = vsyncadd %s4137, %s4151
          %s4153 = smul.addr %s4149, 128
          %s4154 = scalar_lea.hbm %s4, %s4153
          %s4155 = sshll.u32 %s4140, 4
          %s4156 = int_to_ptr.vmem [resolvable:$true] %s4155
          %4161 = dma.vmem_to_hbm [thread:$0]  %s4156, 1536, %s4154, %s4137, 384, 768, 24
        $region63: #{tpu_custom_call.1} parent=54 // pred_fallthru
          _
        // Predicated region
        $region64: #{tpu_custom_call.1} parent=54 // pred_check
          %p4162 = pneg %p161
        $region65: #{tpu_custom_call.1} parent=54 // pred_check_branch
          %4164 = sbr.rel (%p4162) target = $region67
        $region66: #{tpu_custom_call.1} parent=54 // pred_region
          %s4165 = smul.u32 3, %s23
          %s4167 = ssub.s32 1536, 1536
          %4168 = vsyncadd %s4142, %s4167
          %s4169 = smul.addr %s4165, 128
          %s4170 = scalar_lea.hbm %s5, %s4169
          %s4171 = sshll.u32 %s4145, 4
          %s4172 = int_to_ptr.vmem [resolvable:$true] %s4171
          %4177 = dma.vmem_to_hbm [thread:$0]  %s4172, 1536, %s4170, %s4142, 384, 768, 24
        $region67: #{tpu_custom_call.1} parent=54 // pred_fallthru
          _
      $region55: #{tpu_custom_call.1} parent=5 // pred_fallthru
        _
      %p4178 = scmp.le.s32.totalorder 2, %s18
      // Predicated region
      $region68: #{tpu_custom_call.1} parent=5 // pred_check
        %p4179 = pneg %p4178
      $region69: #{tpu_custom_call.1} parent=5 // pred_check_branch
        %4181 = sbr.rel (%p4179) target = $region71
      $region70: #{tpu_custom_call.1} parent=5 // pred_region
        %s4182 = ssub.s32 %s18, 2
        // Predicated region
        $region72: #{tpu_custom_call.1} parent=70 // pred_check
          %p4183 = pneg %p141
        $region73: #{tpu_custom_call.1} parent=70 // pred_check_branch
          %4185 = sbr.rel (%p4183) target = $region75
        $region74: #{tpu_custom_call.1} parent=70 // pred_region
          %s4186 = sand.u32 %s126, 1
          %s4187 = scalar_lea.sflag [#allocation4], %s4186
          %s4188 = sand.u32 %s126, 1
          %s4189 = smul.addr %s4188, 96
          %s4190 = scalar_lea.vmem [#allocation3], %s4189
          %4191 = dma.done %s4187, 1536
        $region75: #{tpu_custom_call.1} parent=70 // pred_fallthru
          _
        // Predicated region
        $region76: #{tpu_custom_call.1} parent=70 // pred_check
          %p4192 = pneg %p167
        $region77: #{tpu_custom_call.1} parent=70 // pred_check_branch
          %4194 = sbr.rel (%p4192) target = $region79
        $region78: #{tpu_custom_call.1} parent=70 // pred_region
          %s4195 = sand.u32 %s152, 1
          %s4196 = scalar_lea.sflag [#allocation6], %s4195
          %s4197 = sand.u32 %s152, 1
          %s4198 = smul.addr %s4197, 96
          %s4199 = scalar_lea.vmem [#allocation5], %s4198
          %4200 = dma.done %s4196, 1536
        $region79: #{tpu_custom_call.1} parent=70 // pred_fallthru
          _
      $region71: #{tpu_custom_call.1} parent=5 // pred_fallthru
        _
    $region6: #{tpu_custom_call.1} parent=1 // loop_footer
      %s22 = sadd.s32 1, %s18
    $region7: #{tpu_custom_call.1} parent=1 // loop_footer_branch
      %17 = sbr.rel target = $region3
    $region8: #{tpu_custom_call.1} parent=1 // loop_exit
      _
    %4201 = vsyncpa [#allocation4], 1
    %s4202 = scalar_lea.sflag [#allocation4], 1
    %4203 = vsyncpa %s4202, 1
    %4204 = vsyncpa [#allocation6], 1
    %s4205 = scalar_lea.sflag [#allocation6], 1
    %4206 = vsyncpa %s4205, 1

</llo_original>
